<compile_context>
chip_gen: v7x
topology: tpu7x:2x2x1
jax: 0.10.0
libtpu: 0.0.40
codegen_flags: <defaults>
</compile_context>

<pallas_src>
import functools

import jax
import jax.numpy as jnp
import numpy as np
from jax.experimental import pallas as pl
from jax.experimental.pallas import tpu as pltpu

LN_EPS = 1e-5
MATMUL_DTYPE = jnp.bfloat16            # MXU operand dtype (accumulation stays f32)
VMEM_LIMIT_BYTES = 48 * 1024 * 1024    # above default scoped limits, headroom on v7x 64MiB

_ENC_WEIGHT_NAMES = (
    "wq", "wk", "wv", "bq", "bk", "bv",
    "wo", "bo",
    "ln1_g", "ln1_b",
    "wff1", "bff1", "wff2", "bff2",
    "ln2_g", "ln2_b",
)


def _layer_norm(v, g, b, eps=LN_EPS):
    mu = jnp.mean(v, axis=-1, keepdims=True)
    var = jnp.mean((v - mu) ** 2, axis=-1, keepdims=True)
    return (v - mu) * jax.lax.rsqrt(var + eps) * g + b


def _elu(z):
    # ELU == where(z > 0, z, expm1(z)).  expm1 is reproduced with a small-|z| Taylor
    # branch so we match torch's expm1 accuracy using only exp/mul/add/where (all with
    # guaranteed Mosaic lowerings).
    small = z + 0.5 * z * z
    neg = jnp.where(z > -1e-4, small, jnp.exp(z) - 1.0)
    return jnp.where(z > 0, z, neg)


def encoder_kernel(nhead,
                   x_ref,
                   wq_ref, wk_ref, wv_ref, bq_ref, bk_ref, bv_ref,
                   wo_ref, bo_ref,
                   ln1_g_ref, ln1_b_ref,
                   wff1_ref, bff1_ref, wff2_ref, bff2_ref,
                   ln2_g_ref, ln2_b_ref,
                   s_ref):
    Bt, S, D = x_ref.shape
    H = nhead
    hd = D // H
    M = Bt * S
    mm_dtype = wq_ref.dtype

    x2 = x_ref[...].reshape(M, D)            # leading-dim merge is free
    xb = x2.astype(mm_dtype)

    # --- QKV projections: three K=D matmuls (in_proj split host-side, 1/sqrt(hd)
    # --- folded into Wq / bq), f32 accumulation, bf16 operands for the MXU.
    def proj(w_ref, b_ref):
        return (jnp.dot(xb, w_ref[...], preferred_element_type=jnp.float32)
                + b_ref[...]).astype(mm_dtype)

    q = proj(wq_ref, bq_ref)
    k = proj(wk_ref, bk_ref)
    v = proj(wv_ref, bv_ref)

    # --- Merge (batch, head) into one leading axis so all heads go through a single
    # --- batched score einsum and a single batched context einsum.
    def to_batched_heads(a):
        a3 = a.reshape(Bt, S, D)
        return jnp.concatenate(
            [a3[:, :, h * hd:(h + 1) * hd] for h in range(H)], axis=0)   # (H*Bt, S, hd)

    qh = to_batched_heads(q)
    kh = to_batched_heads(k)
    vh = to_batched_heads(v)

    # TODO(synk): for long sequences, block this over KV (flash-style online softmax)
    # instead of materializing the (H*Bt, S, S) score/probability tensors.
    sc = jnp.einsum("nqd,nkd->nqk", qh, kh, preferred_element_type=jnp.float32)
    sc = sc - jnp.max(sc, axis=-1, keepdims=True)
    p = jnp.exp(sc)
    inv = pl.reciprocal(jnp.sum(p, axis=-1, keepdims=True), approx=True)
    ctx = jnp.einsum("nqk,nkd->nqd", p.astype(mm_dtype), vh,
                     preferred_element_type=jnp.float32) * inv            # (H*Bt, S, hd)

    # Reassemble heads along the lane axis and apply ONE K=D output projection.
    ctx_full = jnp.concatenate(
        [ctx[h * Bt:(h + 1) * Bt] for h in range(H)], axis=-1)            # (Bt, S, D)
    attn = jnp.dot(ctx_full.reshape(M, D).astype(mm_dtype), wo_ref[...],
                   preferred_element_type=jnp.float32) + bo_ref[...]

    # TODO(synk): dropout inside TransformerEncoderLayer is stochastic in training mode;
    # treated as identity here for a deterministic kernel.
    src = _layer_norm(x2 + attn, ln1_g_ref[...], ln1_b_ref[...])

    ff = jnp.dot(src.astype(mm_dtype), wff1_ref[...],
                 preferred_element_type=jnp.float32) + bff1_ref[...]
    ff = jnp.maximum(ff, 0.0)
    ff = jnp.dot(ff.astype(mm_dtype), wff2_ref[...],
                 preferred_element_type=jnp.float32) + bff2_ref[...]
    out = _layer_norm(src + ff, ln2_g_ref[...], ln2_b_ref[...])

    # TODO(synk): for D not a multiple of 128 this store is not lane-dense (masked vst);
    # a wrapper-side (B, S*D) collapse would make it dense at the cost of an in-kernel
    # lane relayout.
    s_ref[...] = out.reshape(Bt, S, D).astype(s_ref.dtype)


def g_branch_kernel(y_ref, wg_ref, t_ref):
    z = jnp.dot(y_ref[...].astype(wg_ref.dtype), wg_ref[...],
                preferred_element_type=jnp.float32)
    t_ref[...] = _elu(z)


def prepare_kernel_weights(params, matmul_dtype=MATMUL_DTYPE):
    """Host side, once: split in_proj into Wq/Wk/Wv, transpose everything to (in, out),
    fold 1/sqrt(head_dim) into the Q projection, pre-cast matmul weights to the MXU
    operand dtype (bf16).  Biases / LayerNorm params stay f32."""
    D = params["w_out"].shape[0]
    nhead = params["nhead"]
    assert D % nhead == 0
    hd = D // nhead
    scale = jnp.float32(1.0 / np.sqrt(hd))
    f32 = jnp.float32
    cast = lambda w: w.astype(matmul_dtype)
    w_in, b_in = params["w_in"], params["b_in"]          # (3D, D), (1, 3D) torch layout
    # TODO(synk): on v6e, int8 wff1/wff2 would halve FFN weight DMA again; not done here
    # (v7x MXU has no int path).
    return dict(
        nhead=nhead,
        wq=cast((w_in[:D] * scale).T), bq=(b_in[:, :D] * scale).astype(f32),
        wk=cast(w_in[D:2 * D].T),      bk=b_in[:, D:2 * D].astype(f32),
        wv=cast(w_in[2 * D:].T),       bv=b_in[:, 2 * D:].astype(f32),
        wo=cast(params["w_out"].T),    bo=params["b_out"].astype(f32),
        ln1_g=params["ln1_g"].astype(f32), ln1_b=params["ln1_b"].astype(f32),
        wff1=cast(params["w_ff1"].T),  bff1=params["b_ff1"].astype(f32),
        wff2=cast(params["w_ff2"].T),  bff2=params["b_ff2"].astype(f32),
        ln2_g=params["ln2_g"].astype(f32), ln2_b=params["ln2_b"].astype(f32),
        wg=cast(params["w_g"].T),
    )


def _pick_batch_tile(B, S, batch_tile=None, target_rows=512):
    """Batch elements per grid step.  Attention needs the full sequence per batch
    element, so the row tile is batch_tile * S; aim for a few hundred rows per step and
    at least two grid steps so BlockSpec double-buffering pipelines the x/s HBM traffic
    against compute (on v7x the step count should also be >= 2 per TensorCore)."""
    if batch_tile is None:
        bt = max(1, min(B, target_rows // max(S, 1)))
        if B > 1:
            bt = min(bt, max(1, B // 2))     # ensure >= 2 grid steps for pipelining
    else:
        bt = max(1, min(B, batch_tile))
    while B % bt:
        bt -= 1
    return bt


def _encoder_call(kparams, x, bt, single_buffer_weights):
    B, S, D = x.shape
    nhead = kparams["nhead"]
    weights = [kparams[name] for name in _ENC_WEIGHT_NAMES]

    def weight_spec(shape):
        n = len(shape)
        kwargs = {}
        if single_buffer_weights:
            # Constant index_map -> block never changes; a single buffer halves the
            # weights' VMEM footprint (matters most on v7x 64 MiB / v5e 16 MiB scoped).
            kwargs["pipeline_mode"] = pl.Buffered(1)
        return pl.BlockSpec(shape, lambda i, n=n: (0,) * n, **kwargs)

    in_specs = [pl.BlockSpec((bt, S, D), lambda i: (i, 0, 0))]
    in_specs += [weight_spec(w.shape) for w in weights]
    out_specs = pl.BlockSpec((bt, S, D), lambda i: (i, 0, 0))

    return pl.pallas_call(
        functools.partial(encoder_kernel, nhead),
        grid=(B // bt,),
        in_specs=in_specs,
        out_specs=out_specs,
        out_shape=jax.ShapeDtypeStruct((B, S, D), jnp.float32),
        compiler_params=pltpu.CompilerParams(
            dimension_semantics=("parallel",),
            # TODO(synk): re-derive per generation; 48 MiB is above the default scoped
            # limits (16/32 MiB) while leaving headroom under v7x's 64 MiB per core.
            vmem_limit_bytes=VMEM_LIMIT_BYTES,
        ),
    )(x, *weights)


def encoder_forward(kparams, x, *, batch_tile=None):
    B, S, _ = x.shape
    bt = _pick_batch_tile(B, S, batch_tile)
    if hasattr(pl, "Buffered"):
        try:
            return _encoder_call(kparams, x, bt, True)
        except Exception:
            pass  # pl.Buffered(1) not supported by this Pallas build; default buffering.
    return _encoder_call(kparams, x, bt, False)


def g_branch_forward(kparams, y):
    B, _ = y.shape
    Hy = kparams["wg"].shape[1]
    return pl.pallas_call(
        g_branch_kernel,
        out_shape=jax.ShapeDtypeStruct((B, Hy), jnp.float32),
    )(y, kparams["wg"])


def transformer_encoder_al_forward(kparams, x, y, *, batch_tile=None):
    """Training-branch forward of TransformerEncoderAL: returns (_s, _t)."""
    s = encoder_forward(kparams, x, batch_tile=batch_tile)
    t = g_branch_forward(kparams, y)
    return s, t


def reference_forward(params, x, y):
    """Plain-JAX f32 reference (PyTorch-layout weights) for correctness checking."""
    B, S, D = x.shape
    nhead = params["nhead"]
    hd = D // nhead

    def ln(v, g, b):
        mu = v.mean(-1, keepdims=True)
        var = ((v - mu) ** 2).mean(-1, keepdims=True)
        return (v - mu) / jnp.sqrt(var + LN_EPS) * g + b

    qkv = x @ params["w_in"].T + params["b_in"]
    q, k, v = jnp.split(qkv, 3, axis=-1)
    sh = lambda a: a.reshape(B, S, nhead, hd).transpose(0, 2, 1, 3)
    qh, kh, vh = sh(q), sh(k), sh(v)
    logits = jnp.einsum("bhqd,bhkd->bhqk", qh, kh) / np.sqrt(hd)
    p = jax.nn.softmax(logits, axis=-1)
    attn = jnp.einsum("bhqk,bhkd->bhqd", p, vh).transpose(0, 2, 1, 3).reshape(B, S, D)
    attn = attn @ params["w_out"].T + params["b_out"]
    src = ln(x + attn, params["ln1_g"], params["ln1_b"])
    ff = jax.nn.relu(src @ params["w_ff1"].T + params["b_ff1"])
    ff = ff @ params["w_ff2"].T + params["b_ff2"]
    s_out = ln(src + ff, params["ln2_g"], params["ln2_b"])
    t = y @ params["w_g"].T
    t = jnp.where(t > 0, t, jnp.expm1(t))
    return s_out, t


def init_params(key, d_model_x, d_model_y, nhead, y_hidden, dim_feedforward):
    D, Dy, F = d_model_x, d_model_y, dim_feedforward
    ks = jax.random.split(key, 10)

    def uni(k, shape, fan_in):
        bound = 1.0 / np.sqrt(fan_in)
        return jax.random.uniform(k, shape, jnp.float32, -bound, bound)

    return dict(
        nhead=nhead,
        # MultiheadAttention in_proj / out_proj (PyTorch (out, in) layout)
        w_in=uni(ks[0], (3 * D, D), D),
        b_in=uni(ks[1], (1, 3 * D), D),
        w_out=uni(ks[2], (D, D), D),
        b_out=uni(ks[3], (1, D), D),
        # LayerNorms
        ln1_g=jnp.ones((1, D), jnp.float32),
        ln1_b=jnp.zeros((1, D), jnp.float32),
        ln2_g=jnp.ones((1, D), jnp.float32),
        ln2_b=jnp.zeros((1, D), jnp.float32),
        # Feed-forward
        w_ff1=uni(ks[4], (F, D), D),
        b_ff1=uni(ks[5], (1, F), D),
        w_ff2=uni(ks[6], (D, F), F),
        b_ff2=uni(ks[7], (1, D), F),
        # g: Linear(d_model[1], y_hidden, bias=False)
        w_g=uni(ks[8], (y_hidden, Dy), Dy),
    )


if __name__ == "__main__":
    B, S = 2, 8
    d_model = (32, 32)
    nhead = 4
    y_hidden = 32
    dim_feedforward = 64

    key = jax.random.PRNGKey(0)
    kx, ky, kp = jax.random.split(key, 3)
    x = jax.random.normal(kx, (B, S, d_model[0]), jnp.float32)
    y = jax.random.normal(ky, (B, d_model[1]), jnp.float32)

    params = init_params(kp, d_model[0], d_model[1], nhead, y_hidden, dim_feedforward)
    kparams = prepare_kernel_weights(params)

    s_out, t_out = transformer_encoder_al_forward(kparams, x, y)
    jax.block_until_ready((s_out, t_out))

    s_ref, t_ref = reference_forward(params, x, y)
    # Kernel matmuls run with bf16 MXU operands (f32 accumulation) and an approximate
    # softmax reciprocal, so compare against the f32 reference with bf16-level slack.
    np.testing.assert_allclose(np.asarray(s_out), np.asarray(s_ref), rtol=5e-2, atol=5e-2)
    np.testing.assert_allclose(np.asarray(t_out), np.asarray(t_ref), rtol=2e-2, atol=2e-2)

    print("KERNEL_OK")
</pallas_src>

<mosaic_0001>
module attributes {stable_mosaic.version = 11 : i64} {
  func.func @encoder_kernel(%arg0: i32, %arg1: memref<1x8x32xf32, #tpu.memory_space<vmem>>, %arg2: memref<32x32xbf16, #tpu.memory_space<vmem>>, %arg3: memref<32x32xbf16, #tpu.memory_space<vmem>>, %arg4: memref<32x32xbf16, #tpu.memory_space<vmem>>, %arg5: memref<1x32xf32, #tpu.memory_space<vmem>>, %arg6: memref<1x32xf32, #tpu.memory_space<vmem>>, %arg7: memref<1x32xf32, #tpu.memory_space<vmem>>, %arg8: memref<32x32xbf16, #tpu.memory_space<vmem>>, %arg9: memref<1x32xf32, #tpu.memory_space<vmem>>, %arg10: memref<1x32xf32, #tpu.memory_space<vmem>>, %arg11: memref<1x32xf32, #tpu.memory_space<vmem>>, %arg12: memref<32x64xbf16, #tpu.memory_space<vmem>>, %arg13: memref<1x64xf32, #tpu.memory_space<vmem>>, %arg14: memref<64x32xbf16, #tpu.memory_space<vmem>>, %arg15: memref<1x32xf32, #tpu.memory_space<vmem>>, %arg16: memref<1x32xf32, #tpu.memory_space<vmem>>, %arg17: memref<1x32xf32, #tpu.memory_space<vmem>>, %arg18: memref<1x8x32xf32, #tpu.memory_space<vmem>>) attributes {dimension_semantics = [#tpu.dimension_semantics<parallel>], iteration_bounds = array<i64: 2>, scalar_prefetch = 0 : i64, scratch_operands = 0 : i64, tpu.core_type = #tpu.core_type<tc>, window_params = [{transform_indices = @transform_0, window_bounds = array<i64: 1, 8, 32>}, {pipeline_mode = #tpu.pipeline_mode<synchronous>, transform_indices = @transform_1, window_bounds = array<i64: 32, 32>}, {pipeline_mode = #tpu.pipeline_mode<synchronous>, transform_indices = @transform_2, window_bounds = array<i64: 32, 32>}, {pipeline_mode = #tpu.pipeline_mode<synchronous>, transform_indices = @transform_3, window_bounds = array<i64: 32, 32>}, {pipeline_mode = #tpu.pipeline_mode<synchronous>, transform_indices = @transform_4, window_bounds = array<i64: 1, 32>}, {pipeline_mode = #tpu.pipeline_mode<synchronous>, transform_indices = @transform_5, window_bounds = array<i64: 1, 32>}, {pipeline_mode = #tpu.pipeline_mode<synchronous>, transform_indices = @transform_6, window_bounds = array<i64: 1, 32>}, {pipeline_mode = #tpu.pipeline_mode<synchronous>, transform_indices = @transform_7, window_bounds = array<i64: 32, 32>}, {pipeline_mode = #tpu.pipeline_mode<synchronous>, transform_indices = @transform_8, window_bounds = array<i64: 1, 32>}, {pipeline_mode = #tpu.pipeline_mode<synchronous>, transform_indices = @transform_9, window_bounds = array<i64: 1, 32>}, {pipeline_mode = #tpu.pipeline_mode<synchronous>, transform_indices = @transform_10, window_bounds = array<i64: 1, 32>}, {pipeline_mode = #tpu.pipeline_mode<synchronous>, transform_indices = @transform_11, window_bounds = array<i64: 32, 64>}, {pipeline_mode = #tpu.pipeline_mode<synchronous>, transform_indices = @transform_12, window_bounds = array<i64: 1, 64>}, {pipeline_mode = #tpu.pipeline_mode<synchronous>, transform_indices = @transform_13, window_bounds = array<i64: 64, 32>}, {pipeline_mode = #tpu.pipeline_mode<synchronous>, transform_indices = @transform_14, window_bounds = array<i64: 1, 32>}, {pipeline_mode = #tpu.pipeline_mode<synchronous>, transform_indices = @transform_15, window_bounds = array<i64: 1, 32>}, {pipeline_mode = #tpu.pipeline_mode<synchronous>, transform_indices = @transform_16, window_bounds = array<i64: 1, 32>}, {transform_indices = @transform_17, window_bounds = array<i64: 1, 8, 32>}]} {
    %c0 = arith.constant 0 : index
    %c0_0 = arith.constant 0 : index
    %c0_1 = arith.constant 0 : index
    %0 = vector.load %arg1[%c0, %c0_0, %c0_1] : memref<1x8x32xf32, #tpu.memory_space<vmem>>, vector<1x8x32xf32>
    %1 = vector.shape_cast %0 : vector<1x8x32xf32> to vector<8x32xf32>
    %2 = arith.truncf %1 : vector<8x32xf32> to vector<8x32xbf16>
    %c0_2 = arith.constant 0 : index
    %c0_3 = arith.constant 0 : index
    %3 = vector.load %arg2[%c0_2, %c0_3] : memref<32x32xbf16, #tpu.memory_space<vmem>>, vector<32x32xbf16>
    %cst = arith.constant dense<0.000000e+00> : vector<8x32xf32>
    %4 = tpu.matmul %2, %3, %cst {dimension_numbers = #tpu.dot_dimension_numbers<[1], [0], [0], [1], [0, 0, 1, 1], [], []>} : vector<8x32xbf16>, vector<32x32xbf16>, vector<8x32xf32> -> vector<8x32xf32>
    %c0_4 = arith.constant 0 : index
    %c0_5 = arith.constant 0 : index
    %5 = vector.load %arg5[%c0_4, %c0_5] : memref<1x32xf32, #tpu.memory_space<vmem>>, vector<1x32xf32>
    %6 = vector.broadcast %5 : vector<1x32xf32> to vector<8x32xf32>
    %7 = arith.addf %4, %6 : vector<8x32xf32>
    %8 = arith.truncf %7 : vector<8x32xf32> to vector<8x32xbf16>
    %c0_6 = arith.constant 0 : index
    %c0_7 = arith.constant 0 : index
    %9 = vector.load %arg3[%c0_6, %c0_7] : memref<32x32xbf16, #tpu.memory_space<vmem>>, vector<32x32xbf16>
    %cst_8 = arith.constant dense<0.000000e+00> : vector<8x32xf32>
    %10 = tpu.matmul %2, %9, %cst_8 {dimension_numbers = #tpu.dot_dimension_numbers<[1], [0], [0], [1], [0, 0, 1, 1], [], []>} : vector<8x32xbf16>, vector<32x32xbf16>, vector<8x32xf32> -> vector<8x32xf32>
    %c0_9 = arith.constant 0 : index
    %c0_10 = arith.constant 0 : index
    %11 = vector.load %arg6[%c0_9, %c0_10] : memref<1x32xf32, #tpu.memory_space<vmem>>, vector<1x32xf32>
    %12 = vector.broadcast %11 : vector<1x32xf32> to vector<8x32xf32>
    %13 = arith.addf %10, %12 : vector<8x32xf32>
    %14 = arith.truncf %13 : vector<8x32xf32> to vector<8x32xbf16>
    %c0_11 = arith.constant 0 : index
    %c0_12 = arith.constant 0 : index
    %15 = vector.load %arg4[%c0_11, %c0_12] : memref<32x32xbf16, #tpu.memory_space<vmem>>, vector<32x32xbf16>
    %cst_13 = arith.constant dense<0.000000e+00> : vector<8x32xf32>
    %16 = tpu.matmul %2, %15, %cst_13 {dimension_numbers = #tpu.dot_dimension_numbers<[1], [0], [0], [1], [0, 0, 1, 1], [], []>} : vector<8x32xbf16>, vector<32x32xbf16>, vector<8x32xf32> -> vector<8x32xf32>
    %c0_14 = arith.constant 0 : index
    %c0_15 = arith.constant 0 : index
    %17 = vector.load %arg7[%c0_14, %c0_15] : memref<1x32xf32, #tpu.memory_space<vmem>>, vector<1x32xf32>
    %18 = vector.broadcast %17 : vector<1x32xf32> to vector<8x32xf32>
    %19 = arith.addf %16, %18 : vector<8x32xf32>
    %20 = arith.truncf %19 : vector<8x32xf32> to vector<8x32xbf16>
    %21 = vector.shape_cast %8 : vector<8x32xbf16> to vector<1x8x32xbf16>
    %22 = vector.extract_strided_slice %21 {offsets = [0, 0, 0], sizes = [1, 8, 8], strides = [1, 1, 1]} : vector<1x8x32xbf16> to vector<1x8x8xbf16>
    %23 = vector.extract_strided_slice %21 {offsets = [0, 0, 8], sizes = [1, 8, 8], strides = [1, 1, 1]} : vector<1x8x32xbf16> to vector<1x8x8xbf16>
    %24 = vector.extract_strided_slice %21 {offsets = [0, 0, 16], sizes = [1, 8, 8], strides = [1, 1, 1]} : vector<1x8x32xbf16> to vector<1x8x8xbf16>
    %25 = vector.extract_strided_slice %21 {offsets = [0, 0, 24], sizes = [1, 8, 8], strides = [1, 1, 1]} : vector<1x8x32xbf16> to vector<1x8x8xbf16>
    %26 = tpu.concatenate %22, %23, %24, %25 in 0 : vector<1x8x8xbf16>, vector<1x8x8xbf16>, vector<1x8x8xbf16>, vector<1x8x8xbf16> -> vector<4x8x8xbf16>
    %27 = vector.shape_cast %14 : vector<8x32xbf16> to vector<1x8x32xbf16>
    %28 = vector.extract_strided_slice %27 {offsets = [0, 0, 0], sizes = [1, 8, 8], strides = [1, 1, 1]} : vector<1x8x32xbf16> to vector<1x8x8xbf16>
    %29 = vector.extract_strided_slice %27 {offsets = [0, 0, 8], sizes = [1, 8, 8], strides = [1, 1, 1]} : vector<1x8x32xbf16> to vector<1x8x8xbf16>
    %30 = vector.extract_strided_slice %27 {offsets = [0, 0, 16], sizes = [1, 8, 8], strides = [1, 1, 1]} : vector<1x8x32xbf16> to vector<1x8x8xbf16>
    %31 = vector.extract_strided_slice %27 {offsets = [0, 0, 24], sizes = [1, 8, 8], strides = [1, 1, 1]} : vector<1x8x32xbf16> to vector<1x8x8xbf16>
    %32 = tpu.concatenate %28, %29, %30, %31 in 0 : vector<1x8x8xbf16>, vector<1x8x8xbf16>, vector<1x8x8xbf16>, vector<1x8x8xbf16> -> vector<4x8x8xbf16>
    %33 = vector.shape_cast %20 : vector<8x32xbf16> to vector<1x8x32xbf16>
    %34 = vector.extract_strided_slice %33 {offsets = [0, 0, 0], sizes = [1, 8, 8], strides = [1, 1, 1]} : vector<1x8x32xbf16> to vector<1x8x8xbf16>
    %35 = vector.extract_strided_slice %33 {offsets = [0, 0, 8], sizes = [1, 8, 8], strides = [1, 1, 1]} : vector<1x8x32xbf16> to vector<1x8x8xbf16>
    %36 = vector.extract_strided_slice %33 {offsets = [0, 0, 16], sizes = [1, 8, 8], strides = [1, 1, 1]} : vector<1x8x32xbf16> to vector<1x8x8xbf16>
    %37 = vector.extract_strided_slice %33 {offsets = [0, 0, 24], sizes = [1, 8, 8], strides = [1, 1, 1]} : vector<1x8x32xbf16> to vector<1x8x8xbf16>
    %38 = tpu.concatenate %34, %35, %36, %37 in 0 : vector<1x8x8xbf16>, vector<1x8x8xbf16>, vector<1x8x8xbf16>, vector<1x8x8xbf16> -> vector<4x8x8xbf16>
    "tpu.trace_start"() <{level = 10 : i32, message = "nqd,nkd->nqk"}> : () -> ()
    %cst_16 = arith.constant dense<0.000000e+00> : vector<4x8x8xf32>
    %39 = tpu.matmul %26, %32, %cst_16 {dimension_numbers = #tpu.dot_dimension_numbers<[2], [2], [1], [1], [0, 0, 0, 1, 1, 1], [0], [0]>} : vector<4x8x8xbf16>, vector<4x8x8xbf16>, vector<4x8x8xf32> -> vector<4x8x8xf32>
    "tpu.trace_stop"() : () -> ()
    %cst_17 = arith.constant dense<0xFF800000> : vector<4x8xf32>
    %40 = vector.multi_reduction <maximumf>, %39, %cst_17 [2] : vector<4x8x8xf32> to vector<4x8xf32>
    %41 = vector.shape_cast %40 : vector<4x8xf32> to vector<4x8x1xf32>
    %42 = vector.broadcast %41 : vector<4x8x1xf32> to vector<4x8x8xf32>
    %43 = arith.subf %39, %42 : vector<4x8x8xf32>
    %44 = math.exp %43 : vector<4x8x8xf32>
    %cst_18 = arith.constant dense<0.000000e+00> : vector<4x8xf32>
    %45 = vector.multi_reduction <add>, %44, %cst_18 [2] : vector<4x8x8xf32> to vector<4x8xf32>
    %46 = vector.shape_cast %45 : vector<4x8xf32> to vector<4x8x1xf32>
    %47 = tpu.reciprocal %46 {approx = true} : vector<4x8x1xf32> -> vector<4x8x1xf32>
    %48 = arith.truncf %44 : vector<4x8x8xf32> to vector<4x8x8xbf16>
    "tpu.trace_start"() <{level = 10 : i32, message = "nqk,nkd->nqd"}> : () -> ()
    %cst_19 = arith.constant dense<0.000000e+00> : vector<4x8x8xf32>
    %49 = tpu.matmul %48, %38, %cst_19 {dimension_numbers = #tpu.dot_dimension_numbers<[2], [1], [1], [2], [0, 0, 0, 1, 1, 2], [0], [0]>} : vector<4x8x8xbf16>, vector<4x8x8xbf16>, vector<4x8x8xf32> -> vector<4x8x8xf32>
    "tpu.trace_stop"() : () -> ()
    %50 = vector.broadcast %47 : vector<4x8x1xf32> to vector<4x8x8xf32>
    %51 = arith.mulf %49, %50 : vector<4x8x8xf32>
    %52 = vector.extract_strided_slice %51 {offsets = [0, 0, 0], sizes = [1, 8, 8], strides = [1, 1, 1]} : vector<4x8x8xf32> to vector<1x8x8xf32>
    %53 = vector.extract_strided_slice %51 {offsets = [1, 0, 0], sizes = [1, 8, 8], strides = [1, 1, 1]} : vector<4x8x8xf32> to vector<1x8x8xf32>
    %54 = vector.extract_strided_slice %51 {offsets = [2, 0, 0], sizes = [1, 8, 8], strides = [1, 1, 1]} : vector<4x8x8xf32> to vector<1x8x8xf32>
    %55 = vector.extract_strided_slice %51 {offsets = [3, 0, 0], sizes = [1, 8, 8], strides = [1, 1, 1]} : vector<4x8x8xf32> to vector<1x8x8xf32>
    %56 = tpu.concatenate %52, %53, %54, %55 in 2 : vector<1x8x8xf32>, vector<1x8x8xf32>, vector<1x8x8xf32>, vector<1x8x8xf32> -> vector<1x8x32xf32>
    %57 = vector.shape_cast %56 : vector<1x8x32xf32> to vector<8x32xf32>
    %58 = arith.truncf %57 : vector<8x32xf32> to vector<8x32xbf16>
    %c0_20 = arith.constant 0 : index
    %c0_21 = arith.constant 0 : index
    %59 = vector.load %arg8[%c0_20, %c0_21] : memref<32x32xbf16, #tpu.memory_space<vmem>>, vector<32x32xbf16>
    %cst_22 = arith.constant dense<0.000000e+00> : vector<8x32xf32>
    %60 = tpu.matmul %58, %59, %cst_22 {dimension_numbers = #tpu.dot_dimension_numbers<[1], [0], [0], [1], [0, 0, 1, 1], [], []>} : vector<8x32xbf16>, vector<32x32xbf16>, vector<8x32xf32> -> vector<8x32xf32>
    %c0_23 = arith.constant 0 : index
    %c0_24 = arith.constant 0 : index
    %61 = vector.load %arg9[%c0_23, %c0_24] : memref<1x32xf32, #tpu.memory_space<vmem>>, vector<1x32xf32>
    %62 = vector.broadcast %61 : vector<1x32xf32> to vector<8x32xf32>
    %63 = arith.addf %60, %62 : vector<8x32xf32>
    %64 = arith.addf %1, %63 : vector<8x32xf32>
    %c0_25 = arith.constant 0 : index
    %c0_26 = arith.constant 0 : index
    %65 = vector.load %arg10[%c0_25, %c0_26] : memref<1x32xf32, #tpu.memory_space<vmem>>, vector<1x32xf32>
    %c0_27 = arith.constant 0 : index
    %c0_28 = arith.constant 0 : index
    %66 = vector.load %arg11[%c0_27, %c0_28] : memref<1x32xf32, #tpu.memory_space<vmem>>, vector<1x32xf32>
    %cst_29 = arith.constant dense<0.000000e+00> : vector<8xf32>
    %67 = vector.multi_reduction <add>, %64, %cst_29 [1] : vector<8x32xf32> to vector<8xf32>
    %68 = vector.shape_cast %67 : vector<8xf32> to vector<8x1xf32>
    %cst_30 = arith.constant 3.200000e+01 : f32
    %69 = vector.broadcast %cst_30 : f32 to vector<8x1xf32>
    %70 = arith.divf %68, %69 : vector<8x1xf32>
    %71 = vector.broadcast %70 : vector<8x1xf32> to vector<8x32xf32>
    %72 = arith.subf %64, %71 : vector<8x32xf32>
    %73 = arith.mulf %72, %72 : vector<8x32xf32>
    %cst_31 = arith.constant dense<0.000000e+00> : vector<8xf32>
    %74 = vector.multi_reduction <add>, %73, %cst_31 [1] : vector<8x32xf32> to vector<8xf32>
    %75 = vector.shape_cast %74 : vector<8xf32> to vector<8x1xf32>
    %cst_32 = arith.constant 3.200000e+01 : f32
    %76 = vector.broadcast %cst_32 : f32 to vector<8x1xf32>
    %77 = arith.divf %75, %76 : vector<8x1xf32>
    %78 = vector.broadcast %70 : vector<8x1xf32> to vector<8x32xf32>
    %79 = arith.subf %64, %78 : vector<8x32xf32>
    %cst_33 = arith.constant 9.99999974E-6 : f32
    %80 = vector.broadcast %cst_33 : f32 to vector<8x1xf32>
    %81 = arith.addf %77, %80 : vector<8x1xf32>
    %82 = math.rsqrt %81 : vector<8x1xf32>
    %83 = vector.broadcast %82 : vector<8x1xf32> to vector<8x32xf32>
    %84 = arith.mulf %79, %83 : vector<8x32xf32>
    %85 = vector.broadcast %65 : vector<1x32xf32> to vector<8x32xf32>
    %86 = arith.mulf %84, %85 : vector<8x32xf32>
    %87 = vector.broadcast %66 : vector<1x32xf32> to vector<8x32xf32>
    %88 = arith.addf %86, %87 : vector<8x32xf32>
    %89 = arith.truncf %88 : vector<8x32xf32> to vector<8x32xbf16>
    %c0_34 = arith.constant 0 : index
    %c0_35 = arith.constant 0 : index
    %90 = vector.load %arg12[%c0_34, %c0_35] : memref<32x64xbf16, #tpu.memory_space<vmem>>, vector<32x64xbf16>
    %cst_36 = arith.constant dense<0.000000e+00> : vector<8x64xf32>
    %91 = tpu.matmul %89, %90, %cst_36 {dimension_numbers = #tpu.dot_dimension_numbers<[1], [0], [0], [1], [0, 0, 1, 1], [], []>} : vector<8x32xbf16>, vector<32x64xbf16>, vector<8x64xf32> -> vector<8x64xf32>
    %c0_37 = arith.constant 0 : index
    %c0_38 = arith.constant 0 : index
    %92 = vector.load %arg13[%c0_37, %c0_38] : memref<1x64xf32, #tpu.memory_space<vmem>>, vector<1x64xf32>
    %93 = vector.broadcast %92 : vector<1x64xf32> to vector<8x64xf32>
    %94 = arith.addf %91, %93 : vector<8x64xf32>
    %cst_39 = arith.constant 0.000000e+00 : f32
    %95 = vector.broadcast %cst_39 : f32 to vector<8x64xf32>
    %96 = arith.maximumf %94, %95 : vector<8x64xf32>
    %97 = arith.truncf %96 : vector<8x64xf32> to vector<8x64xbf16>
    %c0_40 = arith.constant 0 : index
    %c0_41 = arith.constant 0 : index
    %98 = vector.load %arg14[%c0_40, %c0_41] : memref<64x32xbf16, #tpu.memory_space<vmem>>, vector<64x32xbf16>
    %cst_42 = arith.constant dense<0.000000e+00> : vector<8x32xf32>
    %99 = tpu.matmul %97, %98, %cst_42 {dimension_numbers = #tpu.dot_dimension_numbers<[1], [0], [0], [1], [0, 0, 1, 1], [], []>} : vector<8x64xbf16>, vector<64x32xbf16>, vector<8x32xf32> -> vector<8x32xf32>
    %c0_43 = arith.constant 0 : index
    %c0_44 = arith.constant 0 : index
    %100 = vector.load %arg15[%c0_43, %c0_44] : memref<1x32xf32, #tpu.memory_space<vmem>>, vector<1x32xf32>
    %101 = vector.broadcast %100 : vector<1x32xf32> to vector<8x32xf32>
    %102 = arith.addf %99, %101 : vector<8x32xf32>
    %103 = arith.addf %88, %102 : vector<8x32xf32>
    %c0_45 = arith.constant 0 : index
    %c0_46 = arith.constant 0 : index
    %104 = vector.load %arg16[%c0_45, %c0_46] : memref<1x32xf32, #tpu.memory_space<vmem>>, vector<1x32xf32>
    %c0_47 = arith.constant 0 : index
    %c0_48 = arith.constant 0 : index
    %105 = vector.load %arg17[%c0_47, %c0_48] : memref<1x32xf32, #tpu.memory_space<vmem>>, vector<1x32xf32>
    %cst_49 = arith.constant dense<0.000000e+00> : vector<8xf32>
    %106 = vector.multi_reduction <add>, %103, %cst_49 [1] : vector<8x32xf32> to vector<8xf32>
    %107 = vector.shape_cast %106 : vector<8xf32> to vector<8x1xf32>
    %cst_50 = arith.constant 3.200000e+01 : f32
    %108 = vector.broadcast %cst_50 : f32 to vector<8x1xf32>
    %109 = arith.divf %107, %108 : vector<8x1xf32>
    %110 = vector.broadcast %109 : vector<8x1xf32> to vector<8x32xf32>
    %111 = arith.subf %103, %110 : vector<8x32xf32>
    %112 = arith.mulf %111, %111 : vector<8x32xf32>
    %cst_51 = arith.constant dense<0.000000e+00> : vector<8xf32>
    %113 = vector.multi_reduction <add>, %112, %cst_51 [1] : vector<8x32xf32> to vector<8xf32>
    %114 = vector.shape_cast %113 : vector<8xf32> to vector<8x1xf32>
    %cst_52 = arith.constant 3.200000e+01 : f32
    %115 = vector.broadcast %cst_52 : f32 to vector<8x1xf32>
    %116 = arith.divf %114, %115 : vector<8x1xf32>
    %117 = vector.broadcast %109 : vector<8x1xf32> to vector<8x32xf32>
    %118 = arith.subf %103, %117 : vector<8x32xf32>
    %cst_53 = arith.constant 9.99999974E-6 : f32
    %119 = vector.broadcast %cst_53 : f32 to vector<8x1xf32>
    %120 = arith.addf %116, %119 : vector<8x1xf32>
    %121 = math.rsqrt %120 : vector<8x1xf32>
    %122 = vector.broadcast %121 : vector<8x1xf32> to vector<8x32xf32>
    %123 = arith.mulf %118, %122 : vector<8x32xf32>
    %124 = vector.broadcast %104 : vector<1x32xf32> to vector<8x32xf32>
    %125 = arith.mulf %123, %124 : vector<8x32xf32>
    %126 = vector.broadcast %105 : vector<1x32xf32> to vector<8x32xf32>
    %127 = arith.addf %125, %126 : vector<8x32xf32>
    %128 = vector.shape_cast %127 : vector<8x32xf32> to vector<1x8x32xf32>
    %c0_54 = arith.constant 0 : index
    %c0_55 = arith.constant 0 : index
    %c0_56 = arith.constant 0 : index
    %129 = vector.load %arg18[%c0_54, %c0_55, %c0_56] : memref<1x8x32xf32, #tpu.memory_space<vmem>>, vector<1x8x32xf32>
    tpu.vector_store %arg18[%c0_54, %c0_55, %c0_56], %128 {strides = array<i32>} : memref<1x8x32xf32, #tpu.memory_space<vmem>>, vector<1x8x32xf32>,
    return
  }
  func.func @transform_0(%arg0: i32) -> (i32, i32, i32) {
    %c0_i32 = arith.constant 0 : i32
    %c0_i32_0 = arith.constant 0 : i32
    %c0_i32_1 = arith.constant 0 : i32
    return %arg0, %c0_i32, %c0_i32_0 : i32, i32, i32
  }
  func.func @transform_1(%arg0: i32) -> (i32, i32) {
    %c0_i32 = arith.constant 0 : i32
    %c0_i32_0 = arith.constant 0 : i32
    %c0_i32_1 = arith.constant 0 : i32
    return %c0_i32, %c0_i32_0 : i32, i32
  }
  func.func @transform_2(%arg0: i32) -> (i32, i32) {
    %c0_i32 = arith.constant 0 : i32
    %c0_i32_0 = arith.constant 0 : i32
    %c0_i32_1 = arith.constant 0 : i32
    return %c0_i32, %c0_i32_0 : i32, i32
  }
  func.func @transform_3(%arg0: i32) -> (i32, i32) {
    %c0_i32 = arith.constant 0 : i32
    %c0_i32_0 = arith.constant 0 : i32
    %c0_i32_1 = arith.constant 0 : i32
    return %c0_i32, %c0_i32_0 : i32, i32
  }
  func.func @transform_4(%arg0: i32) -> (i32, i32) {
    %c0_i32 = arith.constant 0 : i32
    %c0_i32_0 = arith.constant 0 : i32
    %c0_i32_1 = arith.constant 0 : i32
    return %c0_i32, %c0_i32_0 : i32, i32
  }
  func.func @transform_5(%arg0: i32) -> (i32, i32) {
    %c0_i32 = arith.constant 0 : i32
    %c0_i32_0 = arith.constant 0 : i32
    %c0_i32_1 = arith.constant 0 : i32
    return %c0_i32, %c0_i32_0 : i32, i32
  }
  func.func @transform_6(%arg0: i32) -> (i32, i32) {
    %c0_i32 = arith.constant 0 : i32
    %c0_i32_0 = arith.constant 0 : i32
    %c0_i32_1 = arith.constant 0 : i32
    return %c0_i32, %c0_i32_0 : i32, i32
  }
  func.func @transform_7(%arg0: i32) -> (i32, i32) {
    %c0_i32 = arith.constant 0 : i32
    %c0_i32_0 = arith.constant 0 : i32
    %c0_i32_1 = arith.constant 0 : i32
    return %c0_i32, %c0_i32_0 : i32, i32
  }
  func.func @transform_8(%arg0: i32) -> (i32, i32) {
    %c0_i32 = arith.constant 0 : i32
    %c0_i32_0 = arith.constant 0 : i32
    %c0_i32_1 = arith.constant 0 : i32
    return %c0_i32, %c0_i32_0 : i32, i32
  }
  func.func @transform_9(%arg0: i32) -> (i32, i32) {
    %c0_i32 = arith.constant 0 : i32
    %c0_i32_0 = arith.constant 0 : i32
    %c0_i32_1 = arith.constant 0 : i32
    return %c0_i32, %c0_i32_0 : i32, i32
  }
  func.func @transform_10(%arg0: i32) -> (i32, i32) {
    %c0_i32 = arith.constant 0 : i32
    %c0_i32_0 = arith.constant 0 : i32
    %c0_i32_1 = arith.constant 0 : i32
    return %c0_i32, %c0_i32_0 : i32, i32
  }
  func.func @transform_11(%arg0: i32) -> (i32, i32) {
    %c0_i32 = arith.constant 0 : i32
    %c0_i32_0 = arith.constant 0 : i32
    %c0_i32_1 = arith.constant 0 : i32
    return %c0_i32, %c0_i32_0 : i32, i32
  }
  func.func @transform_12(%arg0: i32) -> (i32, i32) {
    %c0_i32 = arith.constant 0 : i32
    %c0_i32_0 = arith.constant 0 : i32
    %c0_i32_1 = arith.constant 0 : i32
    return %c0_i32, %c0_i32_0 : i32, i32
  }
  func.func @transform_13(%arg0: i32) -> (i32, i32) {
    %c0_i32 = arith.constant 0 : i32
    %c0_i32_0 = arith.constant 0 : i32
    %c0_i32_1 = arith.constant 0 : i32
    return %c0_i32, %c0_i32_0 : i32, i32
  }
  func.func @transform_14(%arg0: i32) -> (i32, i32) {
    %c0_i32 = arith.constant 0 : i32
    %c0_i32_0 = arith.constant 0 : i32
    %c0_i32_1 = arith.constant 0 : i32
    return %c0_i32, %c0_i32_0 : i32, i32
  }
  func.func @transform_15(%arg0: i32) -> (i32, i32) {
    %c0_i32 = arith.constant 0 : i32
    %c0_i32_0 = arith.constant 0 : i32
    %c0_i32_1 = arith.constant 0 : i32
    return %c0_i32, %c0_i32_0 : i32, i32
  }
  func.func @transform_16(%arg0: i32) -> (i32, i32) {
    %c0_i32 = arith.constant 0 : i32
    %c0_i32_0 = arith.constant 0 : i32
    %c0_i32_1 = arith.constant 0 : i32
    return %c0_i32, %c0_i32_0 : i32, i32
  }
  func.func @transform_17(%arg0: i32) -> (i32, i32, i32) {
    %c0_i32 = arith.constant 0 : i32
    %c0_i32_0 = arith.constant 0 : i32
    %c0_i32_1 = arith.constant 0 : i32
    return %arg0, %c0_i32, %c0_i32_0 : i32, i32, i32
  }
}

module attributes {stable_mosaic.version = 11 : i64} {
  func.func @encoder_kernel(%arg0: i32, %arg1: memref<1x8x32xf32, #tpu.memory_space<vmem>>, %arg2: memref<32x32xbf16, #tpu.memory_space<vmem>>, %arg3: memref<32x32xbf16, #tpu.memory_space<vmem>>, %arg4: memref<32x32xbf16, #tpu.memory_space<vmem>>, %arg5: memref<1x32xf32, #tpu.memory_space<vmem>>, %arg6: memref<1x32xf32, #tpu.memory_space<vmem>>, %arg7: memref<1x32xf32, #tpu.memory_space<vmem>>, %arg8: memref<32x32xbf16, #tpu.memory_space<vmem>>, %arg9: memref<1x32xf32, #tpu.memory_space<vmem>>, %arg10: memref<1x32xf32, #tpu.memory_space<vmem>>, %arg11: memref<1x32xf32, #tpu.memory_space<vmem>>, %arg12: memref<32x64xbf16, #tpu.memory_space<vmem>>, %arg13: memref<1x64xf32, #tpu.memory_space<vmem>>, %arg14: memref<64x32xbf16, #tpu.memory_space<vmem>>, %arg15: memref<1x32xf32, #tpu.memory_space<vmem>>, %arg16: memref<1x32xf32, #tpu.memory_space<vmem>>, %arg17: memref<1x32xf32, #tpu.memory_space<vmem>>, %arg18: memref<1x8x32xf32, #tpu.memory_space<vmem>>) attributes {dimension_semantics = [#tpu.dimension_semantics<parallel>], iteration_bounds = array<i64: 2>, scalar_prefetch = 0 : i64, scratch_operands = 0 : i64, tpu.core_type = #tpu.core_type<tc>, window_params = [{transform_indices = @transform_0, window_bounds = array<i64: 1, 8, 32>}, {pipeline_mode = #tpu.pipeline_mode<synchronous>, transform_indices = @transform_1, window_bounds = array<i64: 32, 32>}, {pipeline_mode = #tpu.pipeline_mode<synchronous>, transform_indices = @transform_2, window_bounds = array<i64: 32, 32>}, {pipeline_mode = #tpu.pipeline_mode<synchronous>, transform_indices = @transform_3, window_bounds = array<i64: 32, 32>}, {pipeline_mode = #tpu.pipeline_mode<synchronous>, transform_indices = @transform_4, window_bounds = array<i64: 1, 32>}, {pipeline_mode = #tpu.pipeline_mode<synchronous>, transform_indices = @transform_5, window_bounds = array<i64: 1, 32>}, {pipeline_mode = #tpu.pipeline_mode<synchronous>, transform_indices = @transform_6, window_bounds = array<i64: 1, 32>}, {pipeline_mode = #tpu.pipeline_mode<synchronous>, transform_indices = @transform_7, window_bounds = array<i64: 32, 32>}, {pipeline_mode = #tpu.pipeline_mode<synchronous>, transform_indices = @transform_8, window_bounds = array<i64: 1, 32>}, {pipeline_mode = #tpu.pipeline_mode<synchronous>, transform_indices = @transform_9, window_bounds = array<i64: 1, 32>}, {pipeline_mode = #tpu.pipeline_mode<synchronous>, transform_indices = @transform_10, window_bounds = array<i64: 1, 32>}, {pipeline_mode = #tpu.pipeline_mode<synchronous>, transform_indices = @transform_11, window_bounds = array<i64: 32, 64>}, {pipeline_mode = #tpu.pipeline_mode<synchronous>, transform_indices = @transform_12, window_bounds = array<i64: 1, 64>}, {pipeline_mode = #tpu.pipeline_mode<synchronous>, transform_indices = @transform_13, window_bounds = array<i64: 64, 32>}, {pipeline_mode = #tpu.pipeline_mode<synchronous>, transform_indices = @transform_14, window_bounds = array<i64: 1, 32>}, {pipeline_mode = #tpu.pipeline_mode<synchronous>, transform_indices = @transform_15, window_bounds = array<i64: 1, 32>}, {pipeline_mode = #tpu.pipeline_mode<synchronous>, transform_indices = @transform_16, window_bounds = array<i64: 1, 32>}, {transform_indices = @transform_17, window_bounds = array<i64: 1, 8, 32>}]} {
    %c0 = arith.constant 0 : index
    %c0_0 = arith.constant 0 : index
    %c0_1 = arith.constant 0 : index
    %0 = vector.load %arg1[%c0, %c0_0, %c0_1] : memref<1x8x32xf32, #tpu.memory_space<vmem>>, vector<1x8x32xf32>
    %1 = vector.shape_cast %0 : vector<1x8x32xf32> to vector<8x32xf32>
    %2 = arith.truncf %1 : vector<8x32xf32> to vector<8x32xbf16>
    %c0_2 = arith.constant 0 : index
    %c0_3 = arith.constant 0 : index
    %3 = vector.load %arg2[%c0_2, %c0_3] : memref<32x32xbf16, #tpu.memory_space<vmem>>, vector<32x32xbf16>
    %cst = arith.constant dense<0.000000e+00> : vector<8x32xf32>
    %4 = tpu.matmul %2, %3, %cst {dimension_numbers = #tpu.dot_dimension_numbers<[1], [0], [0], [1], [0, 0, 1, 1], [], []>} : vector<8x32xbf16>, vector<32x32xbf16>, vector<8x32xf32> -> vector<8x32xf32>
    %c0_4 = arith.constant 0 : index
    %c0_5 = arith.constant 0 : index
    %5 = vector.load %arg5[%c0_4, %c0_5] : memref<1x32xf32, #tpu.memory_space<vmem>>, vector<1x32xf32>
    %6 = vector.broadcast %5 : vector<1x32xf32> to vector<8x32xf32>
    %7 = arith.addf %4, %6 : vector<8x32xf32>
    %8 = arith.truncf %7 : vector<8x32xf32> to vector<8x32xbf16>
    %c0_6 = arith.constant 0 : index
    %c0_7 = arith.constant 0 : index
    %9 = vector.load %arg3[%c0_6, %c0_7] : memref<32x32xbf16, #tpu.memory_space<vmem>>, vector<32x32xbf16>
    %cst_8 = arith.constant dense<0.000000e+00> : vector<8x32xf32>
    %10 = tpu.matmul %2, %9, %cst_8 {dimension_numbers = #tpu.dot_dimension_numbers<[1], [0], [0], [1], [0, 0, 1, 1], [], []>} : vector<8x32xbf16>, vector<32x32xbf16>, vector<8x32xf32> -> vector<8x32xf32>
    %c0_9 = arith.constant 0 : index
    %c0_10 = arith.constant 0 : index
    %11 = vector.load %arg6[%c0_9, %c0_10] : memref<1x32xf32, #tpu.memory_space<vmem>>, vector<1x32xf32>
    %12 = vector.broadcast %11 : vector<1x32xf32> to vector<8x32xf32>
    %13 = arith.addf %10, %12 : vector<8x32xf32>
    %14 = arith.truncf %13 : vector<8x32xf32> to vector<8x32xbf16>
    %c0_11 = arith.constant 0 : index
    %c0_12 = arith.constant 0 : index
    %15 = vector.load %arg4[%c0_11, %c0_12] : memref<32x32xbf16, #tpu.memory_space<vmem>>, vector<32x32xbf16>
    %cst_13 = arith.constant dense<0.000000e+00> : vector<8x32xf32>
    %16 = tpu.matmul %2, %15, %cst_13 {dimension_numbers = #tpu.dot_dimension_numbers<[1], [0], [0], [1], [0, 0, 1, 1], [], []>} : vector<8x32xbf16>, vector<32x32xbf16>, vector<8x32xf32> -> vector<8x32xf32>
    %c0_14 = arith.constant 0 : index
    %c0_15 = arith.constant 0 : index
    %17 = vector.load %arg7[%c0_14, %c0_15] : memref<1x32xf32, #tpu.memory_space<vmem>>, vector<1x32xf32>
    %18 = vector.broadcast %17 : vector<1x32xf32> to vector<8x32xf32>
    %19 = arith.addf %16, %18 : vector<8x32xf32>
    %20 = arith.truncf %19 : vector<8x32xf32> to vector<8x32xbf16>
    %21 = vector.shape_cast %8 : vector<8x32xbf16> to vector<1x8x32xbf16>
    %22 = vector.extract_strided_slice %21 {offsets = [0, 0, 0], sizes = [1, 8, 8], strides = [1, 1, 1]} : vector<1x8x32xbf16> to vector<1x8x8xbf16>
    %23 = vector.extract_strided_slice %21 {offsets = [0, 0, 8], sizes = [1, 8, 8], strides = [1, 1, 1]} : vector<1x8x32xbf16> to vector<1x8x8xbf16>
    %24 = vector.extract_strided_slice %21 {offsets = [0, 0, 16], sizes = [1, 8, 8], strides = [1, 1, 1]} : vector<1x8x32xbf16> to vector<1x8x8xbf16>
    %25 = vector.extract_strided_slice %21 {offsets = [0, 0, 24], sizes = [1, 8, 8], strides = [1, 1, 1]} : vector<1x8x32xbf16> to vector<1x8x8xbf16>
    %26 = tpu.concatenate %22, %23, %24, %25 in 0 : vector<1x8x8xbf16>, vector<1x8x8xbf16>, vector<1x8x8xbf16>, vector<1x8x8xbf16> -> vector<4x8x8xbf16>
    %27 = vector.shape_cast %14 : vector<8x32xbf16> to vector<1x8x32xbf16>
    %28 = vector.extract_strided_slice %27 {offsets = [0, 0, 0], sizes = [1, 8, 8], strides = [1, 1, 1]} : vector<1x8x32xbf16> to vector<1x8x8xbf16>
    %29 = vector.extract_strided_slice %27 {offsets = [0, 0, 8], sizes = [1, 8, 8], strides = [1, 1, 1]} : vector<1x8x32xbf16> to vector<1x8x8xbf16>
    %30 = vector.extract_strided_slice %27 {offsets = [0, 0, 16], sizes = [1, 8, 8], strides = [1, 1, 1]} : vector<1x8x32xbf16> to vector<1x8x8xbf16>
    %31 = vector.extract_strided_slice %27 {offsets = [0, 0, 24], sizes = [1, 8, 8], strides = [1, 1, 1]} : vector<1x8x32xbf16> to vector<1x8x8xbf16>
    %32 = tpu.concatenate %28, %29, %30, %31 in 0 : vector<1x8x8xbf16>, vector<1x8x8xbf16>, vector<1x8x8xbf16>, vector<1x8x8xbf16> -> vector<4x8x8xbf16>
    %33 = vector.shape_cast %20 : vector<8x32xbf16> to vector<1x8x32xbf16>
    %34 = vector.extract_strided_slice %33 {offsets = [0, 0, 0], sizes = [1, 8, 8], strides = [1, 1, 1]} : vector<1x8x32xbf16> to vector<1x8x8xbf16>
    %35 = vector.extract_strided_slice %33 {offsets = [0, 0, 8], sizes = [1, 8, 8], strides = [1, 1, 1]} : vector<1x8x32xbf16> to vector<1x8x8xbf16>
    %36 = vector.extract_strided_slice %33 {offsets = [0, 0, 16], sizes = [1, 8, 8], strides = [1, 1, 1]} : vector<1x8x32xbf16> to vector<1x8x8xbf16>
    %37 = vector.extract_strided_slice %33 {offsets = [0, 0, 24], sizes = [1, 8, 8], strides = [1, 1, 1]} : vector<1x8x32xbf16> to vector<1x8x8xbf16>
    %38 = tpu.concatenate %34, %35, %36, %37 in 0 : vector<1x8x8xbf16>, vector<1x8x8xbf16>, vector<1x8x8xbf16>, vector<1x8x8xbf16> -> vector<4x8x8xbf16>
    "tpu.trace_start"() <{level = 10 : i32, message = "nqd,nkd->nqk"}> : () -> ()
    %cst_16 = arith.constant dense<0.000000e+00> : vector<4x8x8xf32>
    %39 = tpu.matmul %26, %32, %cst_16 {dimension_numbers = #tpu.dot_dimension_numbers<[2], [2], [1], [1], [0, 0, 0, 1, 1, 1], [0], [0]>} : vector<4x8x8xbf16>, vector<4x8x8xbf16>, vector<4x8x8xf32> -> vector<4x8x8xf32>
    "tpu.trace_stop"() : () -> ()
    %cst_17 = arith.constant dense<0xFF800000> : vector<4x8xf32>
    %40 = vector.multi_reduction <maximumf>, %39, %cst_17 [2] : vector<4x8x8xf32> to vector<4x8xf32>
    %41 = vector.shape_cast %40 : vector<4x8xf32> to vector<4x8x1xf32>
    %42 = vector.broadcast %41 : vector<4x8x1xf32> to vector<4x8x8xf32>
    %43 = arith.subf %39, %42 : vector<4x8x8xf32>
    %44 = math.exp %43 : vector<4x8x8xf32>
    %cst_18 = arith.constant dense<0.000000e+00> : vector<4x8xf32>
    %45 = vector.multi_reduction <add>, %44, %cst_18 [2] : vector<4x8x8xf32> to vector<4x8xf32>
    %46 = vector.shape_cast %45 : vector<4x8xf32> to vector<4x8x1xf32>
    %47 = tpu.reciprocal %46 {approx = true} : vector<4x8x1xf32> -> vector<4x8x1xf32>
    %48 = arith.truncf %44 : vector<4x8x8xf32> to vector<4x8x8xbf16>
    "tpu.trace_start"() <{level = 10 : i32, message = "nqk,nkd->nqd"}> : () -> ()
    %cst_19 = arith.constant dense<0.000000e+00> : vector<4x8x8xf32>
    %49 = tpu.matmul %48, %38, %cst_19 {dimension_numbers = #tpu.dot_dimension_numbers<[2], [1], [1], [2], [0, 0, 0, 1, 1, 2], [0], [0]>} : vector<4x8x8xbf16>, vector<4x8x8xbf16>, vector<4x8x8xf32> -> vector<4x8x8xf32>
    "tpu.trace_stop"() : () -> ()
    %50 = vector.broadcast %47 : vector<4x8x1xf32> to vector<4x8x8xf32>
    %51 = arith.mulf %49, %50 : vector<4x8x8xf32>
    %52 = vector.extract_strided_slice %51 {offsets = [0, 0, 0], sizes = [1, 8, 8], strides = [1, 1, 1]} : vector<4x8x8xf32> to vector<1x8x8xf32>
    %53 = vector.extract_strided_slice %51 {offsets = [1, 0, 0], sizes = [1, 8, 8], strides = [1, 1, 1]} : vector<4x8x8xf32> to vector<1x8x8xf32>
    %54 = vector.extract_strided_slice %51 {offsets = [2, 0, 0], sizes = [1, 8, 8], strides = [1, 1, 1]} : vector<4x8x8xf32> to vector<1x8x8xf32>
    %55 = vector.extract_strided_slice %51 {offsets = [3, 0, 0], sizes = [1, 8, 8], strides = [1, 1, 1]} : vector<4x8x8xf32> to vector<1x8x8xf32>
    %56 = tpu.concatenate %52, %53, %54, %55 in 2 : vector<1x8x8xf32>, vector<1x8x8xf32>, vector<1x8x8xf32>, vector<1x8x8xf32> -> vector<1x8x32xf32>
    %57 = vector.shape_cast %56 : vector<1x8x32xf32> to vector<8x32xf32>
    %58 = arith.truncf %57 : vector<8x32xf32> to vector<8x32xbf16>
    %c0_20 = arith.constant 0 : index
    %c0_21 = arith.constant 0 : index
    %59 = vector.load %arg8[%c0_20, %c0_21] : memref<32x32xbf16, #tpu.memory_space<vmem>>, vector<32x32xbf16>
    %cst_22 = arith.constant dense<0.000000e+00> : vector<8x32xf32>
    %60 = tpu.matmul %58, %59, %cst_22 {dimension_numbers = #tpu.dot_dimension_numbers<[1], [0], [0], [1], [0, 0, 1, 1], [], []>} : vector<8x32xbf16>, vector<32x32xbf16>, vector<8x32xf32> -> vector<8x32xf32>
    %c0_23 = arith.constant 0 : index
    %c0_24 = arith.constant 0 : index
    %61 = vector.load %arg9[%c0_23, %c0_24] : memref<1x32xf32, #tpu.memory_space<vmem>>, vector<1x32xf32>
    %62 = vector.broadcast %61 : vector<1x32xf32> to vector<8x32xf32>
    %63 = arith.addf %60, %62 : vector<8x32xf32>
    %64 = arith.addf %1, %63 : vector<8x32xf32>
    %c0_25 = arith.constant 0 : index
    %c0_26 = arith.constant 0 : index
    %65 = vector.load %arg10[%c0_25, %c0_26] : memref<1x32xf32, #tpu.memory_space<vmem>>, vector<1x32xf32>
    %c0_27 = arith.constant 0 : index
    %c0_28 = arith.constant 0 : index
    %66 = vector.load %arg11[%c0_27, %c0_28] : memref<1x32xf32, #tpu.memory_space<vmem>>, vector<1x32xf32>
    %cst_29 = arith.constant dense<0.000000e+00> : vector<8xf32>
    %67 = vector.multi_reduction <add>, %64, %cst_29 [1] : vector<8x32xf32> to vector<8xf32>
    %68 = vector.shape_cast %67 : vector<8xf32> to vector<8x1xf32>
    %cst_30 = arith.constant 3.200000e+01 : f32
    %69 = vector.broadcast %cst_30 : f32 to vector<8x1xf32>
    %70 = arith.divf %68, %69 : vector<8x1xf32>
    %71 = vector.broadcast %70 : vector<8x1xf32> to vector<8x32xf32>
    %72 = arith.subf %64, %71 : vector<8x32xf32>
    %73 = arith.mulf %72, %72 : vector<8x32xf32>
    %cst_31 = arith.constant dense<0.000000e+00> : vector<8xf32>
    %74 = vector.multi_reduction <add>, %73, %cst_31 [1] : vector<8x32xf32> to vector<8xf32>
    %75 = vector.shape_cast %74 : vector<8xf32> to vector<8x1xf32>
    %cst_32 = arith.constant 3.200000e+01 : f32
    %76 = vector.broadcast %cst_32 : f32 to vector<8x1xf32>
    %77 = arith.divf %75, %76 : vector<8x1xf32>
    %78 = vector.broadcast %70 : vector<8x1xf32> to vector<8x32xf32>
    %79 = arith.subf %64, %78 : vector<8x32xf32>
    %cst_33 = arith.constant 9.99999974E-6 : f32
    %80 = vector.broadcast %cst_33 : f32 to vector<8x1xf32>
    %81 = arith.addf %77, %80 : vector<8x1xf32>
    %82 = math.rsqrt %81 : vector<8x1xf32>
    %83 = vector.broadcast %82 : vector<8x1xf32> to vector<8x32xf32>
    %84 = arith.mulf %79, %83 : vector<8x32xf32>
    %85 = vector.broadcast %65 : vector<1x32xf32> to vector<8x32xf32>
    %86 = arith.mulf %84, %85 : vector<8x32xf32>
    %87 = vector.broadcast %66 : vector<1x32xf32> to vector<8x32xf32>
    %88 = arith.addf %86, %87 : vector<8x32xf32>
    %89 = arith.truncf %88 : vector<8x32xf32> to vector<8x32xbf16>
    %c0_34 = arith.constant 0 : index
    %c0_35 = arith.constant 0 : index
    %90 = vector.load %arg12[%c0_34, %c0_35] : memref<32x64xbf16, #tpu.memory_space<vmem>>, vector<32x64xbf16>
    %cst_36 = arith.constant dense<0.000000e+00> : vector<8x64xf32>
    %91 = tpu.matmul %89, %90, %cst_36 {dimension_numbers = #tpu.dot_dimension_numbers<[1], [0], [0], [1], [0, 0, 1, 1], [], []>} : vector<8x32xbf16>, vector<32x64xbf16>, vector<8x64xf32> -> vector<8x64xf32>
    %c0_37 = arith.constant 0 : index
    %c0_38 = arith.constant 0 : index
    %92 = vector.load %arg13[%c0_37, %c0_38] : memref<1x64xf32, #tpu.memory_space<vmem>>, vector<1x64xf32>
    %93 = vector.broadcast %92 : vector<1x64xf32> to vector<8x64xf32>
    %94 = arith.addf %91, %93 : vector<8x64xf32>
    %cst_39 = arith.constant 0.000000e+00 : f32
    %95 = vector.broadcast %cst_39 : f32 to vector<8x64xf32>
    %96 = arith.maximumf %94, %95 : vector<8x64xf32>
    %97 = arith.truncf %96 : vector<8x64xf32> to vector<8x64xbf16>
    %c0_40 = arith.constant 0 : index
    %c0_41 = arith.constant 0 : index
    %98 = vector.load %arg14[%c0_40, %c0_41] : memref<64x32xbf16, #tpu.memory_space<vmem>>, vector<64x32xbf16>
    %cst_42 = arith.constant dense<0.000000e+00> : vector<8x32xf32>
    %99 = tpu.matmul %97, %98, %cst_42 {dimension_numbers = #tpu.dot_dimension_numbers<[1], [0], [0], [1], [0, 0, 1, 1], [], []>} : vector<8x64xbf16>, vector<64x32xbf16>, vector<8x32xf32> -> vector<8x32xf32>
    %c0_43 = arith.constant 0 : index
    %c0_44 = arith.constant 0 : index
    %100 = vector.load %arg15[%c0_43, %c0_44] : memref<1x32xf32, #tpu.memory_space<vmem>>, vector<1x32xf32>
    %101 = vector.broadcast %100 : vector<1x32xf32> to vector<8x32xf32>
    %102 = arith.addf %99, %101 : vector<8x32xf32>
    %103 = arith.addf %88, %102 : vector<8x32xf32>
    %c0_45 = arith.constant 0 : index
    %c0_46 = arith.constant 0 : index
    %104 = vector.load %arg16[%c0_45, %c0_46] : memref<1x32xf32, #tpu.memory_space<vmem>>, vector<1x32xf32>
    %c0_47 = arith.constant 0 : index
    %c0_48 = arith.constant 0 : index
    %105 = vector.load %arg17[%c0_47, %c0_48] : memref<1x32xf32, #tpu.memory_space<vmem>>, vector<1x32xf32>
    %cst_49 = arith.constant dense<0.000000e+00> : vector<8xf32>
    %106 = vector.multi_reduction <add>, %103, %cst_49 [1] : vector<8x32xf32> to vector<8xf32>
    %107 = vector.shape_cast %106 : vector<8xf32> to vector<8x1xf32>
    %cst_50 = arith.constant 3.200000e+01 : f32
    %108 = vector.broadcast %cst_50 : f32 to vector<8x1xf32>
    %109 = arith.divf %107, %108 : vector<8x1xf32>
    %110 = vector.broadcast %109 : vector<8x1xf32> to vector<8x32xf32>
    %111 = arith.subf %103, %110 : vector<8x32xf32>
    %112 = arith.mulf %111, %111 : vector<8x32xf32>
    %cst_51 = arith.constant dense<0.000000e+00> : vector<8xf32>
    %113 = vector.multi_reduction <add>, %112, %cst_51 [1] : vector<8x32xf32> to vector<8xf32>
    %114 = vector.shape_cast %113 : vector<8xf32> to vector<8x1xf32>
    %cst_52 = arith.constant 3.200000e+01 : f32
    %115 = vector.broadcast %cst_52 : f32 to vector<8x1xf32>
    %116 = arith.divf %114, %115 : vector<8x1xf32>
    %117 = vector.broadcast %109 : vector<8x1xf32> to vector<8x32xf32>
    %118 = arith.subf %103, %117 : vector<8x32xf32>
    %cst_53 = arith.constant 9.99999974E-6 : f32
    %119 = vector.broadcast %cst_53 : f32 to vector<8x1xf32>
    %120 = arith.addf %116, %119 : vector<8x1xf32>
    %121 = math.rsqrt %120 : vector<8x1xf32>
    %122 = vector.broadcast %121 : vector<8x1xf32> to vector<8x32xf32>
    %123 = arith.mulf %118, %122 : vector<8x32xf32>
    %124 = vector.broadcast %104 : vector<1x32xf32> to vector<8x32xf32>
    %125 = arith.mulf %123, %124 : vector<8x32xf32>
    %126 = vector.broadcast %105 : vector<1x32xf32> to vector<8x32xf32>
    %127 = arith.addf %125, %126 : vector<8x32xf32>
    %128 = vector.shape_cast %127 : vector<8x32xf32> to vector<1x8x32xf32>
    %c0_54 = arith.constant 0 : index
    %c0_55 = arith.constant 0 : index
    %c0_56 = arith.constant 0 : index
    %129 = vector.load %arg18[%c0_54, %c0_55, %c0_56] : memref<1x8x32xf32, #tpu.memory_space<vmem>>, vector<1x8x32xf32>
    tpu.vector_store %arg18[%c0_54, %c0_55, %c0_56], %128 {strides = array<i32>} : memref<1x8x32xf32, #tpu.memory_space<vmem>>, vector<1x8x32xf32>,
    return
  }
  func.func @transform_0(%arg0: i32) -> (i32, i32, i32) {
    %c0_i32 = arith.constant 0 : i32
    %c0_i32_0 = arith.constant 0 : i32
    %c0_i32_1 = arith.constant 0 : i32
    return %arg0, %c0_i32, %c0_i32_0 : i32, i32, i32
  }
  func.func @transform_1(%arg0: i32) -> (i32, i32) {
    %c0_i32 = arith.constant 0 : i32
    %c0_i32_0 = arith.constant 0 : i32
    %c0_i32_1 = arith.constant 0 : i32
    return %c0_i32, %c0_i32_0 : i32, i32
  }
  func.func @transform_2(%arg0: i32) -> (i32, i32) {
    %c0_i32 = arith.constant 0 : i32
    %c0_i32_0 = arith.constant 0 : i32
    %c0_i32_1 = arith.constant 0 : i32
    return %c0_i32, %c0_i32_0 : i32, i32
  }
  func.func @transform_3(%arg0: i32) -> (i32, i32) {
    %c0_i32 = arith.constant 0 : i32
    %c0_i32_0 = arith.constant 0 : i32
    %c0_i32_1 = arith.constant 0 : i32
    return %c0_i32, %c0_i32_0 : i32, i32
  }
  func.func @transform_4(%arg0: i32) -> (i32, i32) {
    %c0_i32 = arith.constant 0 : i32
    %c0_i32_0 = arith.constant 0 : i32
    %c0_i32_1 = arith.constant 0 : i32
    return %c0_i32, %c0_i32_0 : i32, i32
  }
  func.func @transform_5(%arg0: i32) -> (i32, i32) {
    %c0_i32 = arith.constant 0 : i32
    %c0_i32_0 = arith.constant 0 : i32
    %c0_i32_1 = arith.constant 0 : i32
    return %c0_i32, %c0_i32_0 : i32, i32
  }
  func.func @transform_6(%arg0: i32) -> (i32, i32) {
    %c0_i32 = arith.constant 0 : i32
    %c0_i32_0 = arith.constant 0 : i32
    %c0_i32_1 = arith.constant 0 : i32
    return %c0_i32, %c0_i32_0 : i32, i32
  }
  func.func @transform_7(%arg0: i32) -> (i32, i32) {
    %c0_i32 = arith.constant 0 : i32
    %c0_i32_0 = arith.constant 0 : i32
    %c0_i32_1 = arith.constant 0 : i32
    return %c0_i32, %c0_i32_0 : i32, i32
  }
  func.func @transform_8(%arg0: i32) -> (i32, i32) {
    %c0_i32 = arith.constant 0 : i32
    %c0_i32_0 = arith.constant 0 : i32
    %c0_i32_1 = arith.constant 0 : i32
    return %c0_i32, %c0_i32_0 : i32, i32
  }
  func.func @transform_9(%arg0: i32) -> (i32, i32) {
    %c0_i32 = arith.constant 0 : i32
    %c0_i32_0 = arith.constant 0 : i32
    %c0_i32_1 = arith.constant 0 : i32
    return %c0_i32, %c0_i32_0 : i32, i32
  }
  func.func @transform_10(%arg0: i32) -> (i32, i32) {
    %c0_i32 = arith.constant 0 : i32
    %c0_i32_0 = arith.constant 0 : i32
    %c0_i32_1 = arith.constant 0 : i32
    return %c0_i32, %c0_i32_0 : i32, i32
  }
  func.func @transform_11(%arg0: i32) -> (i32, i32) {
    %c0_i32 = arith.constant 0 : i32
    %c0_i32_0 = arith.constant 0 : i32
    %c0_i32_1 = arith.constant 0 : i32
    return %c0_i32, %c0_i32_0 : i32, i32
  }
  func.func @transform_12(%arg0: i32) -> (i32, i32) {
    %c0_i32 = arith.constant 0 : i32
    %c0_i32_0 = arith.constant 0 : i32
    %c0_i32_1 = arith.constant 0 : i32
    return %c0_i32, %c0_i32_0 : i32, i32
  }
  func.func @transform_13(%arg0: i32) -> (i32, i32) {
    %c0_i32 = arith.constant 0 : i32
    %c0_i32_0 = arith.constant 0 : i32
    %c0_i32_1 = arith.constant 0 : i32
    return %c0_i32, %c0_i32_0 : i32, i32
  }
  func.func @transform_14(%arg0: i32) -> (i32, i32) {
    %c0_i32 = arith.constant 0 : i32
    %c0_i32_0 = arith.constant 0 : i32
    %c0_i32_1 = arith.constant 0 : i32
    return %c0_i32, %c0_i32_0 : i32, i32
  }
  func.func @transform_15(%arg0: i32) -> (i32, i32) {
    %c0_i32 = arith.constant 0 : i32
    %c0_i32_0 = arith.constant 0 : i32
    %c0_i32_1 = arith.constant 0 : i32
    return %c0_i32, %c0_i32_0 : i32, i32
  }
  func.func @transform_16(%arg0: i32) -> (i32, i32) {
    %c0_i32 = arith.constant 0 : i32
    %c0_i32_0 = arith.constant 0 : i32
    %c0_i32_1 = arith.constant 0 : i32
    return %c0_i32, %c0_i32_0 : i32, i32
  }
  func.func @transform_17(%arg0: i32) -> (i32, i32, i32) {
    %c0_i32 = arith.constant 0 : i32
    %c0_i32_0 = arith.constant 0 : i32
    %c0_i32_1 = arith.constant 0 : i32
    return %arg0, %c0_i32, %c0_i32_0 : i32, i32, i32
  }
}

</mosaic_0001>

<llo_original>
// kernel: tpu_custom_call.1
$region0: #{tpu_custom_call.1}
  #allocation0 [shape = 'u32[]', space=smem, size = 0x4, offset = 0x4, fixed_abs, tag = 'smem constant byte address 0x4 - core index']
  #allocation1 [shape = 'u32[144,128]{1,0:T(1,128)}', space=vmem, size = 0x12000, scoped, tag = 'internal scratch']
  %s0 = inlined_call_operand.vmem [shape: f32[2,8,32], index: 0, kind: input, shape index: {}]
  %s1 = inlined_call_operand.vmem [shape: bf16[32,32], index: 1, kind: input, shape index: {}]
  %s2 = inlined_call_operand.vmem [shape: bf16[32,32], index: 2, kind: input, shape index: {}]
  %s3 = inlined_call_operand.hbm [shape: bf16[32,32], index: 3, kind: input, shape index: {}]
  %s4 = inlined_call_operand.vmem [shape: f32[1,32], index: 4, kind: input, shape index: {}]
  %s5 = inlined_call_operand.vmem [shape: f32[1,32], index: 5, kind: input, shape index: {}]
  %s6 = inlined_call_operand.hbm [shape: f32[1,32], index: 6, kind: input, shape index: {}]
  %s7 = inlined_call_operand.hbm [shape: bf16[32,32], index: 7, kind: input, shape index: {}]
  %s8 = inlined_call_operand.hbm [shape: f32[1,32], index: 8, kind: input, shape index: {}]
  %s9 = inlined_call_operand.hbm [shape: f32[1,32], index: 9, kind: input, shape index: {}]
  %s10 = inlined_call_operand.vmem [shape: f32[1,32], index: 10, kind: input, shape index: {}]
  %s11 = inlined_call_operand.vmem [shape: bf16[32,64], index: 11, kind: input, shape index: {}]
  %s12 = inlined_call_operand.vmem [shape: f32[1,64], index: 12, kind: input, shape index: {}]
  %s13 = inlined_call_operand.vmem [shape: bf16[64,32], index: 13, kind: input, shape index: {}]
  %s14 = inlined_call_operand.vmem [shape: f32[1,32], index: 14, kind: input, shape index: {}]
  %s15 = inlined_call_operand.vmem [shape: f32[1,32], index: 15, kind: input, shape index: {}]
  %s16 = inlined_call_operand.vmem [shape: f32[1,32], index: 16, kind: input, shape index: {}]
  %s17 = inlined_call_operand.hbm [shape: f32[2,8,32], index: 17, kind: output, shape index: {}]
  %s18 = sld [smem:[#allocation0]]
  $region121: #{tpu_custom_call.1} parent=0
    _
  %s20 = ssub.s32 1, %s18
  %s21 = scalar_select 0, %s20, %s18
  $region1: #{tpu_custom_call.1} parent=0
    #allocation2 [shape = 'u8[8192]{0}', space=vmem, size = 0x2000, scoped, tag = 'input window, operand 3, single buffered']
    #allocation3 [shape = 's32[2]{0}', space=sflag, size = 0x8, scoped, tag = 'scoped memory for tpu_custom_call.1']
    #allocation4 [shape = 's32[2]{0}', space=sflag, size = 0x8, scoped, tag = 'scoped memory for tpu_custom_call.1']
    #allocation5 [shape = 'u8[512]{0}', space=vmem, size = 0x400, scoped, tag = 'input window, operand 6, single buffered']
    #allocation6 [shape = 's32[1]{0}', space=sflag, size = 0x4, scoped, tag = 'scoped memory for tpu_custom_call.1']
    #allocation7 [shape = 'u8[8192]{0}', space=vmem, size = 0x2000, scoped, tag = 'input window, operand 7, single buffered']
    #allocation8 [shape = 'u8[512]{0}', space=vmem, size = 0x400, scoped, tag = 'input window, operand 8, single buffered']
    #allocation9 [shape = 's32[1]{0}', space=sflag, size = 0x4, scoped, tag = 'scoped memory for tpu_custom_call.1']
    #allocation10 [shape = 'u8[512]{0}', space=vmem, size = 0x400, scoped, tag = 'input window, operand 9, single buffered']
    #allocation11 [shape = 'u8[8192]{0}', space=vmem, size = 0x2000, scoped, tag = 'output window, operand 0']
    %22 = vsyncpa [#allocation3], 0
    %23 = vsyncpa [#allocation6], 0
    %24 = vsyncpa [#allocation9], 0
    %25 = vsyncpa [#allocation4], 0
    %s26 = scalar_lea.sflag [#allocation4], 1
    %27 = vsyncpa %s26, 0
    loop: start=0, step=1, limit=4
    $region2: #{tpu_custom_call.1} parent=1 // loop_pre_header
      _
    $region3: #{tpu_custom_call.1} parent=1 // loop_header
      %s29 = sphi 0, %s33
      %p30 = scmp.ge.s32.totalorder %s29, 4
      %s39 = sphi 0, %s41
      %s42 = sphi 0, %s39
      %s43 = sphi 0, %s42
      %s59 = sphi 0, %s43
      %s63 = sphi 0, %s63
      %s65 = sphi 0, %s63
      %s66 = sphi 0, %s65
      %s80 = sphi 0, %s66
      %s84 = sphi 0, %s84
      %s86 = sphi 0, %s84
      %s87 = sphi 0, %s86
      %s101 = sphi 0, %s87
      %s105 = sphi 0, %s105
      %s107 = sphi 0, %s105
      %s108 = sphi 0, %s107
      %s122 = sphi 0, %s108
      %s126 = sphi 0, %s126
      %s128 = sphi 0, %s126
      %s129 = sphi 0, %s128
      %s143 = sphi 0, %s129
      %s147 = sphi 0, %s147
      %s149 = sphi 0, %s147
      %s150 = sphi 0, %s149
      %s164 = sphi 0, %s150
      %s168 = sphi 0, %s168
      %s170 = sphi 0, %s168
      %s171 = sphi 0, %s170
      %s185 = sphi 0, %s171
      %s189 = sphi 0, %s189
      %s191 = sphi 0, %s189
      %s192 = sphi 0, %s191
      %s206 = sphi 0, %s192
      %s210 = sphi 0, %s210
      %s212 = sphi 0, %s210
      %s213 = sphi 0, %s212
      %s227 = sphi 0, %s213
      %s231 = sphi 0, %s231
      %s233 = sphi 0, %s231
      %s234 = sphi 0, %s233
      %s248 = sphi 0, %s234
      %s252 = sphi 0, %s252
      %s254 = sphi 0, %s252
      %s255 = sphi 0, %s254
      %s269 = sphi 0, %s255
      %s273 = sphi 0, %s273
      %s275 = sphi 0, %s273
      %s276 = sphi 0, %s275
      %s290 = sphi 0, %s276
      %s294 = sphi 0, %s294
      %s296 = sphi 0, %s294
      %s297 = sphi 0, %s296
      %s311 = sphi 0, %s297
      %s315 = sphi 0, %s315
      %s317 = sphi 0, %s315
      %s318 = sphi 0, %s317
      %s332 = sphi 0, %s318
      %s336 = sphi 0, %s336
      %s338 = sphi 0, %s336
      %s339 = sphi 0, %s338
      %s353 = sphi 0, %s339
      %s357 = sphi 0, %s357
      %s359 = sphi 0, %s357
      %s360 = sphi 0, %s359
      %s374 = sphi 0, %s360
      %s378 = sphi 0, %s378
      %s380 = sphi 0, %s378
      %s381 = sphi 0, %s380
      %s395 = sphi 0, %s381
      %s401 = sphi 0, %s403
      %s404 = sphi 0, %s401
      %s405 = sphi 0, %s404
      %s421 = sphi 0, %s405
    $region4: #{tpu_custom_call.1} parent=1 // loop_header_branch
      %32 = sbr.rel (%p30) target = $region8
    $region5: #{tpu_custom_call.1} parent=1 // loop_body
      %s34 = ssub.s32 %s29, 1
      %s35 = ssub.s32 %s29, 2
      %s36 = sadd.s32 %s29, 1
      %s37 = ssub.s32 %s29, %s36
      %p38 = scmp.eq.s32.totalorder %s37, 0
      %s40 = sadd.s32 %s39, 1
      %s41 = scalar_select %p38, %s39, %s40
      %p44 = pneg %p38
      %p45 = scmp.eq.s32.totalorder %s29, 1
      %p46 = por %p44, %p45
      %p47 = scmp.ne.s32.totalorder %s39, %s42
      %p48 = scmp.eq.s32.totalorder %s29, 0
      %p49 = por %p47, %p48
      %p50 = scmp.ne.s32.totalorder %s39, %s42
      %p51 = scmp.eq.s32.totalorder %s34, 1
      %p52 = por %p50, %p51
      %p53 = scmp.ne.s32.totalorder %s42, %s43
      %p54 = scmp.eq.s32.totalorder %s34, 0
      %p55 = por %p53, %p54
      %p56 = scmp.ne.s32.totalorder %s42, %s43
      %p57 = scmp.eq.s32.totalorder %s35, 1
      %p58 = por %p56, %p57
      %p60 = scmp.ne.s32.totalorder %s43, %s59
      %p61 = scmp.eq.s32.totalorder %s35, 0
      %p62 = por %p60, %p61
      %s64 = sadd.s32 %s63, 1
      %p67 = scmp.eq.s32.totalorder %s29, 1
      %p68 = scmp.ne.s32.totalorder %s63, %s65
      %p69 = scmp.eq.s32.totalorder %s29, 0
      %p70 = por %p68, %p69
      %p71 = scmp.ne.s32.totalorder %s63, %s65
      %p72 = scmp.eq.s32.totalorder %s34, 1
      %p73 = por %p71, %p72
      %p74 = scmp.ne.s32.totalorder %s65, %s66
      %p75 = scmp.eq.s32.totalorder %s34, 0
      %p76 = por %p74, %p75
      %p77 = scmp.ne.s32.totalorder %s65, %s66
      %p78 = scmp.eq.s32.totalorder %s35, 1
      %p79 = por %p77, %p78
      %p81 = scmp.ne.s32.totalorder %s66, %s80
      %p82 = scmp.eq.s32.totalorder %s35, 0
      %p83 = por %p81, %p82
      %s85 = sadd.s32 %s84, 1
      %p88 = scmp.eq.s32.totalorder %s29, 1
      %p89 = scmp.ne.s32.totalorder %s84, %s86
      %p90 = scmp.eq.s32.totalorder %s29, 0
      %p91 = por %p89, %p90
      %p92 = scmp.ne.s32.totalorder %s84, %s86
      %p93 = scmp.eq.s32.totalorder %s34, 1
      %p94 = por %p92, %p93
      %p95 = scmp.ne.s32.totalorder %s86, %s87
      %p96 = scmp.eq.s32.totalorder %s34, 0
      %p97 = por %p95, %p96
      %p98 = scmp.ne.s32.totalorder %s86, %s87
      %p99 = scmp.eq.s32.totalorder %s35, 1
      %p100 = por %p98, %p99
      %p102 = scmp.ne.s32.totalorder %s87, %s101
      %p103 = scmp.eq.s32.totalorder %s35, 0
      %p104 = por %p102, %p103
      %s106 = sadd.s32 %s105, 1
      %p109 = scmp.eq.s32.totalorder %s29, 1
      %p110 = scmp.ne.s32.totalorder %s105, %s107
      %p111 = scmp.eq.s32.totalorder %s29, 0
      %p112 = por %p110, %p111
      %p113 = scmp.ne.s32.totalorder %s105, %s107
      %p114 = scmp.eq.s32.totalorder %s34, 1
      %p115 = por %p113, %p114
      %p116 = scmp.ne.s32.totalorder %s107, %s108
      %p117 = scmp.eq.s32.totalorder %s34, 0
      %p118 = por %p116, %p117
      %p119 = scmp.ne.s32.totalorder %s107, %s108
      %p120 = scmp.eq.s32.totalorder %s35, 1
      %p121 = por %p119, %p120
      %p123 = scmp.ne.s32.totalorder %s108, %s122
      %p124 = scmp.eq.s32.totalorder %s35, 0
      %p125 = por %p123, %p124
      %s127 = sadd.s32 %s126, 1
      %p130 = scmp.eq.s32.totalorder %s29, 1
      %p131 = scmp.ne.s32.totalorder %s126, %s128
      %p132 = scmp.eq.s32.totalorder %s29, 0
      %p133 = por %p131, %p132
      %p134 = scmp.ne.s32.totalorder %s126, %s128
      %p135 = scmp.eq.s32.totalorder %s34, 1
      %p136 = por %p134, %p135
      %p137 = scmp.ne.s32.totalorder %s128, %s129
      %p138 = scmp.eq.s32.totalorder %s34, 0
      %p139 = por %p137, %p138
      %p140 = scmp.ne.s32.totalorder %s128, %s129
      %p141 = scmp.eq.s32.totalorder %s35, 1
      %p142 = por %p140, %p141
      %p144 = scmp.ne.s32.totalorder %s129, %s143
      %p145 = scmp.eq.s32.totalorder %s35, 0
      %p146 = por %p144, %p145
      %s148 = sadd.s32 %s147, 1
      %p151 = scmp.eq.s32.totalorder %s29, 1
      %p152 = scmp.ne.s32.totalorder %s147, %s149
      %p153 = scmp.eq.s32.totalorder %s29, 0
      %p154 = por %p152, %p153
      %p155 = scmp.ne.s32.totalorder %s147, %s149
      %p156 = scmp.eq.s32.totalorder %s34, 1
      %p157 = por %p155, %p156
      %p158 = scmp.ne.s32.totalorder %s149, %s150
      %p159 = scmp.eq.s32.totalorder %s34, 0
      %p160 = por %p158, %p159
      %p161 = scmp.ne.s32.totalorder %s149, %s150
      %p162 = scmp.eq.s32.totalorder %s35, 1
      %p163 = por %p161, %p162
      %p165 = scmp.ne.s32.totalorder %s150, %s164
      %p166 = scmp.eq.s32.totalorder %s35, 0
      %p167 = por %p165, %p166
      %s169 = sadd.s32 %s168, 1
      %p172 = scmp.eq.s32.totalorder %s29, 1
      %p173 = scmp.ne.s32.totalorder %s168, %s170
      %p174 = scmp.eq.s32.totalorder %s29, 0
      %p175 = por %p173, %p174
      %p176 = scmp.ne.s32.totalorder %s168, %s170
      %p177 = scmp.eq.s32.totalorder %s34, 1
      %p178 = por %p176, %p177
      %p179 = scmp.ne.s32.totalorder %s170, %s171
      %p180 = scmp.eq.s32.totalorder %s34, 0
      %p181 = por %p179, %p180
      %p182 = scmp.ne.s32.totalorder %s170, %s171
      %p183 = scmp.eq.s32.totalorder %s35, 1
      %p184 = por %p182, %p183
      %p186 = scmp.ne.s32.totalorder %s171, %s185
      %p187 = scmp.eq.s32.totalorder %s35, 0
      %p188 = por %p186, %p187
      %s190 = sadd.s32 %s189, 1
      %p193 = scmp.eq.s32.totalorder %s29, 1
      %p194 = scmp.ne.s32.totalorder %s189, %s191
      %p195 = scmp.eq.s32.totalorder %s29, 0
      %p196 = por %p194, %p195
      %p197 = scmp.ne.s32.totalorder %s189, %s191
      %p198 = scmp.eq.s32.totalorder %s34, 1
      %p199 = por %p197, %p198
      %p200 = scmp.ne.s32.totalorder %s191, %s192
      %p201 = scmp.eq.s32.totalorder %s34, 0
      %p202 = por %p200, %p201
      %p203 = scmp.ne.s32.totalorder %s191, %s192
      %p204 = scmp.eq.s32.totalorder %s35, 1
      %p205 = por %p203, %p204
      %p207 = scmp.ne.s32.totalorder %s192, %s206
      %p208 = scmp.eq.s32.totalorder %s35, 0
      %p209 = por %p207, %p208
      %s211 = sadd.s32 %s210, 1
      %p214 = scmp.eq.s32.totalorder %s29, 1
      %p215 = scmp.ne.s32.totalorder %s210, %s212
      %p216 = scmp.eq.s32.totalorder %s29, 0
      %p217 = por %p215, %p216
      %p218 = scmp.ne.s32.totalorder %s210, %s212
      %p219 = scmp.eq.s32.totalorder %s34, 1
      %p220 = por %p218, %p219
      %p221 = scmp.ne.s32.totalorder %s212, %s213
      %p222 = scmp.eq.s32.totalorder %s34, 0
      %p223 = por %p221, %p222
      %p224 = scmp.ne.s32.totalorder %s212, %s213
      %p225 = scmp.eq.s32.totalorder %s35, 1
      %p226 = por %p224, %p225
      %p228 = scmp.ne.s32.totalorder %s213, %s227
      %p229 = scmp.eq.s32.totalorder %s35, 0
      %p230 = por %p228, %p229
      %s232 = sadd.s32 %s231, 1
      %p235 = scmp.eq.s32.totalorder %s29, 1
      %p236 = scmp.ne.s32.totalorder %s231, %s233
      %p237 = scmp.eq.s32.totalorder %s29, 0
      %p238 = por %p236, %p237
      %p239 = scmp.ne.s32.totalorder %s231, %s233
      %p240 = scmp.eq.s32.totalorder %s34, 1
      %p241 = por %p239, %p240
      %p242 = scmp.ne.s32.totalorder %s233, %s234
      %p243 = scmp.eq.s32.totalorder %s34, 0
      %p244 = por %p242, %p243
      %p245 = scmp.ne.s32.totalorder %s233, %s234
      %p246 = scmp.eq.s32.totalorder %s35, 1
      %p247 = por %p245, %p246
      %p249 = scmp.ne.s32.totalorder %s234, %s248
      %p250 = scmp.eq.s32.totalorder %s35, 0
      %p251 = por %p249, %p250
      %s253 = sadd.s32 %s252, 1
      %p256 = scmp.eq.s32.totalorder %s29, 1
      %p257 = scmp.ne.s32.totalorder %s252, %s254
      %p258 = scmp.eq.s32.totalorder %s29, 0
      %p259 = por %p257, %p258
      %p260 = scmp.ne.s32.totalorder %s252, %s254
      %p261 = scmp.eq.s32.totalorder %s34, 1
      %p262 = por %p260, %p261
      %p263 = scmp.ne.s32.totalorder %s254, %s255
      %p264 = scmp.eq.s32.totalorder %s34, 0
      %p265 = por %p263, %p264
      %p266 = scmp.ne.s32.totalorder %s254, %s255
      %p267 = scmp.eq.s32.totalorder %s35, 1
      %p268 = por %p266, %p267
      %p270 = scmp.ne.s32.totalorder %s255, %s269
      %p271 = scmp.eq.s32.totalorder %s35, 0
      %p272 = por %p270, %p271
      %s274 = sadd.s32 %s273, 1
      %p277 = scmp.eq.s32.totalorder %s29, 1
      %p278 = scmp.ne.s32.totalorder %s273, %s275
      %p279 = scmp.eq.s32.totalorder %s29, 0
      %p280 = por %p278, %p279
      %p281 = scmp.ne.s32.totalorder %s273, %s275
      %p282 = scmp.eq.s32.totalorder %s34, 1
      %p283 = por %p281, %p282
      %p284 = scmp.ne.s32.totalorder %s275, %s276
      %p285 = scmp.eq.s32.totalorder %s34, 0
      %p286 = por %p284, %p285
      %p287 = scmp.ne.s32.totalorder %s275, %s276
      %p288 = scmp.eq.s32.totalorder %s35, 1
      %p289 = por %p287, %p288
      %p291 = scmp.ne.s32.totalorder %s276, %s290
      %p292 = scmp.eq.s32.totalorder %s35, 0
      %p293 = por %p291, %p292
      %s295 = sadd.s32 %s294, 1
      %p298 = scmp.eq.s32.totalorder %s29, 1
      %p299 = scmp.ne.s32.totalorder %s294, %s296
      %p300 = scmp.eq.s32.totalorder %s29, 0
      %p301 = por %p299, %p300
      %p302 = scmp.ne.s32.totalorder %s294, %s296
      %p303 = scmp.eq.s32.totalorder %s34, 1
      %p304 = por %p302, %p303
      %p305 = scmp.ne.s32.totalorder %s296, %s297
      %p306 = scmp.eq.s32.totalorder %s34, 0
      %p307 = por %p305, %p306
      %p308 = scmp.ne.s32.totalorder %s296, %s297
      %p309 = scmp.eq.s32.totalorder %s35, 1
      %p310 = por %p308, %p309
      %p312 = scmp.ne.s32.totalorder %s297, %s311
      %p313 = scmp.eq.s32.totalorder %s35, 0
      %p314 = por %p312, %p313
      %s316 = sadd.s32 %s315, 1
      %p319 = scmp.eq.s32.totalorder %s29, 1
      %p320 = scmp.ne.s32.totalorder %s315, %s317
      %p321 = scmp.eq.s32.totalorder %s29, 0
      %p322 = por %p320, %p321
      %p323 = scmp.ne.s32.totalorder %s315, %s317
      %p324 = scmp.eq.s32.totalorder %s34, 1
      %p325 = por %p323, %p324
      %p326 = scmp.ne.s32.totalorder %s317, %s318
      %p327 = scmp.eq.s32.totalorder %s34, 0
      %p328 = por %p326, %p327
      %p329 = scmp.ne.s32.totalorder %s317, %s318
      %p330 = scmp.eq.s32.totalorder %s35, 1
      %p331 = por %p329, %p330
      %p333 = scmp.ne.s32.totalorder %s318, %s332
      %p334 = scmp.eq.s32.totalorder %s35, 0
      %p335 = por %p333, %p334
      %s337 = sadd.s32 %s336, 1
      %p340 = scmp.eq.s32.totalorder %s29, 1
      %p341 = scmp.ne.s32.totalorder %s336, %s338
      %p342 = scmp.eq.s32.totalorder %s29, 0
      %p343 = por %p341, %p342
      %p344 = scmp.ne.s32.totalorder %s336, %s338
      %p345 = scmp.eq.s32.totalorder %s34, 1
      %p346 = por %p344, %p345
      %p347 = scmp.ne.s32.totalorder %s338, %s339
      %p348 = scmp.eq.s32.totalorder %s34, 0
      %p349 = por %p347, %p348
      %p350 = scmp.ne.s32.totalorder %s338, %s339
      %p351 = scmp.eq.s32.totalorder %s35, 1
      %p352 = por %p350, %p351
      %p354 = scmp.ne.s32.totalorder %s339, %s353
      %p355 = scmp.eq.s32.totalorder %s35, 0
      %p356 = por %p354, %p355
      %s358 = sadd.s32 %s357, 1
      %p361 = scmp.eq.s32.totalorder %s29, 1
      %p362 = scmp.ne.s32.totalorder %s357, %s359
      %p363 = scmp.eq.s32.totalorder %s29, 0
      %p364 = por %p362, %p363
      %p365 = scmp.ne.s32.totalorder %s357, %s359
      %p366 = scmp.eq.s32.totalorder %s34, 1
      %p367 = por %p365, %p366
      %p368 = scmp.ne.s32.totalorder %s359, %s360
      %p369 = scmp.eq.s32.totalorder %s34, 0
      %p370 = por %p368, %p369
      %p371 = scmp.ne.s32.totalorder %s359, %s360
      %p372 = scmp.eq.s32.totalorder %s35, 1
      %p373 = por %p371, %p372
      %p375 = scmp.ne.s32.totalorder %s360, %s374
      %p376 = scmp.eq.s32.totalorder %s35, 0
      %p377 = por %p375, %p376
      %s379 = sadd.s32 %s378, 1
      %p382 = scmp.eq.s32.totalorder %s29, 1
      %p383 = scmp.ne.s32.totalorder %s378, %s380
      %p384 = scmp.eq.s32.totalorder %s29, 0
      %p385 = por %p383, %p384
      %p386 = scmp.ne.s32.totalorder %s378, %s380
      %p387 = scmp.eq.s32.totalorder %s34, 1
      %p388 = por %p386, %p387
      %p389 = scmp.ne.s32.totalorder %s380, %s381
      %p390 = scmp.eq.s32.totalorder %s34, 0
      %p391 = por %p389, %p390
      %p392 = scmp.ne.s32.totalorder %s380, %s381
      %p393 = scmp.eq.s32.totalorder %s35, 1
      %p394 = por %p392, %p393
      %p396 = scmp.ne.s32.totalorder %s381, %s395
      %p397 = scmp.eq.s32.totalorder %s35, 0
      %p398 = por %p396, %p397
      %s399 = ssub.s32 %s29, %s36
      %p400 = scmp.eq.s32.totalorder %s399, 0
      %s402 = sadd.s32 %s401, 1
      %s403 = scalar_select %p400, %s401, %s402
      %p406 = pneg %p400
      %p407 = scmp.eq.s32.totalorder %s29, 1
      %p408 = por %p406, %p407
      %p409 = scmp.ne.s32.totalorder %s401, %s404
      %p410 = scmp.eq.s32.totalorder %s29, 0
      %p411 = por %p409, %p410
      %p412 = scmp.ne.s32.totalorder %s401, %s404
      %p413 = scmp.eq.s32.totalorder %s34, 1
      %p414 = por %p412, %p413
      %p415 = scmp.ne.s32.totalorder %s404, %s405
      %p416 = scmp.eq.s32.totalorder %s34, 0
      %p417 = por %p415, %p416
      %p418 = scmp.ne.s32.totalorder %s404, %s405
      %p419 = scmp.eq.s32.totalorder %s35, 1
      %p420 = por %p418, %p419
      %p422 = scmp.ne.s32.totalorder %s405, %s421
      %p423 = scmp.eq.s32.totalorder %s35, 0
      %p424 = por %p422, %p423
      %p425 = scmp.le.s32.totalorder 1, %s29
      %p426 = scmp.lt.s32.totalorder %s29, 3
      %p427 = pnand %p425, %p426
      %p428 = pneg %p427
      // Predicated region
      $region9: #{tpu_custom_call.1} parent=5 // pred_check
        _
      $region10: #{tpu_custom_call.1} parent=5 // pred_check_branch
        %430 = sbr.rel (%p427) target = $region12
      $region11: #{tpu_custom_call.1} parent=5 // pred_region
        %s431 = ssub.s32 %s29, 1
        // Predicated region
        $region13: #{tpu_custom_call.1} parent=11 // pred_check
          %p432 = pneg %p76
        $region14: #{tpu_custom_call.1} parent=11 // pred_check_branch
          %434 = sbr.rel (%p432) target = $region16
        $region15: #{tpu_custom_call.1} parent=11 // pred_region
          _
        $region16: #{tpu_custom_call.1} parent=11 // pred_fallthru
          _
        // Predicated region
        $region17: #{tpu_custom_call.1} parent=11 // pred_check
          %p435 = pneg %p97
        $region18: #{tpu_custom_call.1} parent=11 // pred_check_branch
          %437 = sbr.rel (%p435) target = $region20
        $region19: #{tpu_custom_call.1} parent=11 // pred_region
          _
        $region20: #{tpu_custom_call.1} parent=11 // pred_fallthru
          _
        // Predicated region
        $region21: #{tpu_custom_call.1} parent=11 // pred_check
          %p438 = pneg %p118
        $region22: #{tpu_custom_call.1} parent=11 // pred_check_branch
          %440 = sbr.rel (%p438) target = $region24
        $region23: #{tpu_custom_call.1} parent=11 // pred_region
          %s442 = ssub.s32 256, 256
          %443 = vsyncadd [#allocation3], %s442
          %s444 = sshll.u32 [#allocation2], 4
          %s445 = int_to_ptr.vmem [resolvable:$true] %s444
          %450 = dma.hbm_to_vmem [thread:$0]  %s3, 256, %s445, [#allocation3], 64, 64, 4
        $region24: #{tpu_custom_call.1} parent=11 // pred_fallthru
          _
        // Predicated region
        $region25: #{tpu_custom_call.1} parent=11 // pred_check
          %p451 = pneg %p139
        $region26: #{tpu_custom_call.1} parent=11 // pred_check_branch
          %453 = sbr.rel (%p451) target = $region28
        $region27: #{tpu_custom_call.1} parent=11 // pred_region
          _
        $region28: #{tpu_custom_call.1} parent=11 // pred_fallthru
          _
        // Predicated region
        $region29: #{tpu_custom_call.1} parent=11 // pred_check
          %p454 = pneg %p160
        $region30: #{tpu_custom_call.1} parent=11 // pred_check_branch
          %456 = sbr.rel (%p454) target = $region32
        $region31: #{tpu_custom_call.1} parent=11 // pred_region
          _
        $region32: #{tpu_custom_call.1} parent=11 // pred_fallthru
          _
        // Predicated region
        $region33: #{tpu_custom_call.1} parent=11 // pred_check
          %p457 = pneg %p181
        $region34: #{tpu_custom_call.1} parent=11 // pred_check_branch
          %459 = sbr.rel (%p457) target = $region36
        $region35: #{tpu_custom_call.1} parent=11 // pred_region
          %s461 = ssub.s32 16, 16
          %462 = vsyncadd [#allocation6], %s461
          %s464 = sshll.u32 [#allocation5], 4
          %s465 = int_to_ptr.vmem [resolvable:$true] %s464
          %467 = dma.hbm_to_vmem [thread:$0]  %s6, 16, %s465, [#allocation6]
        $region36: #{tpu_custom_call.1} parent=11 // pred_fallthru
          _
        // Predicated region
        $region37: #{tpu_custom_call.1} parent=11 // pred_check
          %p468 = pneg %p202
        $region38: #{tpu_custom_call.1} parent=11 // pred_check_branch
          %470 = sbr.rel (%p468) target = $region40
        $region39: #{tpu_custom_call.1} parent=11 // pred_region
          %s472 = ssub.s32 256, 256
          %473 = vsyncadd [#allocation6], %s472
          %s474 = sshll.u32 [#allocation7], 4
          %s475 = int_to_ptr.vmem [resolvable:$true] %s474
          %480 = dma.hbm_to_vmem [thread:$0]  %s7, 256, %s475, [#allocation6], 64, 64, 4
        $region40: #{tpu_custom_call.1} parent=11 // pred_fallthru
          _
        // Predicated region
        $region41: #{tpu_custom_call.1} parent=11 // pred_check
          %p481 = pneg %p223
        $region42: #{tpu_custom_call.1} parent=11 // pred_check_branch
          %483 = sbr.rel (%p481) target = $region44
        $region43: #{tpu_custom_call.1} parent=11 // pred_region
          %s485 = ssub.s32 16, 16
          %486 = vsyncadd [#allocation9], %s485
          %s488 = sshll.u32 [#allocation8], 4
          %s489 = int_to_ptr.vmem [resolvable:$true] %s488
          %491 = dma.hbm_to_vmem [thread:$0]  %s8, 16, %s489, [#allocation9]
        $region44: #{tpu_custom_call.1} parent=11 // pred_fallthru
          _
        // Predicated region
        $region45: #{tpu_custom_call.1} parent=11 // pred_check
          %p492 = pneg %p244
        $region46: #{tpu_custom_call.1} parent=11 // pred_check_branch
          %494 = sbr.rel (%p492) target = $region48
        $region47: #{tpu_custom_call.1} parent=11 // pred_region
          %s496 = ssub.s32 16, 16
          %497 = vsyncadd [#allocation9], %s496
          %s499 = sshll.u32 [#allocation10], 4
          %s500 = int_to_ptr.vmem [resolvable:$true] %s499
          %502 = dma.hbm_to_vmem [thread:$0]  %s9, 16, %s500, [#allocation9]
        $region48: #{tpu_custom_call.1} parent=11 // pred_fallthru
          _
        // Predicated region
        $region49: #{tpu_custom_call.1} parent=11 // pred_check
          %p503 = pneg %p265
        $region50: #{tpu_custom_call.1} parent=11 // pred_check_branch
          %505 = sbr.rel (%p503) target = $region52
        $region51: #{tpu_custom_call.1} parent=11 // pred_region
          _
        $region52: #{tpu_custom_call.1} parent=11 // pred_fallthru
          _
        // Predicated region
        $region53: #{tpu_custom_call.1} parent=11 // pred_check
          %p506 = pneg %p286
        $region54: #{tpu_custom_call.1} parent=11 // pred_check_branch
          %508 = sbr.rel (%p506) target = $region56
        $region55: #{tpu_custom_call.1} parent=11 // pred_region
          _
        $region56: #{tpu_custom_call.1} parent=11 // pred_fallthru
          _
        // Predicated region
        $region57: #{tpu_custom_call.1} parent=11 // pred_check
          %p509 = pneg %p307
        $region58: #{tpu_custom_call.1} parent=11 // pred_check_branch
          %511 = sbr.rel (%p509) target = $region60
        $region59: #{tpu_custom_call.1} parent=11 // pred_region
          _
        $region60: #{tpu_custom_call.1} parent=11 // pred_fallthru
          _
        // Predicated region
        $region61: #{tpu_custom_call.1} parent=11 // pred_check
          %p512 = pneg %p328
        $region62: #{tpu_custom_call.1} parent=11 // pred_check_branch
          %514 = sbr.rel (%p512) target = $region64
        $region63: #{tpu_custom_call.1} parent=11 // pred_region
          _
        $region64: #{tpu_custom_call.1} parent=11 // pred_fallthru
          _
        // Predicated region
        $region65: #{tpu_custom_call.1} parent=11 // pred_check
          %p515 = pneg %p349
        $region66: #{tpu_custom_call.1} parent=11 // pred_check_branch
          %517 = sbr.rel (%p515) target = $region68
        $region67: #{tpu_custom_call.1} parent=11 // pred_region
          _
        $region68: #{tpu_custom_call.1} parent=11 // pred_fallthru
          _
        // Predicated region
        $region69: #{tpu_custom_call.1} parent=11 // pred_check
          %p518 = pneg %p370
        $region70: #{tpu_custom_call.1} parent=11 // pred_check_branch
          %520 = sbr.rel (%p518) target = $region72
        $region71: #{tpu_custom_call.1} parent=11 // pred_region
          _
        $region72: #{tpu_custom_call.1} parent=11 // pred_fallthru
          _
        // Predicated region
        $region73: #{tpu_custom_call.1} parent=11 // pred_check
          %p521 = pneg %p391
        $region74: #{tpu_custom_call.1} parent=11 // pred_check_branch
          %523 = sbr.rel (%p521) target = $region76
        $region75: #{tpu_custom_call.1} parent=11 // pred_region
          _
        $region76: #{tpu_custom_call.1} parent=11 // pred_fallthru
          _
      $region12: #{tpu_custom_call.1} parent=5 // pred_fallthru
        _
      %p524 = scmp.lt.s32.totalorder %s29, 2
      // Predicated region
      $region77: #{tpu_custom_call.1} parent=5 // pred_check
        %p525 = pneg %p524
      $region78: #{tpu_custom_call.1} parent=5 // pred_check_branch
        %527 = sbr.rel (%p525) target = $region80
      $region79: #{tpu_custom_call.1} parent=5 // pred_region
        // Predicated region
        $region81: #{tpu_custom_call.1} parent=79 // pred_check
          %p528 = pneg %p49
        $region82: #{tpu_custom_call.1} parent=79 // pred_check_branch
          %530 = sbr.rel (%p528) target = $region84
        $region83: #{tpu_custom_call.1} parent=79 // pred_region
          %p531 = scmp.lt.s32.totalorder %s29, 1
          %s532 = scalar_select %p531, %s29, 1
          %s533 = smul.addr %s532, 8
          %s534 = scalar_lea.vmem %s0, %s533
        $region84: #{tpu_custom_call.1} parent=79 // pred_fallthru
          _
      $region80: #{tpu_custom_call.1} parent=5 // pred_fallthru
        _
      %p535 = scmp.le.s32.totalorder 1, %s29
      %p536 = scmp.lt.s32.totalorder %s29, 3
      %p537 = pnand %p535, %p536
      %p538 = pneg %p537
      // Predicated region
      $region85: #{tpu_custom_call.1} parent=5 // pred_check
        _
      $region86: #{tpu_custom_call.1} parent=5 // pred_check_branch
        %540 = sbr.rel (%p537) target = $region88
      $region87: #{tpu_custom_call.1} parent=5 // pred_region
        %s541 = ssub.s32 %s29, 1
        // Predicated region
        $region89: #{tpu_custom_call.1} parent=87 // pred_check
          %p542 = pneg %p118
        $region90: #{tpu_custom_call.1} parent=87 // pred_check_branch
          %544 = sbr.rel (%p542) target = $region92
        $region91: #{tpu_custom_call.1} parent=87 // pred_region
          %545 = dma.done [#allocation3], 256
        $region92: #{tpu_custom_call.1} parent=87 // pred_fallthru
          _
        // Predicated region
        $region93: #{tpu_custom_call.1} parent=87 // pred_check
          %p546 = pneg %p181
        $region94: #{tpu_custom_call.1} parent=87 // pred_check_branch
          %548 = sbr.rel (%p546) target = $region96
        $region95: #{tpu_custom_call.1} parent=87 // pred_region
          %549 = dma.done [#allocation6], 16
        $region96: #{tpu_custom_call.1} parent=87 // pred_fallthru
          _
        // Predicated region
        $region97: #{tpu_custom_call.1} parent=87 // pred_check
          %p550 = pneg %p202
        $region98: #{tpu_custom_call.1} parent=87 // pred_check_branch
          %552 = sbr.rel (%p550) target = $region100
        $region99: #{tpu_custom_call.1} parent=87 // pred_region
          %553 = dma.done [#allocation6], 256
        $region100: #{tpu_custom_call.1} parent=87 // pred_fallthru
          _
        // Predicated region
        $region101: #{tpu_custom_call.1} parent=87 // pred_check
          %p554 = pneg %p223
        $region102: #{tpu_custom_call.1} parent=87 // pred_check_branch
          %556 = sbr.rel (%p554) target = $region104
        $region103: #{tpu_custom_call.1} parent=87 // pred_region
          %557 = dma.done [#allocation9], 16
        $region104: #{tpu_custom_call.1} parent=87 // pred_fallthru
          _
        // Predicated region
        $region105: #{tpu_custom_call.1} parent=87 // pred_check
          %p558 = pneg %p244
        $region106: #{tpu_custom_call.1} parent=87 // pred_check_branch
          %560 = sbr.rel (%p558) target = $region108
        $region107: #{tpu_custom_call.1} parent=87 // pred_region
          %561 = dma.done [#allocation9], 16
        $region108: #{tpu_custom_call.1} parent=87 // pred_fallthru
          _
        %p562 = scmp.lt.s32.totalorder %s34, 1
        %s563 = scalar_select %p562, %s34, 1
        %s564 = smul.addr %s563, 8
        %s565 = scalar_lea.vmem %s0, %s564
        %p566 = pneg %p55
        %p567 = pneg %p52
        %p568 = pneg %p76
        %p569 = pneg %p73
        %p570 = pneg %p97
        %p571 = pneg %p94
        %p572 = pneg %p118
        %p573 = pneg %p115
        %p574 = pneg %p139
        %p575 = pneg %p136
        %p576 = pneg %p160
        %p577 = pneg %p157
        %p578 = pneg %p181
        %p579 = pneg %p178
        %p580 = pneg %p202
        %p581 = pneg %p199
        %p582 = pneg %p223
        %p583 = pneg %p220
        %p584 = pneg %p244
        %p585 = pneg %p241
        %p586 = pneg %p265
        %p587 = pneg %p262
        %p588 = pneg %p286
        %p589 = pneg %p283
        %p590 = pneg %p307
        %p591 = pneg %p304
        %p592 = pneg %p328
        %p593 = pneg %p325
        %p594 = pneg %p349
        %p595 = pneg %p346
        %p596 = pneg %p370
        %p597 = pneg %p367
        %p598 = pneg %p391
        %p599 = pneg %p388
        %p600 = pneg %p417
        %p601 = pneg %p414
        %s602 = sand.u32 %s404, 1
        %s603 = scalar_lea.sflag [#allocation4], %s602
        %s604 = sand.u32 %s404, 1
        %s605 = smul.addr %s604, 8
        %s606 = scalar_lea.vmem [#allocation11], %s605
        %p607 = scmp.lt.s32.totalorder %s34, 1
        %s608 = scalar_select %p607, %s34, 1
        %s609 = smul.addr %s608, 8
        %s610 = scalar_lea.vmem %s0, %s609
        %v612 = vld [vmem:[%s610] sm:$0xff]
        %v613 = vpack.c.bf16 %v612, %v612
        %v614 = vld [vmem:[%s1] sm:$0xf]
        %v615 = vld [vmem:[%s1 + $0x4] sm:$0xf]
        %v616 = vld [vmem:[%s1 + $0x8] sm:$0xf]
        %v617 = vld [vmem:[%s1 + $0xc] sm:$0xf]
        %v618 = vld [vmem:[%s4] sm:$0x1]
        %v620 = vlaneseq
        %v621 = vshrl.u32 %v620, 7
        %v622 = vsub.s32 0, %v621
        %v623 = vrot.slane %v618, %v622
        %v629 = vunpack.c.l.b16 %v614
        %v630 = vunpack.c.l.b16 %v615
        %v631 = vunpack.c.l.b16 %v616
        %v632 = vunpack.c.l.b16 %v617
        %v633 = vpack.c.b16 %v630, %v629
        %v634 = vpack.c.b16 %v632, %v631
        %vm637 = vcmask 261120
        %v639 = vsel %vm637, %v613, 0
        %641 = vmatprep.subr.bf16.mxu0 0
        %642 = vmatpush1.bf16.msra.mxu0 %v633
        %643 = vmatprep.subr.bf16.mxu0 0
        %644 = vmatpush1.bf16.msra.mxu0 %v634
        %645 = vmatprep.subr.bf16.mxu0 0
        %646 = vmatpush1.bf16.msra.mxu0 0
        %647 = vmatprep.subr.bf16.mxu0 0
        %648 = vmatpush1.bf16.msra.mxu0 0
        %649 = vmatprep.subr.bf16.mxu0 0
        %650 = vmatpush1.bf16.msra.mxu0 0
        %651 = vmatprep.subr.bf16.mxu0 0
        %652 = vmatpush1.bf16.msra.mxu0 0
        %653 = vmatprep.subr.bf16.mxu0 0
        %654 = vmatpush1.bf16.msra.mxu0 0
        %655 = vmatprep.subr.bf16.mxu0 0
        %656 = vmatpush1.bf16.msra.mxu0 0
        %657 = vmatprep.subr.bf16.mxu0 0
        %658 = vmatpush1.bf16.msra.mxu0 0
        %659 = vmatprep.subr.bf16.mxu0 0
        %660 = vmatpush1.bf16.msra.mxu0 0
        %661 = vmatprep.subr.bf16.mxu0 0
        %662 = vmatpush1.bf16.msra.mxu0 0
        %663 = vmatprep.subr.bf16.mxu0 0
        %664 = vmatpush1.bf16.msra.mxu0 0
        %665 = vmatprep.subr.bf16.mxu0 0
        %666 = vmatpush1.bf16.msra.mxu0 0
        %667 = vmatprep.subr.bf16.mxu0 0
        %668 = vmatpush1.bf16.msra.mxu0 0
        %669 = vmatprep.subr.bf16.mxu0 0
        %670 = vmatpush1.bf16.msra.mxu0 0
        %671 = vmatprep.subr.bf16.mxu0 0
        %672 = vmatpush1.bf16.msra.mxu0 0
        %673 = vmatprep.mubr.bf16.mxu0 0
        %674 = vmatmul.mubr.bf16.gmra.mrb[0].mxu0 %v639
        %v675 = vpop.f32.mrb[0].mxu0
        %v676 = vadd.f32 %v623, %v675
        %v677 = vpop.f32.mrb[0].mxu0
        %v678 = vpop.f32.mrb[0].mxu0
        %v679 = vpop.f32.mrb[0].mxu0
        %680 = vdwg.mxu0
        %v681 = vpack.c.bf16 %v676, %v676
        %v682 = vld [vmem:[%s2] sm:$0xf]
        %v683 = vld [vmem:[%s2 + $0x4] sm:$0xf]
        %v684 = vld [vmem:[%s2 + $0x8] sm:$0xf]
        %v685 = vld [vmem:[%s2 + $0xc] sm:$0xf]
        %v686 = vld [vmem:[%s5] sm:$0x1]
        %v688 = vlaneseq
        %v689 = vshrl.u32 %v688, 7
        %v690 = vsub.s32 0, %v689
        %v691 = vrot.slane %v686, %v690
        %v697 = vunpack.c.l.b16 %v682
        %v698 = vunpack.c.l.b16 %v683
        %v699 = vunpack.c.l.b16 %v684
        %v700 = vunpack.c.l.b16 %v685
        %v701 = vpack.c.b16 %v698, %v697
        %v702 = vpack.c.b16 %v700, %v699
        %705 = vmatprep.subr.bf16.mxu0 0
        %706 = vmatpush1.bf16.msra.mxu0 %v701
        %707 = vmatprep.subr.bf16.mxu0 0
        %708 = vmatpush1.bf16.msra.mxu0 %v702
        %709 = vmatprep.subr.bf16.mxu0 0
        %710 = vmatpush1.bf16.msra.mxu0 0
        %711 = vmatprep.subr.bf16.mxu0 0
        %712 = vmatpush1.bf16.msra.mxu0 0
        %713 = vmatprep.subr.bf16.mxu0 0
        %714 = vmatpush1.bf16.msra.mxu0 0
        %715 = vmatprep.subr.bf16.mxu0 0
        %716 = vmatpush1.bf16.msra.mxu0 0
        %717 = vmatprep.subr.bf16.mxu0 0
        %718 = vmatpush1.bf16.msra.mxu0 0
        %719 = vmatprep.subr.bf16.mxu0 0
        %720 = vmatpush1.bf16.msra.mxu0 0
        %721 = vmatprep.subr.bf16.mxu0 0
        %722 = vmatpush1.bf16.msra.mxu0 0
        %723 = vmatprep.subr.bf16.mxu0 0
        %724 = vmatpush1.bf16.msra.mxu0 0
        %725 = vmatprep.subr.bf16.mxu0 0
        %726 = vmatpush1.bf16.msra.mxu0 0
        %727 = vmatprep.subr.bf16.mxu0 0
        %728 = vmatpush1.bf16.msra.mxu0 0
        %729 = vmatprep.subr.bf16.mxu0 0
        %730 = vmatpush1.bf16.msra.mxu0 0
        %731 = vmatprep.subr.bf16.mxu0 0
        %732 = vmatpush1.bf16.msra.mxu0 0
        %733 = vmatprep.subr.bf16.mxu0 0
        %734 = vmatpush1.bf16.msra.mxu0 0
        %735 = vmatprep.subr.bf16.mxu0 0
        %736 = vmatpush1.bf16.msra.mxu0 0
        %737 = vmatprep.mubr.bf16.mxu0 0
        %738 = vmatmul.mubr.bf16.gmra.mrb[0].mxu0 %v639
        %v739 = vpop.f32.mrb[0].mxu0
        %v740 = vadd.f32 %v691, %v739
        %v741 = vpop.f32.mrb[0].mxu0
        %v742 = vpop.f32.mrb[0].mxu0
        %v743 = vpop.f32.mrb[0].mxu0
        %744 = vdwg.mxu0
        %v745 = vpack.c.bf16 %v740, %v740
        %v746 = vld [vmem:[#allocation2] sm:$0xf]
        %v747 = vld [vmem:[#allocation2 + $0x4] sm:$0xf]
        %v748 = vld [vmem:[#allocation2 + $0x8] sm:$0xf]
        %v749 = vld [vmem:[#allocation2 + $0xc] sm:$0xf]
        %v750 = vld [vmem:[#allocation5] sm:$0x1]
        %v752 = vlaneseq
        %v753 = vshrl.u32 %v752, 7
        %v754 = vsub.s32 0, %v753
        %v755 = vrot.slane %v750, %v754
        %v761 = vunpack.c.l.b16 %v746
        %v762 = vunpack.c.l.b16 %v747
        %v763 = vunpack.c.l.b16 %v748
        %v764 = vunpack.c.l.b16 %v749
        %v765 = vpack.c.b16 %v762, %v761
        %v766 = vpack.c.b16 %v764, %v763
        %769 = vmatprep.subr.bf16.mxu0 0
        %770 = vmatpush1.bf16.msra.mxu0 %v765
        %771 = vmatprep.subr.bf16.mxu0 0
        %772 = vmatpush1.bf16.msra.mxu0 %v766
        %773 = vmatprep.subr.bf16.mxu0 0
        %774 = vmatpush1.bf16.msra.mxu0 0
        %775 = vmatprep.subr.bf16.mxu0 0
        %776 = vmatpush1.bf16.msra.mxu0 0
        %777 = vmatprep.subr.bf16.mxu0 0
        %778 = vmatpush1.bf16.msra.mxu0 0
        %779 = vmatprep.subr.bf16.mxu0 0
        %780 = vmatpush1.bf16.msra.mxu0 0
        %781 = vmatprep.subr.bf16.mxu0 0
        %782 = vmatpush1.bf16.msra.mxu0 0
        %783 = vmatprep.subr.bf16.mxu0 0
        %784 = vmatpush1.bf16.msra.mxu0 0
        %785 = vmatprep.subr.bf16.mxu0 0
        %786 = vmatpush1.bf16.msra.mxu0 0
        %787 = vmatprep.subr.bf16.mxu0 0
        %788 = vmatpush1.bf16.msra.mxu0 0
        %789 = vmatprep.subr.bf16.mxu0 0
        %790 = vmatpush1.bf16.msra.mxu0 0
        %791 = vmatprep.subr.bf16.mxu0 0
        %792 = vmatpush1.bf16.msra.mxu0 0
        %793 = vmatprep.subr.bf16.mxu0 0
        %794 = vmatpush1.bf16.msra.mxu0 0
        %795 = vmatprep.subr.bf16.mxu0 0
        %796 = vmatpush1.bf16.msra.mxu0 0
        %797 = vmatprep.subr.bf16.mxu0 0
        %798 = vmatpush1.bf16.msra.mxu0 0
        %799 = vmatprep.subr.bf16.mxu0 0
        %800 = vmatpush1.bf16.msra.mxu0 0
        %801 = vmatprep.mubr.bf16.mxu0 0
        %802 = vmatmul.mubr.bf16.gmra.mrb[0].mxu0 %v639
        %v803 = vpop.f32.mrb[0].mxu0
        %v804 = vadd.f32 %v755, %v803
        %v805 = vpop.f32.mrb[0].mxu0
        %v806 = vpop.f32.mrb[0].mxu0
        %v807 = vpop.f32.mrb[0].mxu0
        %808 = vdwg.mxu0
        %v809 = vpack.c.bf16 %v804, %v804
        %811 = vrot.lane.b32.xlu0 %v681, 120
        %v812 = vpop.permute.xlu0 %811
        %813 = vrot.lane.b32.xlu0 %v681, 112
        %v814 = vpop.permute.xlu0 %813
        %815 = vrot.lane.b32.xlu0 %v681, 104
        %v816 = vpop.permute.xlu0 %815
        %818 = vrot.lane.b32.xlu0 %v745, 120
        %v819 = vpop.permute.xlu0 %818
        %820 = vrot.lane.b32.xlu0 %v745, 112
        %v821 = vpop.permute.xlu0 %820
        %822 = vrot.lane.b32.xlu0 %v745, 104
        %v823 = vpop.permute.xlu0 %822
        %825 = vrot.lane.b32.xlu0 %v809, 120
        %v826 = vpop.permute.xlu0 %825
        %827 = vrot.lane.b32.xlu0 %v809, 112
        %v828 = vpop.permute.xlu0 %827
        %829 = vrot.lane.b32.xlu0 %v809, 104
        %v830 = vpop.permute.xlu0 %829
        %vm831 = vcmask 64512
        %v833 = vsel %vm831, %v681, 0
        %v836 = vsel %vm831, %v745, 0
        %838 = vmatprep.subr.bf16.mxu0 0
        %839 = vmatpush1.bf16.xpose.msra.mxu0 %v836
        %840 = vmatprep.subr.bf16.mxu0 0
        %841 = vmatpush1.bf16.xpose.msra.mxu0 0
        %842 = vmatprep.subr.bf16.mxu0 0
        %843 = vmatpush1.bf16.xpose.msra.mxu0 0
        %844 = vmatprep.subr.bf16.mxu0 0
        %845 = vmatpush1.bf16.xpose.msra.mxu0 0
        %846 = vmatprep.subr.bf16.mxu0 0
        %847 = vmatpush1.bf16.xpose.msra.mxu0 0
        %848 = vmatprep.subr.bf16.mxu0 0
        %849 = vmatpush1.bf16.xpose.msra.mxu0 0
        %850 = vmatprep.subr.bf16.mxu0 0
        %851 = vmatpush1.bf16.xpose.msra.mxu0 0
        %852 = vmatprep.subr.bf16.mxu0 0
        %853 = vmatpush1.bf16.xpose.msra.mxu0 0
        %854 = vmatprep.subr.bf16.mxu0 0
        %855 = vmatpush1.bf16.xpose.msra.mxu0 0
        %856 = vmatprep.subr.bf16.mxu0 0
        %857 = vmatpush1.bf16.xpose.msra.mxu0 0
        %858 = vmatprep.subr.bf16.mxu0 0
        %859 = vmatpush1.bf16.xpose.msra.mxu0 0
        %860 = vmatprep.subr.bf16.mxu0 0
        %861 = vmatpush1.bf16.xpose.msra.mxu0 0
        %862 = vmatprep.subr.bf16.mxu0 0
        %863 = vmatpush1.bf16.xpose.msra.mxu0 0
        %864 = vmatprep.subr.bf16.mxu0 0
        %865 = vmatpush1.bf16.xpose.msra.mxu0 0
        %866 = vmatprep.subr.bf16.mxu0 0
        %867 = vmatpush1.bf16.xpose.msra.mxu0 0
        %868 = vmatprep.subr.bf16.mxu0 0
        %869 = vmatpush1.bf16.xpose.msra.mxu0 0
        %870 = vmatprep.mubr.bf16.mxu0 0
        %871 = vmatmul.mubr.bf16.gmra.mrb[0].mxu0 %v833
        %v872 = vpop.f32.mrb[0].mxu0
        %v873 = vadd.f32 0.0, %v872
        %v874 = vpop.f32.mrb[0].mxu0
        %v875 = vpop.f32.mrb[0].mxu0
        %v876 = vpop.f32.mrb[0].mxu0
        %877 = vdwg.mxu0
        %v879 = vsel %vm831, %v812, 0
        %v882 = vsel %vm831, %v819, 0
        %884 = vmatprep.subr.bf16.mxu0 0
        %885 = vmatpush1.bf16.xpose.msra.mxu0 %v882
        %886 = vmatprep.subr.bf16.mxu0 0
        %887 = vmatpush1.bf16.xpose.msra.mxu0 0
        %888 = vmatprep.subr.bf16.mxu0 0
        %889 = vmatpush1.bf16.xpose.msra.mxu0 0
        %890 = vmatprep.subr.bf16.mxu0 0
        %891 = vmatpush1.bf16.xpose.msra.mxu0 0
        %892 = vmatprep.subr.bf16.mxu0 0
        %893 = vmatpush1.bf16.xpose.msra.mxu0 0
        %894 = vmatprep.subr.bf16.mxu0 0
        %895 = vmatpush1.bf16.xpose.msra.mxu0 0
        %896 = vmatprep.subr.bf16.mxu0 0
        %897 = vmatpush1.bf16.xpose.msra.mxu0 0
        %898 = vmatprep.subr.bf16.mxu0 0
        %899 = vmatpush1.bf16.xpose.msra.mxu0 0
        %900 = vmatprep.subr.bf16.mxu0 0
        %901 = vmatpush1.bf16.xpose.msra.mxu0 0
        %902 = vmatprep.subr.bf16.mxu0 0
        %903 = vmatpush1.bf16.xpose.msra.mxu0 0
        %904 = vmatprep.subr.bf16.mxu0 0
        %905 = vmatpush1.bf16.xpose.msra.mxu0 0
        %906 = vmatprep.subr.bf16.mxu0 0
        %907 = vmatpush1.bf16.xpose.msra.mxu0 0
        %908 = vmatprep.subr.bf16.mxu0 0
        %909 = vmatpush1.bf16.xpose.msra.mxu0 0
        %910 = vmatprep.subr.bf16.mxu0 0
        %911 = vmatpush1.bf16.xpose.msra.mxu0 0
        %912 = vmatprep.subr.bf16.mxu0 0
        %913 = vmatpush1.bf16.xpose.msra.mxu0 0
        %914 = vmatprep.subr.bf16.mxu0 0
        %915 = vmatpush1.bf16.xpose.msra.mxu0 0
        %916 = vmatprep.mubr.bf16.mxu0 0
        %917 = vmatmul.mubr.bf16.gmra.mrb[0].mxu0 %v879
        %v918 = vpop.f32.mrb[0].mxu0
        %v919 = vadd.f32 0.0, %v918
        %v920 = vpop.f32.mrb[0].mxu0
        %v921 = vpop.f32.mrb[0].mxu0
        %v922 = vpop.f32.mrb[0].mxu0
        %923 = vdwg.mxu0
        %v925 = vsel %vm831, %v814, 0
        %v928 = vsel %vm831, %v821, 0
        %930 = vmatprep.subr.bf16.mxu0 0
        %931 = vmatpush1.bf16.xpose.msra.mxu0 %v928
        %932 = vmatprep.subr.bf16.mxu0 0
        %933 = vmatpush1.bf16.xpose.msra.mxu0 0
        %934 = vmatprep.subr.bf16.mxu0 0
        %935 = vmatpush1.bf16.xpose.msra.mxu0 0
        %936 = vmatprep.subr.bf16.mxu0 0
        %937 = vmatpush1.bf16.xpose.msra.mxu0 0
        %938 = vmatprep.subr.bf16.mxu0 0
        %939 = vmatpush1.bf16.xpose.msra.mxu0 0
        %940 = vmatprep.subr.bf16.mxu0 0
        %941 = vmatpush1.bf16.xpose.msra.mxu0 0
        %942 = vmatprep.subr.bf16.mxu0 0
        %943 = vmatpush1.bf16.xpose.msra.mxu0 0
        %944 = vmatprep.subr.bf16.mxu0 0
        %945 = vmatpush1.bf16.xpose.msra.mxu0 0
        %946 = vmatprep.subr.bf16.mxu0 0
        %947 = vmatpush1.bf16.xpose.msra.mxu0 0
        %948 = vmatprep.subr.bf16.mxu0 0
        %949 = vmatpush1.bf16.xpose.msra.mxu0 0
        %950 = vmatprep.subr.bf16.mxu0 0
        %951 = vmatpush1.bf16.xpose.msra.mxu0 0
        %952 = vmatprep.subr.bf16.mxu0 0
        %953 = vmatpush1.bf16.xpose.msra.mxu0 0
        %954 = vmatprep.subr.bf16.mxu0 0
        %955 = vmatpush1.bf16.xpose.msra.mxu0 0
        %956 = vmatprep.subr.bf16.mxu0 0
        %957 = vmatpush1.bf16.xpose.msra.mxu0 0
        %958 = vmatprep.subr.bf16.mxu0 0
        %959 = vmatpush1.bf16.xpose.msra.mxu0 0
        %960 = vmatprep.subr.bf16.mxu0 0
        %961 = vmatpush1.bf16.xpose.msra.mxu0 0
        %962 = vmatprep.mubr.bf16.mxu0 0
        %963 = vmatmul.mubr.bf16.gmra.mrb[0].mxu0 %v925
        %v964 = vpop.f32.mrb[0].mxu0
        %v965 = vadd.f32 0.0, %v964
        %v966 = vpop.f32.mrb[0].mxu0
        %v967 = vpop.f32.mrb[0].mxu0
        %v968 = vpop.f32.mrb[0].mxu0
        %969 = vdwg.mxu0
        %v971 = vsel %vm831, %v816, 0
        %v974 = vsel %vm831, %v823, 0
        %976 = vmatprep.subr.bf16.mxu0 0
        %977 = vmatpush1.bf16.xpose.msra.mxu0 %v974
        %978 = vmatprep.subr.bf16.mxu0 0
        %979 = vmatpush1.bf16.xpose.msra.mxu0 0
        %980 = vmatprep.subr.bf16.mxu0 0
        %981 = vmatpush1.bf16.xpose.msra.mxu0 0
        %982 = vmatprep.subr.bf16.mxu0 0
        %983 = vmatpush1.bf16.xpose.msra.mxu0 0
        %984 = vmatprep.subr.bf16.mxu0 0
        %985 = vmatpush1.bf16.xpose.msra.mxu0 0
        %986 = vmatprep.subr.bf16.mxu0 0
        %987 = vmatpush1.bf16.xpose.msra.mxu0 0
        %988 = vmatprep.subr.bf16.mxu0 0
        %989 = vmatpush1.bf16.xpose.msra.mxu0 0
        %990 = vmatprep.subr.bf16.mxu0 0
        %991 = vmatpush1.bf16.xpose.msra.mxu0 0
        %992 = vmatprep.subr.bf16.mxu0 0
        %993 = vmatpush1.bf16.xpose.msra.mxu0 0
        %994 = vmatprep.subr.bf16.mxu0 0
        %995 = vmatpush1.bf16.xpose.msra.mxu0 0
        %996 = vmatprep.subr.bf16.mxu0 0
        %997 = vmatpush1.bf16.xpose.msra.mxu0 0
        %998 = vmatprep.subr.bf16.mxu0 0
        %999 = vmatpush1.bf16.xpose.msra.mxu0 0
        %1000 = vmatprep.subr.bf16.mxu0 0
        %1001 = vmatpush1.bf16.xpose.msra.mxu0 0
        %1002 = vmatprep.subr.bf16.mxu0 0
        %1003 = vmatpush1.bf16.xpose.msra.mxu0 0
        %1004 = vmatprep.subr.bf16.mxu0 0
        %1005 = vmatpush1.bf16.xpose.msra.mxu0 0
        %1006 = vmatprep.subr.bf16.mxu0 0
        %1007 = vmatpush1.bf16.xpose.msra.mxu0 0
        %1008 = vmatprep.mubr.bf16.mxu0 0
        %1009 = vmatmul.mubr.bf16.gmra.mrb[0].mxu0 %v971
        %v1010 = vpop.f32.mrb[0].mxu0
        %v1011 = vadd.f32 0.0, %v1010
        %v1012 = vpop.f32.mrb[0].mxu0
        %v1013 = vpop.f32.mrb[0].mxu0
        %v1014 = vpop.f32.mrb[0].mxu0
        %1015 = vdwg.mxu0
        %v1016 = vsel %vm831, %v873, -inf
        %1017 = vmax.xlane.f32.xlu0 %v1016
        %v1018 = vpop.xlane.xlu0 %1017
        %v1019 = vsel %vm831, %v919, -inf
        %1020 = vmax.xlane.f32.xlu0 %v1019
        %v1021 = vpop.xlane.xlu0 %1020
        %v1022 = vsel %vm831, %v965, -inf
        %1023 = vmax.xlane.f32.xlu0 %v1022
        %v1024 = vpop.xlane.xlu0 %1023
        %v1025 = vsel %vm831, %v1011, -inf
        %1026 = vmax.xlane.f32.xlu0 %v1025
        %v1027 = vpop.xlane.xlu0 %1026
        %v1028 = vsub.f32 %v873, %v1018
        %v1029 = vsub.f32 %v919, %v1021
        %v1030 = vsub.f32 %v965, %v1024
        %v1031 = vsub.f32 %v1011, %v1027
        %v1032 = vmul.f32 %v1028, 1.442695
        %v1033 = vpow.pop %v1032
        %v1034 = vmul.f32 %v1029, 1.442695
        %v1035 = vpow.pop %v1034
        %v1036 = vmul.f32 %v1030, 1.442695
        %v1037 = vpow.pop %v1036
        %v1038 = vmul.f32 %v1031, 1.442695
        %v1039 = vpow.pop %v1038
        %v1040 = vsel %vm831, %v1033, 0.0
        %1041 = vadd.xlane.f32.xlu0 %v1040
        %v1042 = vpop.xlane.xlu0 %1041
        %v1043 = vsel %vm831, %v1035, 0.0
        %1044 = vadd.xlane.f32.xlu0 %v1043
        %v1045 = vpop.xlane.xlu0 %1044
        %v1046 = vsel %vm831, %v1037, 0.0
        %1047 = vadd.xlane.f32.xlu0 %v1046
        %v1048 = vpop.xlane.xlu0 %1047
        %v1049 = vsel %vm831, %v1039, 0.0
        %1050 = vadd.xlane.f32.xlu0 %v1049
        %v1051 = vpop.xlane.xlu0 %1050
        %v1052 = vrcp.pop %v1042
        %v1053 = vrcp.pop %v1045
        %v1054 = vrcp.pop %v1048
        %v1055 = vrcp.pop %v1051
        %v1056 = vpack.c.bf16 %v1033, %v1033
        %v1057 = vpack.c.bf16 %v1035, %v1035
        %v1058 = vpack.c.bf16 %v1037, %v1037
        %v1059 = vpack.c.bf16 %v1039, %v1039
        %v1061 = vsel %vm831, %v1056, 0
        %vm1063 = vcmask 1043456
        %v1065 = vsel %vm1063, %v809, 0
        %1067 = vmatprep.subr.bf16.mxu0 0
        %1068 = vmatpush1.bf16.msra.mxu0 %v1065
        %1069 = vmatprep.subr.bf16.mxu0 0
        %1070 = vmatpush1.bf16.msra.mxu0 0
        %1071 = vmatprep.subr.bf16.mxu0 0
        %1072 = vmatpush1.bf16.msra.mxu0 0
        %1073 = vmatprep.subr.bf16.mxu0 0
        %1074 = vmatpush1.bf16.msra.mxu0 0
        %1075 = vmatprep.subr.bf16.mxu0 0
        %1076 = vmatpush1.bf16.msra.mxu0 0
        %1077 = vmatprep.subr.bf16.mxu0 0
        %1078 = vmatpush1.bf16.msra.mxu0 0
        %1079 = vmatprep.subr.bf16.mxu0 0
        %1080 = vmatpush1.bf16.msra.mxu0 0
        %1081 = vmatprep.subr.bf16.mxu0 0
        %1082 = vmatpush1.bf16.msra.mxu0 0
        %1083 = vmatprep.subr.bf16.mxu0 0
        %1084 = vmatpush1.bf16.msra.mxu0 0
        %1085 = vmatprep.subr.bf16.mxu0 0
        %1086 = vmatpush1.bf16.msra.mxu0 0
        %1087 = vmatprep.subr.bf16.mxu0 0
        %1088 = vmatpush1.bf16.msra.mxu0 0
        %1089 = vmatprep.subr.bf16.mxu0 0
        %1090 = vmatpush1.bf16.msra.mxu0 0
        %1091 = vmatprep.subr.bf16.mxu0 0
        %1092 = vmatpush1.bf16.msra.mxu0 0
        %1093 = vmatprep.subr.bf16.mxu0 0
        %1094 = vmatpush1.bf16.msra.mxu0 0
        %1095 = vmatprep.subr.bf16.mxu0 0
        %1096 = vmatpush1.bf16.msra.mxu0 0
        %1097 = vmatprep.subr.bf16.mxu0 0
        %1098 = vmatpush1.bf16.msra.mxu0 0
        %1099 = vmatprep.mubr.bf16.mxu0 0
        %1100 = vmatmul.mubr.bf16.gmra.mrb[0].mxu0 %v1061
        %v1101 = vpop.f32.mrb[0].mxu0
        %v1102 = vadd.f32 0.0, %v1101
        %v1103 = vpop.f32.mrb[0].mxu0
        %v1104 = vpop.f32.mrb[0].mxu0
        %v1105 = vpop.f32.mrb[0].mxu0
        %1106 = vdwg.mxu0
        %v1108 = vsel %vm831, %v1057, 0
        %v1111 = vsel %vm1063, %v826, 0
        %1113 = vmatprep.subr.bf16.mxu0 0
        %1114 = vmatpush1.bf16.msra.mxu0 %v1111
        %1115 = vmatprep.subr.bf16.mxu0 0
        %1116 = vmatpush1.bf16.msra.mxu0 0
        %1117 = vmatprep.subr.bf16.mxu0 0
        %1118 = vmatpush1.bf16.msra.mxu0 0
        %1119 = vmatprep.subr.bf16.mxu0 0
        %1120 = vmatpush1.bf16.msra.mxu0 0
        %1121 = vmatprep.subr.bf16.mxu0 0
        %1122 = vmatpush1.bf16.msra.mxu0 0
        %1123 = vmatprep.subr.bf16.mxu0 0
        %1124 = vmatpush1.bf16.msra.mxu0 0
        %1125 = vmatprep.subr.bf16.mxu0 0
        %1126 = vmatpush1.bf16.msra.mxu0 0
        %1127 = vmatprep.subr.bf16.mxu0 0
        %1128 = vmatpush1.bf16.msra.mxu0 0
        %1129 = vmatprep.subr.bf16.mxu0 0
        %1130 = vmatpush1.bf16.msra.mxu0 0
        %1131 = vmatprep.subr.bf16.mxu0 0
        %1132 = vmatpush1.bf16.msra.mxu0 0
        %1133 = vmatprep.subr.bf16.mxu0 0
        %1134 = vmatpush1.bf16.msra.mxu0 0
        %1135 = vmatprep.subr.bf16.mxu0 0
        %1136 = vmatpush1.bf16.msra.mxu0 0
        %1137 = vmatprep.subr.bf16.mxu0 0
        %1138 = vmatpush1.bf16.msra.mxu0 0
        %1139 = vmatprep.subr.bf16.mxu0 0
        %1140 = vmatpush1.bf16.msra.mxu0 0
        %1141 = vmatprep.subr.bf16.mxu0 0
        %1142 = vmatpush1.bf16.msra.mxu0 0
        %1143 = vmatprep.subr.bf16.mxu0 0
        %1144 = vmatpush1.bf16.msra.mxu0 0
        %1145 = vmatprep.mubr.bf16.mxu0 0
        %1146 = vmatmul.mubr.bf16.gmra.mrb[0].mxu0 %v1108
        %v1147 = vpop.f32.mrb[0].mxu0
        %v1148 = vadd.f32 0.0, %v1147
        %v1149 = vpop.f32.mrb[0].mxu0
        %v1150 = vpop.f32.mrb[0].mxu0
        %v1151 = vpop.f32.mrb[0].mxu0
        %1152 = vdwg.mxu0
        %v1154 = vsel %vm831, %v1058, 0
        %v1157 = vsel %vm1063, %v828, 0
        %1159 = vmatprep.subr.bf16.mxu0 0
        %1160 = vmatpush1.bf16.msra.mxu0 %v1157
        %1161 = vmatprep.subr.bf16.mxu0 0
        %1162 = vmatpush1.bf16.msra.mxu0 0
        %1163 = vmatprep.subr.bf16.mxu0 0
        %1164 = vmatpush1.bf16.msra.mxu0 0
        %1165 = vmatprep.subr.bf16.mxu0 0
        %1166 = vmatpush1.bf16.msra.mxu0 0
        %1167 = vmatprep.subr.bf16.mxu0 0
        %1168 = vmatpush1.bf16.msra.mxu0 0
        %1169 = vmatprep.subr.bf16.mxu0 0
        %1170 = vmatpush1.bf16.msra.mxu0 0
        %1171 = vmatprep.subr.bf16.mxu0 0
        %1172 = vmatpush1.bf16.msra.mxu0 0
        %1173 = vmatprep.subr.bf16.mxu0 0
        %1174 = vmatpush1.bf16.msra.mxu0 0
        %1175 = vmatprep.subr.bf16.mxu0 0
        %1176 = vmatpush1.bf16.msra.mxu0 0
        %1177 = vmatprep.subr.bf16.mxu0 0
        %1178 = vmatpush1.bf16.msra.mxu0 0
        %1179 = vmatprep.subr.bf16.mxu0 0
        %1180 = vmatpush1.bf16.msra.mxu0 0
        %1181 = vmatprep.subr.bf16.mxu0 0
        %1182 = vmatpush1.bf16.msra.mxu0 0
        %1183 = vmatprep.subr.bf16.mxu0 0
        %1184 = vmatpush1.bf16.msra.mxu0 0
        %1185 = vmatprep.subr.bf16.mxu0 0
        %1186 = vmatpush1.bf16.msra.mxu0 0
        %1187 = vmatprep.subr.bf16.mxu0 0
        %1188 = vmatpush1.bf16.msra.mxu0 0
        %1189 = vmatprep.subr.bf16.mxu0 0
        %1190 = vmatpush1.bf16.msra.mxu0 0
        %1191 = vmatprep.mubr.bf16.mxu0 0
        %1192 = vmatmul.mubr.bf16.gmra.mrb[0].mxu0 %v1154
        %v1193 = vpop.f32.mrb[0].mxu0
        %v1194 = vadd.f32 0.0, %v1193
        %v1195 = vpop.f32.mrb[0].mxu0
        %v1196 = vpop.f32.mrb[0].mxu0
        %v1197 = vpop.f32.mrb[0].mxu0
        %1198 = vdwg.mxu0
        %v1200 = vsel %vm831, %v1059, 0
        %v1203 = vsel %vm1063, %v830, 0
        %1205 = vmatprep.subr.bf16.mxu0 0
        %1206 = vmatpush1.bf16.msra.mxu0 %v1203
        %1207 = vmatprep.subr.bf16.mxu0 0
        %1208 = vmatpush1.bf16.msra.mxu0 0
        %1209 = vmatprep.subr.bf16.mxu0 0
        %1210 = vmatpush1.bf16.msra.mxu0 0
        %1211 = vmatprep.subr.bf16.mxu0 0
        %1212 = vmatpush1.bf16.msra.mxu0 0
        %1213 = vmatprep.subr.bf16.mxu0 0
        %1214 = vmatpush1.bf16.msra.mxu0 0
        %1215 = vmatprep.subr.bf16.mxu0 0
        %1216 = vmatpush1.bf16.msra.mxu0 0
        %1217 = vmatprep.subr.bf16.mxu0 0
        %1218 = vmatpush1.bf16.msra.mxu0 0
        %1219 = vmatprep.subr.bf16.mxu0 0
        %1220 = vmatpush1.bf16.msra.mxu0 0
        %1221 = vmatprep.subr.bf16.mxu0 0
        %1222 = vmatpush1.bf16.msra.mxu0 0
        %1223 = vmatprep.subr.bf16.mxu0 0
        %1224 = vmatpush1.bf16.msra.mxu0 0
        %1225 = vmatprep.subr.bf16.mxu0 0
        %1226 = vmatpush1.bf16.msra.mxu0 0
        %1227 = vmatprep.subr.bf16.mxu0 0
        %1228 = vmatpush1.bf16.msra.mxu0 0
        %1229 = vmatprep.subr.bf16.mxu0 0
        %1230 = vmatpush1.bf16.msra.mxu0 0
        %1231 = vmatprep.subr.bf16.mxu0 0
        %1232 = vmatpush1.bf16.msra.mxu0 0
        %1233 = vmatprep.subr.bf16.mxu0 0
        %1234 = vmatpush1.bf16.msra.mxu0 0
        %1235 = vmatprep.subr.bf16.mxu0 0
        %1236 = vmatpush1.bf16.msra.mxu0 0
        %1237 = vmatprep.mubr.bf16.mxu0 0
        %1238 = vmatmul.mubr.bf16.gmra.mrb[0].mxu0 %v1200
        %v1239 = vpop.f32.mrb[0].mxu0
        %v1240 = vadd.f32 0.0, %v1239
        %v1241 = vpop.f32.mrb[0].mxu0
        %v1242 = vpop.f32.mrb[0].mxu0
        %v1243 = vpop.f32.mrb[0].mxu0
        %1244 = vdwg.mxu0
        %v1245 = vmul.f32 %v1102, %v1052
        %v1246 = vmul.f32 %v1148, %v1053
        %v1247 = vmul.f32 %v1194, %v1054
        %v1248 = vmul.f32 %v1240, %v1055
        %1250 = vrot.lane.b32.xlu0 %v1246, 8
        %v1251 = vpop.permute.xlu0 %1250
        %1254 = vrot.lane.b32.xlu0 %v1247, 16
        %v1255 = vpop.permute.xlu0 %1254
        %1258 = vrot.lane.b32.xlu0 %v1248, 24
        %v1259 = vpop.permute.xlu0 %1258
        %v1261 = vsel %vm831, %v1245, %v1251
        %vm1262 = vcmask 130048
        %v1263 = vsel %vm1262, %v1261, %v1255
        %vm1264 = vcmask 195584
        %v1265 = vsel %vm1264, %v1263, %v1259
        %v1266 = vpack.c.bf16 %v1265, %v1265
        %v1267 = vld [vmem:[#allocation7] sm:$0xf]
        %v1268 = vld [vmem:[#allocation7 + $0x4] sm:$0xf]
        %v1269 = vld [vmem:[#allocation7 + $0x8] sm:$0xf]
        %v1270 = vld [vmem:[#allocation7 + $0xc] sm:$0xf]
        %v1271 = vld [vmem:[#allocation8] sm:$0x1]
        %v1273 = vlaneseq
        %v1274 = vshrl.u32 %v1273, 7
        %v1275 = vsub.s32 0, %v1274
        %v1276 = vrot.slane %v1271, %v1275
        %v1282 = vunpack.c.l.b16 %v1267
        %v1283 = vunpack.c.l.b16 %v1268
        %v1284 = vunpack.c.l.b16 %v1269
        %v1285 = vunpack.c.l.b16 %v1270
        %v1286 = vpack.c.b16 %v1283, %v1282
        %v1287 = vpack.c.b16 %v1285, %v1284
        %v1291 = vsel %vm637, %v1266, 0
        %1293 = vmatprep.subr.bf16.mxu0 0
        %1294 = vmatpush1.bf16.msra.mxu0 %v1286
        %1295 = vmatprep.subr.bf16.mxu0 0
        %1296 = vmatpush1.bf16.msra.mxu0 %v1287
        %1297 = vmatprep.subr.bf16.mxu0 0
        %1298 = vmatpush1.bf16.msra.mxu0 0
        %1299 = vmatprep.subr.bf16.mxu0 0
        %1300 = vmatpush1.bf16.msra.mxu0 0
        %1301 = vmatprep.subr.bf16.mxu0 0
        %1302 = vmatpush1.bf16.msra.mxu0 0
        %1303 = vmatprep.subr.bf16.mxu0 0
        %1304 = vmatpush1.bf16.msra.mxu0 0
        %1305 = vmatprep.subr.bf16.mxu0 0
        %1306 = vmatpush1.bf16.msra.mxu0 0
        %1307 = vmatprep.subr.bf16.mxu0 0
        %1308 = vmatpush1.bf16.msra.mxu0 0
        %1309 = vmatprep.subr.bf16.mxu0 0
        %1310 = vmatpush1.bf16.msra.mxu0 0
        %1311 = vmatprep.subr.bf16.mxu0 0
        %1312 = vmatpush1.bf16.msra.mxu0 0
        %1313 = vmatprep.subr.bf16.mxu0 0
        %1314 = vmatpush1.bf16.msra.mxu0 0
        %1315 = vmatprep.subr.bf16.mxu0 0
        %1316 = vmatpush1.bf16.msra.mxu0 0
        %1317 = vmatprep.subr.bf16.mxu0 0
        %1318 = vmatpush1.bf16.msra.mxu0 0
        %1319 = vmatprep.subr.bf16.mxu0 0
        %1320 = vmatpush1.bf16.msra.mxu0 0
        %1321 = vmatprep.subr.bf16.mxu0 0
        %1322 = vmatpush1.bf16.msra.mxu0 0
        %1323 = vmatprep.subr.bf16.mxu0 0
        %1324 = vmatpush1.bf16.msra.mxu0 0
        %1325 = vmatprep.mubr.bf16.mxu0 0
        %1326 = vmatmul.mubr.bf16.gmra.mrb[0].mxu0 %v1291
        %v1327 = vpop.f32.mrb[0].mxu0
        %v1328 = vadd.f32 %v1276, %v1327
        %v1329 = vpop.f32.mrb[0].mxu0
        %v1330 = vpop.f32.mrb[0].mxu0
        %v1331 = vpop.f32.mrb[0].mxu0
        %1332 = vdwg.mxu0
        %v1333 = vadd.f32 %v612, %v1328
        %v1334 = vld [vmem:[#allocation10] sm:$0x1]
        %v1335 = vld [vmem:[%s10] sm:$0x1]
        %v1336 = vsel %vm637, %v1333, 0.0
        %1337 = vadd.xlane.f32.xlu0 %v1336
        %v1338 = vpop.xlane.xlu0 %1337
        %v1339 = vrcp.pop 32.0
        %v1340 = vmul.f32 %v1338, %v1339
        %v1341 = vsub.f32 %v1333, %v1340
        %v1342 = vmul.f32 %v1341, %v1341
        %v1343 = vsel %vm637, %v1342, 0.0
        %1344 = vadd.xlane.f32.xlu0 %v1343
        %v1345 = vpop.xlane.xlu0 %1344
        %v1346 = vmul.f32 %v1345, %v1339
        %v1347 = vadd.f32 %v1346, 1e-05
        %v1348 = vrsqrt.pop %v1347
        %v1349 = vmul.f32 %v1341, %v1348
        %v1351 = vlaneseq
        %v1352 = vshrl.u32 %v1351, 7
        %v1353 = vsub.s32 0, %v1352
        %v1354 = vrot.slane %v1334, %v1353
        %v1356 = vmul.f32 %v1349, %v1354
        %v1358 = vlaneseq
        %v1359 = vshrl.u32 %v1358, 7
        %v1360 = vsub.s32 0, %v1359
        %v1361 = vrot.slane %v1335, %v1360
        %v1363 = vadd.f32 %v1356, %v1361
        %v1364 = vpack.c.bf16 %v1363, %v1363
        %v1365 = vld [vmem:[%s11] sm:$0xf]
        %v1366 = vld [vmem:[%s11 + $0x4] sm:$0xf]
        %v1367 = vld [vmem:[%s11 + $0x8] sm:$0xf]
        %v1368 = vld [vmem:[%s11 + $0xc] sm:$0xf]
        %v1369 = vld [vmem:[%s12] sm:$0x1]
        %v1371 = vlaneseq
        %v1372 = vshrl.u32 %v1371, 7
        %v1373 = vsub.s32 0, %v1372
        %v1374 = vrot.slane %v1369, %v1373
        %v1380 = vunpack.c.l.b16 %v1365
        %v1381 = vunpack.c.l.b16 %v1366
        %v1382 = vunpack.c.l.b16 %v1367
        %v1383 = vunpack.c.l.b16 %v1368
        %v1384 = vpack.c.b16 %v1381, %v1380
        %v1385 = vpack.c.b16 %v1383, %v1382
        %v1389 = vsel %vm637, %v1364, 0
        %1391 = vmatprep.subr.bf16.mxu0 0
        %1392 = vmatpush1.bf16.msra.mxu0 %v1384
        %1393 = vmatprep.subr.bf16.mxu0 0
        %1394 = vmatpush1.bf16.msra.mxu0 %v1385
        %1395 = vmatprep.subr.bf16.mxu0 0
        %1396 = vmatpush1.bf16.msra.mxu0 0
        %1397 = vmatprep.subr.bf16.mxu0 0
        %1398 = vmatpush1.bf16.msra.mxu0 0
        %1399 = vmatprep.subr.bf16.mxu0 0
        %1400 = vmatpush1.bf16.msra.mxu0 0
        %1401 = vmatprep.subr.bf16.mxu0 0
        %1402 = vmatpush1.bf16.msra.mxu0 0
        %1403 = vmatprep.subr.bf16.mxu0 0
        %1404 = vmatpush1.bf16.msra.mxu0 0
        %1405 = vmatprep.subr.bf16.mxu0 0
        %1406 = vmatpush1.bf16.msra.mxu0 0
        %1407 = vmatprep.subr.bf16.mxu0 0
        %1408 = vmatpush1.bf16.msra.mxu0 0
        %1409 = vmatprep.subr.bf16.mxu0 0
        %1410 = vmatpush1.bf16.msra.mxu0 0
        %1411 = vmatprep.subr.bf16.mxu0 0
        %1412 = vmatpush1.bf16.msra.mxu0 0
        %1413 = vmatprep.subr.bf16.mxu0 0
        %1414 = vmatpush1.bf16.msra.mxu0 0
        %1415 = vmatprep.subr.bf16.mxu0 0
        %1416 = vmatpush1.bf16.msra.mxu0 0
        %1417 = vmatprep.subr.bf16.mxu0 0
        %1418 = vmatpush1.bf16.msra.mxu0 0
        %1419 = vmatprep.subr.bf16.mxu0 0
        %1420 = vmatpush1.bf16.msra.mxu0 0
        %1421 = vmatprep.subr.bf16.mxu0 0
        %1422 = vmatpush1.bf16.msra.mxu0 0
        %1423 = vmatprep.mubr.bf16.mxu0 0
        %1424 = vmatmul.mubr.bf16.gmra.mrb[0].mxu0 %v1389
        %v1425 = vpop.f32.mrb[0].mxu0
        %v1426 = vadd.f32 %v1374, %v1425
        %v1427 = vpop.f32.mrb[0].mxu0
        %v1428 = vpop.f32.mrb[0].mxu0
        %v1429 = vpop.f32.mrb[0].mxu0
        %1430 = vdwg.mxu0
        %v1431 = vmax.f32 %v1426, 0.0
        %v1432 = vpack.c.bf16 %v1431, %v1431
        %v1433 = vld [vmem:[%s13] sm:$0xf]
        %v1434 = vld [vmem:[%s13 + $0x4] sm:$0xf]
        %v1435 = vld [vmem:[%s13 + $0x8] sm:$0xf]
        %v1436 = vld [vmem:[%s13 + $0xc] sm:$0xf]
        %v1437 = vld [vmem:[%s13 + $0x10] sm:$0xf]
        %v1438 = vld [vmem:[%s13 + $0x14] sm:$0xf]
        %v1439 = vld [vmem:[%s13 + $0x18] sm:$0xf]
        %v1440 = vld [vmem:[%s13 + $0x1c] sm:$0xf]
        %v1441 = vld [vmem:[%s14] sm:$0x1]
        %v1443 = vlaneseq
        %v1444 = vshrl.u32 %v1443, 7
        %v1445 = vsub.s32 0, %v1444
        %v1446 = vrot.slane %v1441, %v1445
        %v1456 = vunpack.c.l.b16 %v1433
        %v1457 = vunpack.c.l.b16 %v1434
        %v1458 = vunpack.c.l.b16 %v1435
        %v1459 = vunpack.c.l.b16 %v1436
        %v1460 = vunpack.c.l.b16 %v1437
        %v1461 = vunpack.c.l.b16 %v1438
        %v1462 = vunpack.c.l.b16 %v1439
        %v1463 = vunpack.c.l.b16 %v1440
        %v1464 = vpack.c.b16 %v1457, %v1456
        %v1465 = vpack.c.b16 %v1459, %v1458
        %v1466 = vpack.c.b16 %v1461, %v1460
        %v1467 = vpack.c.b16 %v1463, %v1462
        %vm1472 = vcmask 523264
        %v1474 = vsel %vm1472, %v1432, 0
        %1476 = vmatprep.subr.bf16.mxu0 0
        %1477 = vmatpush1.bf16.msra.mxu0 %v1464
        %1478 = vmatprep.subr.bf16.mxu0 0
        %1479 = vmatpush1.bf16.msra.mxu0 %v1465
        %1480 = vmatprep.subr.bf16.mxu0 0
        %1481 = vmatpush1.bf16.msra.mxu0 %v1466
        %1482 = vmatprep.subr.bf16.mxu0 0
        %1483 = vmatpush1.bf16.msra.mxu0 %v1467
        %1484 = vmatprep.subr.bf16.mxu0 0
        %1485 = vmatpush1.bf16.msra.mxu0 0
        %1486 = vmatprep.subr.bf16.mxu0 0
        %1487 = vmatpush1.bf16.msra.mxu0 0
        %1488 = vmatprep.subr.bf16.mxu0 0
        %1489 = vmatpush1.bf16.msra.mxu0 0
        %1490 = vmatprep.subr.bf16.mxu0 0
        %1491 = vmatpush1.bf16.msra.mxu0 0
        %1492 = vmatprep.subr.bf16.mxu0 0
        %1493 = vmatpush1.bf16.msra.mxu0 0
        %1494 = vmatprep.subr.bf16.mxu0 0
        %1495 = vmatpush1.bf16.msra.mxu0 0
        %1496 = vmatprep.subr.bf16.mxu0 0
        %1497 = vmatpush1.bf16.msra.mxu0 0
        %1498 = vmatprep.subr.bf16.mxu0 0
        %1499 = vmatpush1.bf16.msra.mxu0 0
        %1500 = vmatprep.subr.bf16.mxu0 0
        %1501 = vmatpush1.bf16.msra.mxu0 0
        %1502 = vmatprep.subr.bf16.mxu0 0
        %1503 = vmatpush1.bf16.msra.mxu0 0
        %1504 = vmatprep.subr.bf16.mxu0 0
        %1505 = vmatpush1.bf16.msra.mxu0 0
        %1506 = vmatprep.subr.bf16.mxu0 0
        %1507 = vmatpush1.bf16.msra.mxu0 0
        %1508 = vmatprep.mubr.bf16.mxu0 0
        %1509 = vmatmul.mubr.bf16.gmra.mrb[0].mxu0 %v1474
        %v1510 = vpop.f32.mrb[0].mxu0
        %v1511 = vadd.f32 %v1446, %v1510
        %v1512 = vpop.f32.mrb[0].mxu0
        %v1513 = vpop.f32.mrb[0].mxu0
        %v1514 = vpop.f32.mrb[0].mxu0
        %1515 = vdwg.mxu0
        %v1516 = vadd.f32 %v1363, %v1511
        %v1517 = vld [vmem:[%s15] sm:$0x1]
        %v1518 = vld [vmem:[%s16] sm:$0x1]
        %v1519 = vsel %vm637, %v1516, 0.0
        %1520 = vadd.xlane.f32.xlu0 %v1519
        %v1521 = vpop.xlane.xlu0 %1520
        %v1522 = vmul.f32 %v1521, %v1339
        %v1523 = vsub.f32 %v1516, %v1522
        %v1524 = vmul.f32 %v1523, %v1523
        %v1525 = vsel %vm637, %v1524, 0.0
        %1526 = vadd.xlane.f32.xlu0 %v1525
        %v1527 = vpop.xlane.xlu0 %1526
        %v1528 = vmul.f32 %v1527, %v1339
        %v1529 = vadd.f32 %v1528, 1e-05
        %v1530 = vrsqrt.pop %v1529
        %v1531 = vmul.f32 %v1523, %v1530
        %v1533 = vlaneseq
        %v1534 = vshrl.u32 %v1533, 7
        %v1535 = vsub.s32 0, %v1534
        %v1536 = vrot.slane %v1517, %v1535
        %v1538 = vmul.f32 %v1531, %v1536
        %v1540 = vlaneseq
        %v1541 = vshrl.u32 %v1540, 7
        %v1542 = vsub.s32 0, %v1541
        %v1543 = vrot.slane %v1518, %v1542
        %v1545 = vadd.f32 %v1538, %v1543
        %1546 = vst.msk [vmem:[%s606] sm:$0xff] %vm637, %v1545
        %s1547 = sand.u32 %s404, 1
        %s1548 = scalar_lea.sflag [#allocation4], %s1547
        %s1549 = sand.u32 %s404, 1
        %s1550 = smul.addr %s1549, 8
        %s1551 = scalar_lea.vmem [#allocation11], %s1550
        // Predicated region
        $region109: #{tpu_custom_call.1} parent=87 // pred_check
          %p1552 = pneg %p414
        $region110: #{tpu_custom_call.1} parent=87 // pred_check_branch
          %1554 = sbr.rel (%p1552) target = $region112
        $region111: #{tpu_custom_call.1} parent=87 // pred_region
          %s1556 = ssub.s32 128, 128
          %1557 = vsyncadd %s1548, %s1556
          %s1558 = smul.addr %s34, 128
          %s1559 = scalar_lea.hbm %s17, %s1558
          %s1561 = sshll.u32 %s1551, 4
          %s1562 = int_to_ptr.vmem [resolvable:$true] %s1561
          %1564 = dma.vmem_to_hbm [thread:$0]  %s1562, 128, %s1559, %s1548
        $region112: #{tpu_custom_call.1} parent=87 // pred_fallthru
          _
      $region88: #{tpu_custom_call.1} parent=5 // pred_fallthru
        _
      %p1565 = scmp.le.s32.totalorder 2, %s29
      // Predicated region
      $region113: #{tpu_custom_call.1} parent=5 // pred_check
        %p1566 = pneg %p1565
      $region114: #{tpu_custom_call.1} parent=5 // pred_check_branch
        %1568 = sbr.rel (%p1566) target = $region116
      $region115: #{tpu_custom_call.1} parent=5 // pred_region
        %s1569 = ssub.s32 %s29, 2
        // Predicated region
        $region117: #{tpu_custom_call.1} parent=115 // pred_check
          %p1570 = pneg %p420
        $region118: #{tpu_custom_call.1} parent=115 // pred_check_branch
          %1572 = sbr.rel (%p1570) target = $region120
        $region119: #{tpu_custom_call.1} parent=115 // pred_region
          %s1573 = sand.u32 %s405, 1
          %s1574 = scalar_lea.sflag [#allocation4], %s1573
          %s1575 = sand.u32 %s405, 1
          %s1576 = smul.addr %s1575, 8
          %s1577 = scalar_lea.vmem [#allocation11], %s1576
          %1578 = dma.done %s1574, 128
        $region120: #{tpu_custom_call.1} parent=115 // pred_fallthru
          _
      $region116: #{tpu_custom_call.1} parent=5 // pred_fallthru
        _
    $region6: #{tpu_custom_call.1} parent=1 // loop_footer
      %s33 = sadd.s32 1, %s29
    $region7: #{tpu_custom_call.1} parent=1 // loop_footer_branch
      %28 = sbr.rel target = $region3
    $region8: #{tpu_custom_call.1} parent=1 // loop_exit
      _
    %1579 = vsyncpa [#allocation3], 1
    %s1580 = scalar_lea.sflag [#allocation3], 1
    %1581 = vsyncpa %s1580, 1
    %1582 = vsyncpa [#allocation6], 1
    %1583 = vsyncpa [#allocation9], 1
    %1584 = vsyncpa [#allocation4], 1
    %s1585 = scalar_lea.sflag [#allocation4], 1
    %1586 = vsyncpa %s1585, 1

// kernel: tpu_custom_call.1
$region0: #{tpu_custom_call.1}
  #allocation0 [shape = 'u32[]', space=smem, size = 0x4, offset = 0x4, fixed_abs, tag = 'smem constant byte address 0x4 - core index']
  #allocation1 [shape = 'u32[144,128]{1,0:T(1,128)}', space=vmem, size = 0x12000, scoped, tag = 'internal scratch']
  %s0 = inlined_call_operand.vmem [shape: f32[2,8,32], index: 0, kind: input, shape index: {}]
  %s1 = inlined_call_operand.vmem [shape: bf16[32,32], index: 1, kind: input, shape index: {}]
  %s2 = inlined_call_operand.vmem [shape: bf16[32,32], index: 2, kind: input, shape index: {}]
  %s3 = inlined_call_operand.hbm [shape: bf16[32,32], index: 3, kind: input, shape index: {}]
  %s4 = inlined_call_operand.vmem [shape: f32[1,32], index: 4, kind: input, shape index: {}]
  %s5 = inlined_call_operand.vmem [shape: f32[1,32], index: 5, kind: input, shape index: {}]
  %s6 = inlined_call_operand.hbm [shape: f32[1,32], index: 6, kind: input, shape index: {}]
  %s7 = inlined_call_operand.hbm [shape: bf16[32,32], index: 7, kind: input, shape index: {}]
  %s8 = inlined_call_operand.hbm [shape: f32[1,32], index: 8, kind: input, shape index: {}]
  %s9 = inlined_call_operand.hbm [shape: f32[1,32], index: 9, kind: input, shape index: {}]
  %s10 = inlined_call_operand.vmem [shape: f32[1,32], index: 10, kind: input, shape index: {}]
  %s11 = inlined_call_operand.vmem [shape: bf16[32,64], index: 11, kind: input, shape index: {}]
  %s12 = inlined_call_operand.vmem [shape: f32[1,64], index: 12, kind: input, shape index: {}]
  %s13 = inlined_call_operand.vmem [shape: bf16[64,32], index: 13, kind: input, shape index: {}]
  %s14 = inlined_call_operand.vmem [shape: f32[1,32], index: 14, kind: input, shape index: {}]
  %s15 = inlined_call_operand.vmem [shape: f32[1,32], index: 15, kind: input, shape index: {}]
  %s16 = inlined_call_operand.vmem [shape: f32[1,32], index: 16, kind: input, shape index: {}]
  %s17 = inlined_call_operand.hbm [shape: f32[2,8,32], index: 17, kind: output, shape index: {}]
  %s18 = sld [smem:[#allocation0]]
  $region121: #{tpu_custom_call.1} parent=0
    _
  %s20 = ssub.s32 1, %s18
  %s21 = scalar_select 0, %s20, %s18
  $region1: #{tpu_custom_call.1} parent=0
    #allocation2 [shape = 'u8[8192]{0}', space=vmem, size = 0x2000, scoped, tag = 'input window, operand 3, single buffered']
    #allocation3 [shape = 's32[2]{0}', space=sflag, size = 0x8, scoped, tag = 'scoped memory for tpu_custom_call.1']
    #allocation4 [shape = 's32[2]{0}', space=sflag, size = 0x8, scoped, tag = 'scoped memory for tpu_custom_call.1']
    #allocation5 [shape = 'u8[512]{0}', space=vmem, size = 0x400, scoped, tag = 'input window, operand 6, single buffered']
    #allocation6 [shape = 's32[1]{0}', space=sflag, size = 0x4, scoped, tag = 'scoped memory for tpu_custom_call.1']
    #allocation7 [shape = 'u8[8192]{0}', space=vmem, size = 0x2000, scoped, tag = 'input window, operand 7, single buffered']
    #allocation8 [shape = 'u8[512]{0}', space=vmem, size = 0x400, scoped, tag = 'input window, operand 8, single buffered']
    #allocation9 [shape = 's32[1]{0}', space=sflag, size = 0x4, scoped, tag = 'scoped memory for tpu_custom_call.1']
    #allocation10 [shape = 'u8[512]{0}', space=vmem, size = 0x400, scoped, tag = 'input window, operand 9, single buffered']
    #allocation11 [shape = 'u8[8192]{0}', space=vmem, size = 0x2000, scoped, tag = 'output window, operand 0']
    %22 = vsyncpa [#allocation3], 0
    %23 = vsyncpa [#allocation6], 0
    %24 = vsyncpa [#allocation9], 0
    %25 = vsyncpa [#allocation4], 0
    %s26 = scalar_lea.sflag [#allocation4], 1
    %27 = vsyncpa %s26, 0
    loop: start=0, step=1, limit=4
    $region2: #{tpu_custom_call.1} parent=1 // loop_pre_header
      _
    $region3: #{tpu_custom_call.1} parent=1 // loop_header
      %s29 = sphi 0, %s33
      %p30 = scmp.ge.s32.totalorder %s29, 4
      %s39 = sphi 0, %s41
      %s42 = sphi 0, %s39
      %s43 = sphi 0, %s42
      %s59 = sphi 0, %s43
      %s63 = sphi 0, %s63
      %s65 = sphi 0, %s63
      %s66 = sphi 0, %s65
      %s80 = sphi 0, %s66
      %s84 = sphi 0, %s84
      %s86 = sphi 0, %s84
      %s87 = sphi 0, %s86
      %s101 = sphi 0, %s87
      %s105 = sphi 0, %s105
      %s107 = sphi 0, %s105
      %s108 = sphi 0, %s107
      %s122 = sphi 0, %s108
      %s126 = sphi 0, %s126
      %s128 = sphi 0, %s126
      %s129 = sphi 0, %s128
      %s143 = sphi 0, %s129
      %s147 = sphi 0, %s147
      %s149 = sphi 0, %s147
      %s150 = sphi 0, %s149
      %s164 = sphi 0, %s150
      %s168 = sphi 0, %s168
      %s170 = sphi 0, %s168
      %s171 = sphi 0, %s170
      %s185 = sphi 0, %s171
      %s189 = sphi 0, %s189
      %s191 = sphi 0, %s189
      %s192 = sphi 0, %s191
      %s206 = sphi 0, %s192
      %s210 = sphi 0, %s210
      %s212 = sphi 0, %s210
      %s213 = sphi 0, %s212
      %s227 = sphi 0, %s213
      %s231 = sphi 0, %s231
      %s233 = sphi 0, %s231
      %s234 = sphi 0, %s233
      %s248 = sphi 0, %s234
      %s252 = sphi 0, %s252
      %s254 = sphi 0, %s252
      %s255 = sphi 0, %s254
      %s269 = sphi 0, %s255
      %s273 = sphi 0, %s273
      %s275 = sphi 0, %s273
      %s276 = sphi 0, %s275
      %s290 = sphi 0, %s276
      %s294 = sphi 0, %s294
      %s296 = sphi 0, %s294
      %s297 = sphi 0, %s296
      %s311 = sphi 0, %s297
      %s315 = sphi 0, %s315
      %s317 = sphi 0, %s315
      %s318 = sphi 0, %s317
      %s332 = sphi 0, %s318
      %s336 = sphi 0, %s336
      %s338 = sphi 0, %s336
      %s339 = sphi 0, %s338
      %s353 = sphi 0, %s339
      %s357 = sphi 0, %s357
      %s359 = sphi 0, %s357
      %s360 = sphi 0, %s359
      %s374 = sphi 0, %s360
      %s378 = sphi 0, %s378
      %s380 = sphi 0, %s378
      %s381 = sphi 0, %s380
      %s395 = sphi 0, %s381
      %s401 = sphi 0, %s403
      %s404 = sphi 0, %s401
      %s405 = sphi 0, %s404
      %s421 = sphi 0, %s405
    $region4: #{tpu_custom_call.1} parent=1 // loop_header_branch
      %32 = sbr.rel (%p30) target = $region8
    $region5: #{tpu_custom_call.1} parent=1 // loop_body
      %s34 = ssub.s32 %s29, 1
      %s35 = ssub.s32 %s29, 2
      %s36 = sadd.s32 %s29, 1
      %s37 = ssub.s32 %s29, %s36
      %p38 = scmp.eq.s32.totalorder %s37, 0
      %s40 = sadd.s32 %s39, 1
      %s41 = scalar_select %p38, %s39, %s40
      %p44 = pneg %p38
      %p45 = scmp.eq.s32.totalorder %s29, 1
      %p46 = por %p44, %p45
      %p47 = scmp.ne.s32.totalorder %s39, %s42
      %p48 = scmp.eq.s32.totalorder %s29, 0
      %p49 = por %p47, %p48
      %p50 = scmp.ne.s32.totalorder %s39, %s42
      %p51 = scmp.eq.s32.totalorder %s34, 1
      %p52 = por %p50, %p51
      %p53 = scmp.ne.s32.totalorder %s42, %s43
      %p54 = scmp.eq.s32.totalorder %s34, 0
      %p55 = por %p53, %p54
      %p56 = scmp.ne.s32.totalorder %s42, %s43
      %p57 = scmp.eq.s32.totalorder %s35, 1
      %p58 = por %p56, %p57
      %p60 = scmp.ne.s32.totalorder %s43, %s59
      %p61 = scmp.eq.s32.totalorder %s35, 0
      %p62 = por %p60, %p61
      %s64 = sadd.s32 %s63, 1
      %p67 = scmp.eq.s32.totalorder %s29, 1
      %p68 = scmp.ne.s32.totalorder %s63, %s65
      %p69 = scmp.eq.s32.totalorder %s29, 0
      %p70 = por %p68, %p69
      %p71 = scmp.ne.s32.totalorder %s63, %s65
      %p72 = scmp.eq.s32.totalorder %s34, 1
      %p73 = por %p71, %p72
      %p74 = scmp.ne.s32.totalorder %s65, %s66
      %p75 = scmp.eq.s32.totalorder %s34, 0
      %p76 = por %p74, %p75
      %p77 = scmp.ne.s32.totalorder %s65, %s66
      %p78 = scmp.eq.s32.totalorder %s35, 1
      %p79 = por %p77, %p78
      %p81 = scmp.ne.s32.totalorder %s66, %s80
      %p82 = scmp.eq.s32.totalorder %s35, 0
      %p83 = por %p81, %p82
      %s85 = sadd.s32 %s84, 1
      %p88 = scmp.eq.s32.totalorder %s29, 1
      %p89 = scmp.ne.s32.totalorder %s84, %s86
      %p90 = scmp.eq.s32.totalorder %s29, 0
      %p91 = por %p89, %p90
      %p92 = scmp.ne.s32.totalorder %s84, %s86
      %p93 = scmp.eq.s32.totalorder %s34, 1
      %p94 = por %p92, %p93
      %p95 = scmp.ne.s32.totalorder %s86, %s87
      %p96 = scmp.eq.s32.totalorder %s34, 0
      %p97 = por %p95, %p96
      %p98 = scmp.ne.s32.totalorder %s86, %s87
      %p99 = scmp.eq.s32.totalorder %s35, 1
      %p100 = por %p98, %p99
      %p102 = scmp.ne.s32.totalorder %s87, %s101
      %p103 = scmp.eq.s32.totalorder %s35, 0
      %p104 = por %p102, %p103
      %s106 = sadd.s32 %s105, 1
      %p109 = scmp.eq.s32.totalorder %s29, 1
      %p110 = scmp.ne.s32.totalorder %s105, %s107
      %p111 = scmp.eq.s32.totalorder %s29, 0
      %p112 = por %p110, %p111
      %p113 = scmp.ne.s32.totalorder %s105, %s107
      %p114 = scmp.eq.s32.totalorder %s34, 1
      %p115 = por %p113, %p114
      %p116 = scmp.ne.s32.totalorder %s107, %s108
      %p117 = scmp.eq.s32.totalorder %s34, 0
      %p118 = por %p116, %p117
      %p119 = scmp.ne.s32.totalorder %s107, %s108
      %p120 = scmp.eq.s32.totalorder %s35, 1
      %p121 = por %p119, %p120
      %p123 = scmp.ne.s32.totalorder %s108, %s122
      %p124 = scmp.eq.s32.totalorder %s35, 0
      %p125 = por %p123, %p124
      %s127 = sadd.s32 %s126, 1
      %p130 = scmp.eq.s32.totalorder %s29, 1
      %p131 = scmp.ne.s32.totalorder %s126, %s128
      %p132 = scmp.eq.s32.totalorder %s29, 0
      %p133 = por %p131, %p132
      %p134 = scmp.ne.s32.totalorder %s126, %s128
      %p135 = scmp.eq.s32.totalorder %s34, 1
      %p136 = por %p134, %p135
      %p137 = scmp.ne.s32.totalorder %s128, %s129
      %p138 = scmp.eq.s32.totalorder %s34, 0
      %p139 = por %p137, %p138
      %p140 = scmp.ne.s32.totalorder %s128, %s129
      %p141 = scmp.eq.s32.totalorder %s35, 1
      %p142 = por %p140, %p141
      %p144 = scmp.ne.s32.totalorder %s129, %s143
      %p145 = scmp.eq.s32.totalorder %s35, 0
      %p146 = por %p144, %p145
      %s148 = sadd.s32 %s147, 1
      %p151 = scmp.eq.s32.totalorder %s29, 1
      %p152 = scmp.ne.s32.totalorder %s147, %s149
      %p153 = scmp.eq.s32.totalorder %s29, 0
      %p154 = por %p152, %p153
      %p155 = scmp.ne.s32.totalorder %s147, %s149
      %p156 = scmp.eq.s32.totalorder %s34, 1
      %p157 = por %p155, %p156
      %p158 = scmp.ne.s32.totalorder %s149, %s150
      %p159 = scmp.eq.s32.totalorder %s34, 0
      %p160 = por %p158, %p159
      %p161 = scmp.ne.s32.totalorder %s149, %s150
      %p162 = scmp.eq.s32.totalorder %s35, 1
      %p163 = por %p161, %p162
      %p165 = scmp.ne.s32.totalorder %s150, %s164
      %p166 = scmp.eq.s32.totalorder %s35, 0
      %p167 = por %p165, %p166
      %s169 = sadd.s32 %s168, 1
      %p172 = scmp.eq.s32.totalorder %s29, 1
      %p173 = scmp.ne.s32.totalorder %s168, %s170
      %p174 = scmp.eq.s32.totalorder %s29, 0
      %p175 = por %p173, %p174
      %p176 = scmp.ne.s32.totalorder %s168, %s170
      %p177 = scmp.eq.s32.totalorder %s34, 1
      %p178 = por %p176, %p177
      %p179 = scmp.ne.s32.totalorder %s170, %s171
      %p180 = scmp.eq.s32.totalorder %s34, 0
      %p181 = por %p179, %p180
      %p182 = scmp.ne.s32.totalorder %s170, %s171
      %p183 = scmp.eq.s32.totalorder %s35, 1
      %p184 = por %p182, %p183
      %p186 = scmp.ne.s32.totalorder %s171, %s185
      %p187 = scmp.eq.s32.totalorder %s35, 0
      %p188 = por %p186, %p187
      %s190 = sadd.s32 %s189, 1
      %p193 = scmp.eq.s32.totalorder %s29, 1
      %p194 = scmp.ne.s32.totalorder %s189, %s191
      %p195 = scmp.eq.s32.totalorder %s29, 0
      %p196 = por %p194, %p195
      %p197 = scmp.ne.s32.totalorder %s189, %s191
      %p198 = scmp.eq.s32.totalorder %s34, 1
      %p199 = por %p197, %p198
      %p200 = scmp.ne.s32.totalorder %s191, %s192
      %p201 = scmp.eq.s32.totalorder %s34, 0
      %p202 = por %p200, %p201
      %p203 = scmp.ne.s32.totalorder %s191, %s192
      %p204 = scmp.eq.s32.totalorder %s35, 1
      %p205 = por %p203, %p204
      %p207 = scmp.ne.s32.totalorder %s192, %s206
      %p208 = scmp.eq.s32.totalorder %s35, 0
      %p209 = por %p207, %p208
      %s211 = sadd.s32 %s210, 1
      %p214 = scmp.eq.s32.totalorder %s29, 1
      %p215 = scmp.ne.s32.totalorder %s210, %s212
      %p216 = scmp.eq.s32.totalorder %s29, 0
      %p217 = por %p215, %p216
      %p218 = scmp.ne.s32.totalorder %s210, %s212
      %p219 = scmp.eq.s32.totalorder %s34, 1
      %p220 = por %p218, %p219
      %p221 = scmp.ne.s32.totalorder %s212, %s213
      %p222 = scmp.eq.s32.totalorder %s34, 0
      %p223 = por %p221, %p222
      %p224 = scmp.ne.s32.totalorder %s212, %s213
      %p225 = scmp.eq.s32.totalorder %s35, 1
      %p226 = por %p224, %p225
      %p228 = scmp.ne.s32.totalorder %s213, %s227
      %p229 = scmp.eq.s32.totalorder %s35, 0
      %p230 = por %p228, %p229
      %s232 = sadd.s32 %s231, 1
      %p235 = scmp.eq.s32.totalorder %s29, 1
      %p236 = scmp.ne.s32.totalorder %s231, %s233
      %p237 = scmp.eq.s32.totalorder %s29, 0
      %p238 = por %p236, %p237
      %p239 = scmp.ne.s32.totalorder %s231, %s233
      %p240 = scmp.eq.s32.totalorder %s34, 1
      %p241 = por %p239, %p240
      %p242 = scmp.ne.s32.totalorder %s233, %s234
      %p243 = scmp.eq.s32.totalorder %s34, 0
      %p244 = por %p242, %p243
      %p245 = scmp.ne.s32.totalorder %s233, %s234
      %p246 = scmp.eq.s32.totalorder %s35, 1
      %p247 = por %p245, %p246
      %p249 = scmp.ne.s32.totalorder %s234, %s248
      %p250 = scmp.eq.s32.totalorder %s35, 0
      %p251 = por %p249, %p250
      %s253 = sadd.s32 %s252, 1
      %p256 = scmp.eq.s32.totalorder %s29, 1
      %p257 = scmp.ne.s32.totalorder %s252, %s254
      %p258 = scmp.eq.s32.totalorder %s29, 0
      %p259 = por %p257, %p258
      %p260 = scmp.ne.s32.totalorder %s252, %s254
      %p261 = scmp.eq.s32.totalorder %s34, 1
      %p262 = por %p260, %p261
      %p263 = scmp.ne.s32.totalorder %s254, %s255
      %p264 = scmp.eq.s32.totalorder %s34, 0
      %p265 = por %p263, %p264
      %p266 = scmp.ne.s32.totalorder %s254, %s255
      %p267 = scmp.eq.s32.totalorder %s35, 1
      %p268 = por %p266, %p267
      %p270 = scmp.ne.s32.totalorder %s255, %s269
      %p271 = scmp.eq.s32.totalorder %s35, 0
      %p272 = por %p270, %p271
      %s274 = sadd.s32 %s273, 1
      %p277 = scmp.eq.s32.totalorder %s29, 1
      %p278 = scmp.ne.s32.totalorder %s273, %s275
      %p279 = scmp.eq.s32.totalorder %s29, 0
      %p280 = por %p278, %p279
      %p281 = scmp.ne.s32.totalorder %s273, %s275
      %p282 = scmp.eq.s32.totalorder %s34, 1
      %p283 = por %p281, %p282
      %p284 = scmp.ne.s32.totalorder %s275, %s276
      %p285 = scmp.eq.s32.totalorder %s34, 0
      %p286 = por %p284, %p285
      %p287 = scmp.ne.s32.totalorder %s275, %s276
      %p288 = scmp.eq.s32.totalorder %s35, 1
      %p289 = por %p287, %p288
      %p291 = scmp.ne.s32.totalorder %s276, %s290
      %p292 = scmp.eq.s32.totalorder %s35, 0
      %p293 = por %p291, %p292
      %s295 = sadd.s32 %s294, 1
      %p298 = scmp.eq.s32.totalorder %s29, 1
      %p299 = scmp.ne.s32.totalorder %s294, %s296
      %p300 = scmp.eq.s32.totalorder %s29, 0
      %p301 = por %p299, %p300
      %p302 = scmp.ne.s32.totalorder %s294, %s296
      %p303 = scmp.eq.s32.totalorder %s34, 1
      %p304 = por %p302, %p303
      %p305 = scmp.ne.s32.totalorder %s296, %s297
      %p306 = scmp.eq.s32.totalorder %s34, 0
      %p307 = por %p305, %p306
      %p308 = scmp.ne.s32.totalorder %s296, %s297
      %p309 = scmp.eq.s32.totalorder %s35, 1
      %p310 = por %p308, %p309
      %p312 = scmp.ne.s32.totalorder %s297, %s311
      %p313 = scmp.eq.s32.totalorder %s35, 0
      %p314 = por %p312, %p313
      %s316 = sadd.s32 %s315, 1
      %p319 = scmp.eq.s32.totalorder %s29, 1
      %p320 = scmp.ne.s32.totalorder %s315, %s317
      %p321 = scmp.eq.s32.totalorder %s29, 0
      %p322 = por %p320, %p321
      %p323 = scmp.ne.s32.totalorder %s315, %s317
      %p324 = scmp.eq.s32.totalorder %s34, 1
      %p325 = por %p323, %p324
      %p326 = scmp.ne.s32.totalorder %s317, %s318
      %p327 = scmp.eq.s32.totalorder %s34, 0
      %p328 = por %p326, %p327
      %p329 = scmp.ne.s32.totalorder %s317, %s318
      %p330 = scmp.eq.s32.totalorder %s35, 1
      %p331 = por %p329, %p330
      %p333 = scmp.ne.s32.totalorder %s318, %s332
      %p334 = scmp.eq.s32.totalorder %s35, 0
      %p335 = por %p333, %p334
      %s337 = sadd.s32 %s336, 1
      %p340 = scmp.eq.s32.totalorder %s29, 1
      %p341 = scmp.ne.s32.totalorder %s336, %s338
      %p342 = scmp.eq.s32.totalorder %s29, 0
      %p343 = por %p341, %p342
      %p344 = scmp.ne.s32.totalorder %s336, %s338
      %p345 = scmp.eq.s32.totalorder %s34, 1
      %p346 = por %p344, %p345
      %p347 = scmp.ne.s32.totalorder %s338, %s339
      %p348 = scmp.eq.s32.totalorder %s34, 0
      %p349 = por %p347, %p348
      %p350 = scmp.ne.s32.totalorder %s338, %s339
      %p351 = scmp.eq.s32.totalorder %s35, 1
      %p352 = por %p350, %p351
      %p354 = scmp.ne.s32.totalorder %s339, %s353
      %p355 = scmp.eq.s32.totalorder %s35, 0
      %p356 = por %p354, %p355
      %s358 = sadd.s32 %s357, 1
      %p361 = scmp.eq.s32.totalorder %s29, 1
      %p362 = scmp.ne.s32.totalorder %s357, %s359
      %p363 = scmp.eq.s32.totalorder %s29, 0
      %p364 = por %p362, %p363
      %p365 = scmp.ne.s32.totalorder %s357, %s359
      %p366 = scmp.eq.s32.totalorder %s34, 1
      %p367 = por %p365, %p366
      %p368 = scmp.ne.s32.totalorder %s359, %s360
      %p369 = scmp.eq.s32.totalorder %s34, 0
      %p370 = por %p368, %p369
      %p371 = scmp.ne.s32.totalorder %s359, %s360
      %p372 = scmp.eq.s32.totalorder %s35, 1
      %p373 = por %p371, %p372
      %p375 = scmp.ne.s32.totalorder %s360, %s374
      %p376 = scmp.eq.s32.totalorder %s35, 0
      %p377 = por %p375, %p376
      %s379 = sadd.s32 %s378, 1
      %p382 = scmp.eq.s32.totalorder %s29, 1
      %p383 = scmp.ne.s32.totalorder %s378, %s380
      %p384 = scmp.eq.s32.totalorder %s29, 0
      %p385 = por %p383, %p384
      %p386 = scmp.ne.s32.totalorder %s378, %s380
      %p387 = scmp.eq.s32.totalorder %s34, 1
      %p388 = por %p386, %p387
      %p389 = scmp.ne.s32.totalorder %s380, %s381
      %p390 = scmp.eq.s32.totalorder %s34, 0
      %p391 = por %p389, %p390
      %p392 = scmp.ne.s32.totalorder %s380, %s381
      %p393 = scmp.eq.s32.totalorder %s35, 1
      %p394 = por %p392, %p393
      %p396 = scmp.ne.s32.totalorder %s381, %s395
      %p397 = scmp.eq.s32.totalorder %s35, 0
      %p398 = por %p396, %p397
      %s399 = ssub.s32 %s29, %s36
      %p400 = scmp.eq.s32.totalorder %s399, 0
      %s402 = sadd.s32 %s401, 1
      %s403 = scalar_select %p400, %s401, %s402
      %p406 = pneg %p400
      %p407 = scmp.eq.s32.totalorder %s29, 1
      %p408 = por %p406, %p407
      %p409 = scmp.ne.s32.totalorder %s401, %s404
      %p410 = scmp.eq.s32.totalorder %s29, 0
      %p411 = por %p409, %p410
      %p412 = scmp.ne.s32.totalorder %s401, %s404
      %p413 = scmp.eq.s32.totalorder %s34, 1
      %p414 = por %p412, %p413
      %p415 = scmp.ne.s32.totalorder %s404, %s405
      %p416 = scmp.eq.s32.totalorder %s34, 0
      %p417 = por %p415, %p416
      %p418 = scmp.ne.s32.totalorder %s404, %s405
      %p419 = scmp.eq.s32.totalorder %s35, 1
      %p420 = por %p418, %p419
      %p422 = scmp.ne.s32.totalorder %s405, %s421
      %p423 = scmp.eq.s32.totalorder %s35, 0
      %p424 = por %p422, %p423
      %p425 = scmp.le.s32.totalorder 1, %s29
      %p426 = scmp.lt.s32.totalorder %s29, 3
      %p427 = pnand %p425, %p426
      %p428 = pneg %p427
      // Predicated region
      $region9: #{tpu_custom_call.1} parent=5 // pred_check
        _
      $region10: #{tpu_custom_call.1} parent=5 // pred_check_branch
        %430 = sbr.rel (%p427) target = $region12
      $region11: #{tpu_custom_call.1} parent=5 // pred_region
        %s431 = ssub.s32 %s29, 1
        // Predicated region
        $region13: #{tpu_custom_call.1} parent=11 // pred_check
          %p432 = pneg %p76
        $region14: #{tpu_custom_call.1} parent=11 // pred_check_branch
          %434 = sbr.rel (%p432) target = $region16
        $region15: #{tpu_custom_call.1} parent=11 // pred_region
          _
        $region16: #{tpu_custom_call.1} parent=11 // pred_fallthru
          _
        // Predicated region
        $region17: #{tpu_custom_call.1} parent=11 // pred_check
          %p435 = pneg %p97
        $region18: #{tpu_custom_call.1} parent=11 // pred_check_branch
          %437 = sbr.rel (%p435) target = $region20
        $region19: #{tpu_custom_call.1} parent=11 // pred_region
          _
        $region20: #{tpu_custom_call.1} parent=11 // pred_fallthru
          _
        // Predicated region
        $region21: #{tpu_custom_call.1} parent=11 // pred_check
          %p438 = pneg %p118
        $region22: #{tpu_custom_call.1} parent=11 // pred_check_branch
          %440 = sbr.rel (%p438) target = $region24
        $region23: #{tpu_custom_call.1} parent=11 // pred_region
          %s442 = ssub.s32 256, 256
          %443 = vsyncadd [#allocation3], %s442
          %s444 = sshll.u32 [#allocation2], 4
          %s445 = int_to_ptr.vmem [resolvable:$true] %s444
          %450 = dma.hbm_to_vmem [thread:$0]  %s3, 256, %s445, [#allocation3], 64, 64, 4
        $region24: #{tpu_custom_call.1} parent=11 // pred_fallthru
          _
        // Predicated region
        $region25: #{tpu_custom_call.1} parent=11 // pred_check
          %p451 = pneg %p139
        $region26: #{tpu_custom_call.1} parent=11 // pred_check_branch
          %453 = sbr.rel (%p451) target = $region28
        $region27: #{tpu_custom_call.1} parent=11 // pred_region
          _
        $region28: #{tpu_custom_call.1} parent=11 // pred_fallthru
          _
        // Predicated region
        $region29: #{tpu_custom_call.1} parent=11 // pred_check
          %p454 = pneg %p160
        $region30: #{tpu_custom_call.1} parent=11 // pred_check_branch
          %456 = sbr.rel (%p454) target = $region32
        $region31: #{tpu_custom_call.1} parent=11 // pred_region
          _
        $region32: #{tpu_custom_call.1} parent=11 // pred_fallthru
          _
        // Predicated region
        $region33: #{tpu_custom_call.1} parent=11 // pred_check
          %p457 = pneg %p181
        $region34: #{tpu_custom_call.1} parent=11 // pred_check_branch
          %459 = sbr.rel (%p457) target = $region36
        $region35: #{tpu_custom_call.1} parent=11 // pred_region
          %s461 = ssub.s32 16, 16
          %462 = vsyncadd [#allocation6], %s461
          %s464 = sshll.u32 [#allocation5], 4
          %s465 = int_to_ptr.vmem [resolvable:$true] %s464
          %467 = dma.hbm_to_vmem [thread:$0]  %s6, 16, %s465, [#allocation6]
        $region36: #{tpu_custom_call.1} parent=11 // pred_fallthru
          _
        // Predicated region
        $region37: #{tpu_custom_call.1} parent=11 // pred_check
          %p468 = pneg %p202
        $region38: #{tpu_custom_call.1} parent=11 // pred_check_branch
          %470 = sbr.rel (%p468) target = $region40
        $region39: #{tpu_custom_call.1} parent=11 // pred_region
          %s472 = ssub.s32 256, 256
          %473 = vsyncadd [#allocation6], %s472
          %s474 = sshll.u32 [#allocation7], 4
          %s475 = int_to_ptr.vmem [resolvable:$true] %s474
          %480 = dma.hbm_to_vmem [thread:$0]  %s7, 256, %s475, [#allocation6], 64, 64, 4
        $region40: #{tpu_custom_call.1} parent=11 // pred_fallthru
          _
        // Predicated region
        $region41: #{tpu_custom_call.1} parent=11 // pred_check
          %p481 = pneg %p223
        $region42: #{tpu_custom_call.1} parent=11 // pred_check_branch
          %483 = sbr.rel (%p481) target = $region44
        $region43: #{tpu_custom_call.1} parent=11 // pred_region
          %s485 = ssub.s32 16, 16
          %486 = vsyncadd [#allocation9], %s485
          %s488 = sshll.u32 [#allocation8], 4
          %s489 = int_to_ptr.vmem [resolvable:$true] %s488
          %491 = dma.hbm_to_vmem [thread:$0]  %s8, 16, %s489, [#allocation9]
        $region44: #{tpu_custom_call.1} parent=11 // pred_fallthru
          _
        // Predicated region
        $region45: #{tpu_custom_call.1} parent=11 // pred_check
          %p492 = pneg %p244
        $region46: #{tpu_custom_call.1} parent=11 // pred_check_branch
          %494 = sbr.rel (%p492) target = $region48
        $region47: #{tpu_custom_call.1} parent=11 // pred_region
          %s496 = ssub.s32 16, 16
          %497 = vsyncadd [#allocation9], %s496
          %s499 = sshll.u32 [#allocation10], 4
          %s500 = int_to_ptr.vmem [resolvable:$true] %s499
          %502 = dma.hbm_to_vmem [thread:$0]  %s9, 16, %s500, [#allocation9]
        $region48: #{tpu_custom_call.1} parent=11 // pred_fallthru
          _
        // Predicated region
        $region49: #{tpu_custom_call.1} parent=11 // pred_check
          %p503 = pneg %p265
        $region50: #{tpu_custom_call.1} parent=11 // pred_check_branch
          %505 = sbr.rel (%p503) target = $region52
        $region51: #{tpu_custom_call.1} parent=11 // pred_region
          _
        $region52: #{tpu_custom_call.1} parent=11 // pred_fallthru
          _
        // Predicated region
        $region53: #{tpu_custom_call.1} parent=11 // pred_check
          %p506 = pneg %p286
        $region54: #{tpu_custom_call.1} parent=11 // pred_check_branch
          %508 = sbr.rel (%p506) target = $region56
        $region55: #{tpu_custom_call.1} parent=11 // pred_region
          _
        $region56: #{tpu_custom_call.1} parent=11 // pred_fallthru
          _
        // Predicated region
        $region57: #{tpu_custom_call.1} parent=11 // pred_check
          %p509 = pneg %p307
        $region58: #{tpu_custom_call.1} parent=11 // pred_check_branch
          %511 = sbr.rel (%p509) target = $region60
        $region59: #{tpu_custom_call.1} parent=11 // pred_region
          _
        $region60: #{tpu_custom_call.1} parent=11 // pred_fallthru
          _
        // Predicated region
        $region61: #{tpu_custom_call.1} parent=11 // pred_check
          %p512 = pneg %p328
        $region62: #{tpu_custom_call.1} parent=11 // pred_check_branch
          %514 = sbr.rel (%p512) target = $region64
        $region63: #{tpu_custom_call.1} parent=11 // pred_region
          _
        $region64: #{tpu_custom_call.1} parent=11 // pred_fallthru
          _
        // Predicated region
        $region65: #{tpu_custom_call.1} parent=11 // pred_check
          %p515 = pneg %p349
        $region66: #{tpu_custom_call.1} parent=11 // pred_check_branch
          %517 = sbr.rel (%p515) target = $region68
        $region67: #{tpu_custom_call.1} parent=11 // pred_region
          _
        $region68: #{tpu_custom_call.1} parent=11 // pred_fallthru
          _
        // Predicated region
        $region69: #{tpu_custom_call.1} parent=11 // pred_check
          %p518 = pneg %p370
        $region70: #{tpu_custom_call.1} parent=11 // pred_check_branch
          %520 = sbr.rel (%p518) target = $region72
        $region71: #{tpu_custom_call.1} parent=11 // pred_region
          _
        $region72: #{tpu_custom_call.1} parent=11 // pred_fallthru
          _
        // Predicated region
        $region73: #{tpu_custom_call.1} parent=11 // pred_check
          %p521 = pneg %p391
        $region74: #{tpu_custom_call.1} parent=11 // pred_check_branch
          %523 = sbr.rel (%p521) target = $region76
        $region75: #{tpu_custom_call.1} parent=11 // pred_region
          _
        $region76: #{tpu_custom_call.1} parent=11 // pred_fallthru
          _
      $region12: #{tpu_custom_call.1} parent=5 // pred_fallthru
        _
      %p524 = scmp.lt.s32.totalorder %s29, 2
      // Predicated region
      $region77: #{tpu_custom_call.1} parent=5 // pred_check
        %p525 = pneg %p524
      $region78: #{tpu_custom_call.1} parent=5 // pred_check_branch
        %527 = sbr.rel (%p525) target = $region80
      $region79: #{tpu_custom_call.1} parent=5 // pred_region
        // Predicated region
        $region81: #{tpu_custom_call.1} parent=79 // pred_check
          %p528 = pneg %p49
        $region82: #{tpu_custom_call.1} parent=79 // pred_check_branch
          %530 = sbr.rel (%p528) target = $region84
        $region83: #{tpu_custom_call.1} parent=79 // pred_region
          %p531 = scmp.lt.s32.totalorder %s29, 1
          %s532 = scalar_select %p531, %s29, 1
          %s533 = smul.addr %s532, 8
          %s534 = scalar_lea.vmem %s0, %s533
        $region84: #{tpu_custom_call.1} parent=79 // pred_fallthru
          _
      $region80: #{tpu_custom_call.1} parent=5 // pred_fallthru
        _
      %p535 = scmp.le.s32.totalorder 1, %s29
      %p536 = scmp.lt.s32.totalorder %s29, 3
      %p537 = pnand %p535, %p536
      %p538 = pneg %p537
      // Predicated region
      $region85: #{tpu_custom_call.1} parent=5 // pred_check
        _
      $region86: #{tpu_custom_call.1} parent=5 // pred_check_branch
        %540 = sbr.rel (%p537) target = $region88
      $region87: #{tpu_custom_call.1} parent=5 // pred_region
        %s541 = ssub.s32 %s29, 1
        // Predicated region
        $region89: #{tpu_custom_call.1} parent=87 // pred_check
          %p542 = pneg %p118
        $region90: #{tpu_custom_call.1} parent=87 // pred_check_branch
          %544 = sbr.rel (%p542) target = $region92
        $region91: #{tpu_custom_call.1} parent=87 // pred_region
          %545 = dma.done [#allocation3], 256
        $region92: #{tpu_custom_call.1} parent=87 // pred_fallthru
          _
        // Predicated region
        $region93: #{tpu_custom_call.1} parent=87 // pred_check
          %p546 = pneg %p181
        $region94: #{tpu_custom_call.1} parent=87 // pred_check_branch
          %548 = sbr.rel (%p546) target = $region96
        $region95: #{tpu_custom_call.1} parent=87 // pred_region
          %549 = dma.done [#allocation6], 16
        $region96: #{tpu_custom_call.1} parent=87 // pred_fallthru
          _
        // Predicated region
        $region97: #{tpu_custom_call.1} parent=87 // pred_check
          %p550 = pneg %p202
        $region98: #{tpu_custom_call.1} parent=87 // pred_check_branch
          %552 = sbr.rel (%p550) target = $region100
        $region99: #{tpu_custom_call.1} parent=87 // pred_region
          %553 = dma.done [#allocation6], 256
        $region100: #{tpu_custom_call.1} parent=87 // pred_fallthru
          _
        // Predicated region
        $region101: #{tpu_custom_call.1} parent=87 // pred_check
          %p554 = pneg %p223
        $region102: #{tpu_custom_call.1} parent=87 // pred_check_branch
          %556 = sbr.rel (%p554) target = $region104
        $region103: #{tpu_custom_call.1} parent=87 // pred_region
          %557 = dma.done [#allocation9], 16
        $region104: #{tpu_custom_call.1} parent=87 // pred_fallthru
          _
        // Predicated region
        $region105: #{tpu_custom_call.1} parent=87 // pred_check
          %p558 = pneg %p244
        $region106: #{tpu_custom_call.1} parent=87 // pred_check_branch
          %560 = sbr.rel (%p558) target = $region108
        $region107: #{tpu_custom_call.1} parent=87 // pred_region
          %561 = dma.done [#allocation9], 16
        $region108: #{tpu_custom_call.1} parent=87 // pred_fallthru
          _
        %p562 = scmp.lt.s32.totalorder %s34, 1
        %s563 = scalar_select %p562, %s34, 1
        %s564 = smul.addr %s563, 8
        %s565 = scalar_lea.vmem %s0, %s564
        %p566 = pneg %p55
        %p567 = pneg %p52
        %p568 = pneg %p76
        %p569 = pneg %p73
        %p570 = pneg %p97
        %p571 = pneg %p94
        %p572 = pneg %p118
        %p573 = pneg %p115
        %p574 = pneg %p139
        %p575 = pneg %p136
        %p576 = pneg %p160
        %p577 = pneg %p157
        %p578 = pneg %p181
        %p579 = pneg %p178
        %p580 = pneg %p202
        %p581 = pneg %p199
        %p582 = pneg %p223
        %p583 = pneg %p220
        %p584 = pneg %p244
        %p585 = pneg %p241
        %p586 = pneg %p265
        %p587 = pneg %p262
        %p588 = pneg %p286
        %p589 = pneg %p283
        %p590 = pneg %p307
        %p591 = pneg %p304
        %p592 = pneg %p328
        %p593 = pneg %p325
        %p594 = pneg %p349
        %p595 = pneg %p346
        %p596 = pneg %p370
        %p597 = pneg %p367
        %p598 = pneg %p391
        %p599 = pneg %p388
        %p600 = pneg %p417
        %p601 = pneg %p414
        %s602 = sand.u32 %s404, 1
        %s603 = scalar_lea.sflag [#allocation4], %s602
        %s604 = sand.u32 %s404, 1
        %s605 = smul.addr %s604, 8
        %s606 = scalar_lea.vmem [#allocation11], %s605
        %p607 = scmp.lt.s32.totalorder %s34, 1
        %s608 = scalar_select %p607, %s34, 1
        %s609 = smul.addr %s608, 8
        %s610 = scalar_lea.vmem %s0, %s609
        %v612 = vld [vmem:[%s610] sm:$0xff]
        %v613 = vpack.c.bf16 %v612, %v612
        %v614 = vld [vmem:[%s1] sm:$0xf]
        %v615 = vld [vmem:[%s1 + $0x4] sm:$0xf]
        %v616 = vld [vmem:[%s1 + $0x8] sm:$0xf]
        %v617 = vld [vmem:[%s1 + $0xc] sm:$0xf]
        %v618 = vld [vmem:[%s4] sm:$0x1]
        %v620 = vlaneseq
        %v621 = vshrl.u32 %v620, 7
        %v622 = vsub.s32 0, %v621
        %v623 = vrot.slane %v618, %v622
        %v629 = vunpack.c.l.b16 %v614
        %v630 = vunpack.c.l.b16 %v615
        %v631 = vunpack.c.l.b16 %v616
        %v632 = vunpack.c.l.b16 %v617
        %v633 = vpack.c.b16 %v630, %v629
        %v634 = vpack.c.b16 %v632, %v631
        %vm637 = vcmask 261120
        %v639 = vsel %vm637, %v613, 0
        %641 = vmatprep.subr.bf16.mxu0 0
        %642 = vmatpush1.bf16.msra.mxu0 %v633
        %643 = vmatprep.subr.bf16.mxu0 0
        %644 = vmatpush1.bf16.msra.mxu0 %v634
        %645 = vmatprep.subr.bf16.mxu0 0
        %646 = vmatpush1.bf16.msra.mxu0 0
        %647 = vmatprep.subr.bf16.mxu0 0
        %648 = vmatpush1.bf16.msra.mxu0 0
        %649 = vmatprep.subr.bf16.mxu0 0
        %650 = vmatpush1.bf16.msra.mxu0 0
        %651 = vmatprep.subr.bf16.mxu0 0
        %652 = vmatpush1.bf16.msra.mxu0 0
        %653 = vmatprep.subr.bf16.mxu0 0
        %654 = vmatpush1.bf16.msra.mxu0 0
        %655 = vmatprep.subr.bf16.mxu0 0
        %656 = vmatpush1.bf16.msra.mxu0 0
        %657 = vmatprep.subr.bf16.mxu0 0
        %658 = vmatpush1.bf16.msra.mxu0 0
        %659 = vmatprep.subr.bf16.mxu0 0
        %660 = vmatpush1.bf16.msra.mxu0 0
        %661 = vmatprep.subr.bf16.mxu0 0
        %662 = vmatpush1.bf16.msra.mxu0 0
        %663 = vmatprep.subr.bf16.mxu0 0
        %664 = vmatpush1.bf16.msra.mxu0 0
        %665 = vmatprep.subr.bf16.mxu0 0
        %666 = vmatpush1.bf16.msra.mxu0 0
        %667 = vmatprep.subr.bf16.mxu0 0
        %668 = vmatpush1.bf16.msra.mxu0 0
        %669 = vmatprep.subr.bf16.mxu0 0
        %670 = vmatpush1.bf16.msra.mxu0 0
        %671 = vmatprep.subr.bf16.mxu0 0
        %672 = vmatpush1.bf16.msra.mxu0 0
        %673 = vmatprep.mubr.bf16.mxu0 0
        %674 = vmatmul.mubr.bf16.gmra.mrb[0].mxu0 %v639
        %v675 = vpop.f32.mrb[0].mxu0
        %v676 = vadd.f32 %v623, %v675
        %v677 = vpop.f32.mrb[0].mxu0
        %v678 = vpop.f32.mrb[0].mxu0
        %v679 = vpop.f32.mrb[0].mxu0
        %680 = vdwg.mxu0
        %v681 = vpack.c.bf16 %v676, %v676
        %v682 = vld [vmem:[%s2] sm:$0xf]
        %v683 = vld [vmem:[%s2 + $0x4] sm:$0xf]
        %v684 = vld [vmem:[%s2 + $0x8] sm:$0xf]
        %v685 = vld [vmem:[%s2 + $0xc] sm:$0xf]
        %v686 = vld [vmem:[%s5] sm:$0x1]
        %v688 = vlaneseq
        %v689 = vshrl.u32 %v688, 7
        %v690 = vsub.s32 0, %v689
        %v691 = vrot.slane %v686, %v690
        %v697 = vunpack.c.l.b16 %v682
        %v698 = vunpack.c.l.b16 %v683
        %v699 = vunpack.c.l.b16 %v684
        %v700 = vunpack.c.l.b16 %v685
        %v701 = vpack.c.b16 %v698, %v697
        %v702 = vpack.c.b16 %v700, %v699
        %705 = vmatprep.subr.bf16.mxu0 0
        %706 = vmatpush1.bf16.msra.mxu0 %v701
        %707 = vmatprep.subr.bf16.mxu0 0
        %708 = vmatpush1.bf16.msra.mxu0 %v702
        %709 = vmatprep.subr.bf16.mxu0 0
        %710 = vmatpush1.bf16.msra.mxu0 0
        %711 = vmatprep.subr.bf16.mxu0 0
        %712 = vmatpush1.bf16.msra.mxu0 0
        %713 = vmatprep.subr.bf16.mxu0 0
        %714 = vmatpush1.bf16.msra.mxu0 0
        %715 = vmatprep.subr.bf16.mxu0 0
        %716 = vmatpush1.bf16.msra.mxu0 0
        %717 = vmatprep.subr.bf16.mxu0 0
        %718 = vmatpush1.bf16.msra.mxu0 0
        %719 = vmatprep.subr.bf16.mxu0 0
        %720 = vmatpush1.bf16.msra.mxu0 0
        %721 = vmatprep.subr.bf16.mxu0 0
        %722 = vmatpush1.bf16.msra.mxu0 0
        %723 = vmatprep.subr.bf16.mxu0 0
        %724 = vmatpush1.bf16.msra.mxu0 0
        %725 = vmatprep.subr.bf16.mxu0 0
        %726 = vmatpush1.bf16.msra.mxu0 0
        %727 = vmatprep.subr.bf16.mxu0 0
        %728 = vmatpush1.bf16.msra.mxu0 0
        %729 = vmatprep.subr.bf16.mxu0 0
        %730 = vmatpush1.bf16.msra.mxu0 0
        %731 = vmatprep.subr.bf16.mxu0 0
        %732 = vmatpush1.bf16.msra.mxu0 0
        %733 = vmatprep.subr.bf16.mxu0 0
        %734 = vmatpush1.bf16.msra.mxu0 0
        %735 = vmatprep.subr.bf16.mxu0 0
        %736 = vmatpush1.bf16.msra.mxu0 0
        %737 = vmatprep.mubr.bf16.mxu0 0
        %738 = vmatmul.mubr.bf16.gmra.mrb[0].mxu0 %v639
        %v739 = vpop.f32.mrb[0].mxu0
        %v740 = vadd.f32 %v691, %v739
        %v741 = vpop.f32.mrb[0].mxu0
        %v742 = vpop.f32.mrb[0].mxu0
        %v743 = vpop.f32.mrb[0].mxu0
        %744 = vdwg.mxu0
        %v745 = vpack.c.bf16 %v740, %v740
        %v746 = vld [vmem:[#allocation2] sm:$0xf]
        %v747 = vld [vmem:[#allocation2 + $0x4] sm:$0xf]
        %v748 = vld [vmem:[#allocation2 + $0x8] sm:$0xf]
        %v749 = vld [vmem:[#allocation2 + $0xc] sm:$0xf]
        %v750 = vld [vmem:[#allocation5] sm:$0x1]
        %v752 = vlaneseq
        %v753 = vshrl.u32 %v752, 7
        %v754 = vsub.s32 0, %v753
        %v755 = vrot.slane %v750, %v754
        %v761 = vunpack.c.l.b16 %v746
        %v762 = vunpack.c.l.b16 %v747
        %v763 = vunpack.c.l.b16 %v748
        %v764 = vunpack.c.l.b16 %v749
        %v765 = vpack.c.b16 %v762, %v761
        %v766 = vpack.c.b16 %v764, %v763
        %769 = vmatprep.subr.bf16.mxu0 0
        %770 = vmatpush1.bf16.msra.mxu0 %v765
        %771 = vmatprep.subr.bf16.mxu0 0
        %772 = vmatpush1.bf16.msra.mxu0 %v766
        %773 = vmatprep.subr.bf16.mxu0 0
        %774 = vmatpush1.bf16.msra.mxu0 0
        %775 = vmatprep.subr.bf16.mxu0 0
        %776 = vmatpush1.bf16.msra.mxu0 0
        %777 = vmatprep.subr.bf16.mxu0 0
        %778 = vmatpush1.bf16.msra.mxu0 0
        %779 = vmatprep.subr.bf16.mxu0 0
        %780 = vmatpush1.bf16.msra.mxu0 0
        %781 = vmatprep.subr.bf16.mxu0 0
        %782 = vmatpush1.bf16.msra.mxu0 0
        %783 = vmatprep.subr.bf16.mxu0 0
        %784 = vmatpush1.bf16.msra.mxu0 0
        %785 = vmatprep.subr.bf16.mxu0 0
        %786 = vmatpush1.bf16.msra.mxu0 0
        %787 = vmatprep.subr.bf16.mxu0 0
        %788 = vmatpush1.bf16.msra.mxu0 0
        %789 = vmatprep.subr.bf16.mxu0 0
        %790 = vmatpush1.bf16.msra.mxu0 0
        %791 = vmatprep.subr.bf16.mxu0 0
        %792 = vmatpush1.bf16.msra.mxu0 0
        %793 = vmatprep.subr.bf16.mxu0 0
        %794 = vmatpush1.bf16.msra.mxu0 0
        %795 = vmatprep.subr.bf16.mxu0 0
        %796 = vmatpush1.bf16.msra.mxu0 0
        %797 = vmatprep.subr.bf16.mxu0 0
        %798 = vmatpush1.bf16.msra.mxu0 0
        %799 = vmatprep.subr.bf16.mxu0 0
        %800 = vmatpush1.bf16.msra.mxu0 0
        %801 = vmatprep.mubr.bf16.mxu0 0
        %802 = vmatmul.mubr.bf16.gmra.mrb[0].mxu0 %v639
        %v803 = vpop.f32.mrb[0].mxu0
        %v804 = vadd.f32 %v755, %v803
        %v805 = vpop.f32.mrb[0].mxu0
        %v806 = vpop.f32.mrb[0].mxu0
        %v807 = vpop.f32.mrb[0].mxu0
        %808 = vdwg.mxu0
        %v809 = vpack.c.bf16 %v804, %v804
        %811 = vrot.lane.b32.xlu0 %v681, 120
        %v812 = vpop.permute.xlu0 %811
        %813 = vrot.lane.b32.xlu0 %v681, 112
        %v814 = vpop.permute.xlu0 %813
        %815 = vrot.lane.b32.xlu0 %v681, 104
        %v816 = vpop.permute.xlu0 %815
        %818 = vrot.lane.b32.xlu0 %v745, 120
        %v819 = vpop.permute.xlu0 %818
        %820 = vrot.lane.b32.xlu0 %v745, 112
        %v821 = vpop.permute.xlu0 %820
        %822 = vrot.lane.b32.xlu0 %v745, 104
        %v823 = vpop.permute.xlu0 %822
        %825 = vrot.lane.b32.xlu0 %v809, 120
        %v826 = vpop.permute.xlu0 %825
        %827 = vrot.lane.b32.xlu0 %v809, 112
        %v828 = vpop.permute.xlu0 %827
        %829 = vrot.lane.b32.xlu0 %v809, 104
        %v830 = vpop.permute.xlu0 %829
        %vm831 = vcmask 64512
        %v833 = vsel %vm831, %v681, 0
        %v836 = vsel %vm831, %v745, 0
        %838 = vmatprep.subr.bf16.mxu0 0
        %839 = vmatpush1.bf16.xpose.msra.mxu0 %v836
        %840 = vmatprep.subr.bf16.mxu0 0
        %841 = vmatpush1.bf16.xpose.msra.mxu0 0
        %842 = vmatprep.subr.bf16.mxu0 0
        %843 = vmatpush1.bf16.xpose.msra.mxu0 0
        %844 = vmatprep.subr.bf16.mxu0 0
        %845 = vmatpush1.bf16.xpose.msra.mxu0 0
        %846 = vmatprep.subr.bf16.mxu0 0
        %847 = vmatpush1.bf16.xpose.msra.mxu0 0
        %848 = vmatprep.subr.bf16.mxu0 0
        %849 = vmatpush1.bf16.xpose.msra.mxu0 0
        %850 = vmatprep.subr.bf16.mxu0 0
        %851 = vmatpush1.bf16.xpose.msra.mxu0 0
        %852 = vmatprep.subr.bf16.mxu0 0
        %853 = vmatpush1.bf16.xpose.msra.mxu0 0
        %854 = vmatprep.subr.bf16.mxu0 0
        %855 = vmatpush1.bf16.xpose.msra.mxu0 0
        %856 = vmatprep.subr.bf16.mxu0 0
        %857 = vmatpush1.bf16.xpose.msra.mxu0 0
        %858 = vmatprep.subr.bf16.mxu0 0
        %859 = vmatpush1.bf16.xpose.msra.mxu0 0
        %860 = vmatprep.subr.bf16.mxu0 0
        %861 = vmatpush1.bf16.xpose.msra.mxu0 0
        %862 = vmatprep.subr.bf16.mxu0 0
        %863 = vmatpush1.bf16.xpose.msra.mxu0 0
        %864 = vmatprep.subr.bf16.mxu0 0
        %865 = vmatpush1.bf16.xpose.msra.mxu0 0
        %866 = vmatprep.subr.bf16.mxu0 0
        %867 = vmatpush1.bf16.xpose.msra.mxu0 0
        %868 = vmatprep.subr.bf16.mxu0 0
        %869 = vmatpush1.bf16.xpose.msra.mxu0 0
        %870 = vmatprep.mubr.bf16.mxu0 0
        %871 = vmatmul.mubr.bf16.gmra.mrb[0].mxu0 %v833
        %v872 = vpop.f32.mrb[0].mxu0
        %v873 = vadd.f32 0.0, %v872
        %v874 = vpop.f32.mrb[0].mxu0
        %v875 = vpop.f32.mrb[0].mxu0
        %v876 = vpop.f32.mrb[0].mxu0
        %877 = vdwg.mxu0
        %v879 = vsel %vm831, %v812, 0
        %v882 = vsel %vm831, %v819, 0
        %884 = vmatprep.subr.bf16.mxu0 0
        %885 = vmatpush1.bf16.xpose.msra.mxu0 %v882
        %886 = vmatprep.subr.bf16.mxu0 0
        %887 = vmatpush1.bf16.xpose.msra.mxu0 0
        %888 = vmatprep.subr.bf16.mxu0 0
        %889 = vmatpush1.bf16.xpose.msra.mxu0 0
        %890 = vmatprep.subr.bf16.mxu0 0
        %891 = vmatpush1.bf16.xpose.msra.mxu0 0
        %892 = vmatprep.subr.bf16.mxu0 0
        %893 = vmatpush1.bf16.xpose.msra.mxu0 0
        %894 = vmatprep.subr.bf16.mxu0 0
        %895 = vmatpush1.bf16.xpose.msra.mxu0 0
        %896 = vmatprep.subr.bf16.mxu0 0
        %897 = vmatpush1.bf16.xpose.msra.mxu0 0
        %898 = vmatprep.subr.bf16.mxu0 0
        %899 = vmatpush1.bf16.xpose.msra.mxu0 0
        %900 = vmatprep.subr.bf16.mxu0 0
        %901 = vmatpush1.bf16.xpose.msra.mxu0 0
        %902 = vmatprep.subr.bf16.mxu0 0
        %903 = vmatpush1.bf16.xpose.msra.mxu0 0
        %904 = vmatprep.subr.bf16.mxu0 0
        %905 = vmatpush1.bf16.xpose.msra.mxu0 0
        %906 = vmatprep.subr.bf16.mxu0 0
        %907 = vmatpush1.bf16.xpose.msra.mxu0 0
        %908 = vmatprep.subr.bf16.mxu0 0
        %909 = vmatpush1.bf16.xpose.msra.mxu0 0
        %910 = vmatprep.subr.bf16.mxu0 0
        %911 = vmatpush1.bf16.xpose.msra.mxu0 0
        %912 = vmatprep.subr.bf16.mxu0 0
        %913 = vmatpush1.bf16.xpose.msra.mxu0 0
        %914 = vmatprep.subr.bf16.mxu0 0
        %915 = vmatpush1.bf16.xpose.msra.mxu0 0
        %916 = vmatprep.mubr.bf16.mxu0 0
        %917 = vmatmul.mubr.bf16.gmra.mrb[0].mxu0 %v879
        %v918 = vpop.f32.mrb[0].mxu0
        %v919 = vadd.f32 0.0, %v918
        %v920 = vpop.f32.mrb[0].mxu0
        %v921 = vpop.f32.mrb[0].mxu0
        %v922 = vpop.f32.mrb[0].mxu0
        %923 = vdwg.mxu0
        %v925 = vsel %vm831, %v814, 0
        %v928 = vsel %vm831, %v821, 0
        %930 = vmatprep.subr.bf16.mxu0 0
        %931 = vmatpush1.bf16.xpose.msra.mxu0 %v928
        %932 = vmatprep.subr.bf16.mxu0 0
        %933 = vmatpush1.bf16.xpose.msra.mxu0 0
        %934 = vmatprep.subr.bf16.mxu0 0
        %935 = vmatpush1.bf16.xpose.msra.mxu0 0
        %936 = vmatprep.subr.bf16.mxu0 0
        %937 = vmatpush1.bf16.xpose.msra.mxu0 0
        %938 = vmatprep.subr.bf16.mxu0 0
        %939 = vmatpush1.bf16.xpose.msra.mxu0 0
        %940 = vmatprep.subr.bf16.mxu0 0
        %941 = vmatpush1.bf16.xpose.msra.mxu0 0
        %942 = vmatprep.subr.bf16.mxu0 0
        %943 = vmatpush1.bf16.xpose.msra.mxu0 0
        %944 = vmatprep.subr.bf16.mxu0 0
        %945 = vmatpush1.bf16.xpose.msra.mxu0 0
        %946 = vmatprep.subr.bf16.mxu0 0
        %947 = vmatpush1.bf16.xpose.msra.mxu0 0
        %948 = vmatprep.subr.bf16.mxu0 0
        %949 = vmatpush1.bf16.xpose.msra.mxu0 0
        %950 = vmatprep.subr.bf16.mxu0 0
        %951 = vmatpush1.bf16.xpose.msra.mxu0 0
        %952 = vmatprep.subr.bf16.mxu0 0
        %953 = vmatpush1.bf16.xpose.msra.mxu0 0
        %954 = vmatprep.subr.bf16.mxu0 0
        %955 = vmatpush1.bf16.xpose.msra.mxu0 0
        %956 = vmatprep.subr.bf16.mxu0 0
        %957 = vmatpush1.bf16.xpose.msra.mxu0 0
        %958 = vmatprep.subr.bf16.mxu0 0
        %959 = vmatpush1.bf16.xpose.msra.mxu0 0
        %960 = vmatprep.subr.bf16.mxu0 0
        %961 = vmatpush1.bf16.xpose.msra.mxu0 0
        %962 = vmatprep.mubr.bf16.mxu0 0
        %963 = vmatmul.mubr.bf16.gmra.mrb[0].mxu0 %v925
        %v964 = vpop.f32.mrb[0].mxu0
        %v965 = vadd.f32 0.0, %v964
        %v966 = vpop.f32.mrb[0].mxu0
        %v967 = vpop.f32.mrb[0].mxu0
        %v968 = vpop.f32.mrb[0].mxu0
        %969 = vdwg.mxu0
        %v971 = vsel %vm831, %v816, 0
        %v974 = vsel %vm831, %v823, 0
        %976 = vmatprep.subr.bf16.mxu0 0
        %977 = vmatpush1.bf16.xpose.msra.mxu0 %v974
        %978 = vmatprep.subr.bf16.mxu0 0
        %979 = vmatpush1.bf16.xpose.msra.mxu0 0
        %980 = vmatprep.subr.bf16.mxu0 0
        %981 = vmatpush1.bf16.xpose.msra.mxu0 0
        %982 = vmatprep.subr.bf16.mxu0 0
        %983 = vmatpush1.bf16.xpose.msra.mxu0 0
        %984 = vmatprep.subr.bf16.mxu0 0
        %985 = vmatpush1.bf16.xpose.msra.mxu0 0
        %986 = vmatprep.subr.bf16.mxu0 0
        %987 = vmatpush1.bf16.xpose.msra.mxu0 0
        %988 = vmatprep.subr.bf16.mxu0 0
        %989 = vmatpush1.bf16.xpose.msra.mxu0 0
        %990 = vmatprep.subr.bf16.mxu0 0
        %991 = vmatpush1.bf16.xpose.msra.mxu0 0
        %992 = vmatprep.subr.bf16.mxu0 0
        %993 = vmatpush1.bf16.xpose.msra.mxu0 0
        %994 = vmatprep.subr.bf16.mxu0 0
        %995 = vmatpush1.bf16.xpose.msra.mxu0 0
        %996 = vmatprep.subr.bf16.mxu0 0
        %997 = vmatpush1.bf16.xpose.msra.mxu0 0
        %998 = vmatprep.subr.bf16.mxu0 0
        %999 = vmatpush1.bf16.xpose.msra.mxu0 0
        %1000 = vmatprep.subr.bf16.mxu0 0
        %1001 = vmatpush1.bf16.xpose.msra.mxu0 0
        %1002 = vmatprep.subr.bf16.mxu0 0
        %1003 = vmatpush1.bf16.xpose.msra.mxu0 0
        %1004 = vmatprep.subr.bf16.mxu0 0
        %1005 = vmatpush1.bf16.xpose.msra.mxu0 0
        %1006 = vmatprep.subr.bf16.mxu0 0
        %1007 = vmatpush1.bf16.xpose.msra.mxu0 0
        %1008 = vmatprep.mubr.bf16.mxu0 0
        %1009 = vmatmul.mubr.bf16.gmra.mrb[0].mxu0 %v971
        %v1010 = vpop.f32.mrb[0].mxu0
        %v1011 = vadd.f32 0.0, %v1010
        %v1012 = vpop.f32.mrb[0].mxu0
        %v1013 = vpop.f32.mrb[0].mxu0
        %v1014 = vpop.f32.mrb[0].mxu0
        %1015 = vdwg.mxu0
        %v1016 = vsel %vm831, %v873, -inf
        %1017 = vmax.xlane.f32.xlu0 %v1016
        %v1018 = vpop.xlane.xlu0 %1017
        %v1019 = vsel %vm831, %v919, -inf
        %1020 = vmax.xlane.f32.xlu0 %v1019
        %v1021 = vpop.xlane.xlu0 %1020
        %v1022 = vsel %vm831, %v965, -inf
        %1023 = vmax.xlane.f32.xlu0 %v1022
        %v1024 = vpop.xlane.xlu0 %1023
        %v1025 = vsel %vm831, %v1011, -inf
        %1026 = vmax.xlane.f32.xlu0 %v1025
        %v1027 = vpop.xlane.xlu0 %1026
        %v1028 = vsub.f32 %v873, %v1018
        %v1029 = vsub.f32 %v919, %v1021
        %v1030 = vsub.f32 %v965, %v1024
        %v1031 = vsub.f32 %v1011, %v1027
        %v1032 = vmul.f32 %v1028, 1.442695
        %v1033 = vpow.pop %v1032
        %v1034 = vmul.f32 %v1029, 1.442695
        %v1035 = vpow.pop %v1034
        %v1036 = vmul.f32 %v1030, 1.442695
        %v1037 = vpow.pop %v1036
        %v1038 = vmul.f32 %v1031, 1.442695
        %v1039 = vpow.pop %v1038
        %v1040 = vsel %vm831, %v1033, 0.0
        %1041 = vadd.xlane.f32.xlu0 %v1040
        %v1042 = vpop.xlane.xlu0 %1041
        %v1043 = vsel %vm831, %v1035, 0.0
        %1044 = vadd.xlane.f32.xlu0 %v1043
        %v1045 = vpop.xlane.xlu0 %1044
        %v1046 = vsel %vm831, %v1037, 0.0
        %1047 = vadd.xlane.f32.xlu0 %v1046
        %v1048 = vpop.xlane.xlu0 %1047
        %v1049 = vsel %vm831, %v1039, 0.0
        %1050 = vadd.xlane.f32.xlu0 %v1049
        %v1051 = vpop.xlane.xlu0 %1050
        %v1052 = vrcp.pop %v1042
        %v1053 = vrcp.pop %v1045
        %v1054 = vrcp.pop %v1048
        %v1055 = vrcp.pop %v1051
        %v1056 = vpack.c.bf16 %v1033, %v1033
        %v1057 = vpack.c.bf16 %v1035, %v1035
        %v1058 = vpack.c.bf16 %v1037, %v1037
        %v1059 = vpack.c.bf16 %v1039, %v1039
        %v1061 = vsel %vm831, %v1056, 0
        %vm1063 = vcmask 1043456
        %v1065 = vsel %vm1063, %v809, 0
        %1067 = vmatprep.subr.bf16.mxu0 0
        %1068 = vmatpush1.bf16.msra.mxu0 %v1065
        %1069 = vmatprep.subr.bf16.mxu0 0
        %1070 = vmatpush1.bf16.msra.mxu0 0
        %1071 = vmatprep.subr.bf16.mxu0 0
        %1072 = vmatpush1.bf16.msra.mxu0 0
        %1073 = vmatprep.subr.bf16.mxu0 0
        %1074 = vmatpush1.bf16.msra.mxu0 0
        %1075 = vmatprep.subr.bf16.mxu0 0
        %1076 = vmatpush1.bf16.msra.mxu0 0
        %1077 = vmatprep.subr.bf16.mxu0 0
        %1078 = vmatpush1.bf16.msra.mxu0 0
        %1079 = vmatprep.subr.bf16.mxu0 0
        %1080 = vmatpush1.bf16.msra.mxu0 0
        %1081 = vmatprep.subr.bf16.mxu0 0
        %1082 = vmatpush1.bf16.msra.mxu0 0
        %1083 = vmatprep.subr.bf16.mxu0 0
        %1084 = vmatpush1.bf16.msra.mxu0 0
        %1085 = vmatprep.subr.bf16.mxu0 0
        %1086 = vmatpush1.bf16.msra.mxu0 0
        %1087 = vmatprep.subr.bf16.mxu0 0
        %1088 = vmatpush1.bf16.msra.mxu0 0
        %1089 = vmatprep.subr.bf16.mxu0 0
        %1090 = vmatpush1.bf16.msra.mxu0 0
        %1091 = vmatprep.subr.bf16.mxu0 0
        %1092 = vmatpush1.bf16.msra.mxu0 0
        %1093 = vmatprep.subr.bf16.mxu0 0
        %1094 = vmatpush1.bf16.msra.mxu0 0
        %1095 = vmatprep.subr.bf16.mxu0 0
        %1096 = vmatpush1.bf16.msra.mxu0 0
        %1097 = vmatprep.subr.bf16.mxu0 0
        %1098 = vmatpush1.bf16.msra.mxu0 0
        %1099 = vmatprep.mubr.bf16.mxu0 0
        %1100 = vmatmul.mubr.bf16.gmra.mrb[0].mxu0 %v1061
        %v1101 = vpop.f32.mrb[0].mxu0
        %v1102 = vadd.f32 0.0, %v1101
        %v1103 = vpop.f32.mrb[0].mxu0
        %v1104 = vpop.f32.mrb[0].mxu0
        %v1105 = vpop.f32.mrb[0].mxu0
        %1106 = vdwg.mxu0
        %v1108 = vsel %vm831, %v1057, 0
        %v1111 = vsel %vm1063, %v826, 0
        %1113 = vmatprep.subr.bf16.mxu0 0
        %1114 = vmatpush1.bf16.msra.mxu0 %v1111
        %1115 = vmatprep.subr.bf16.mxu0 0
        %1116 = vmatpush1.bf16.msra.mxu0 0
        %1117 = vmatprep.subr.bf16.mxu0 0
        %1118 = vmatpush1.bf16.msra.mxu0 0
        %1119 = vmatprep.subr.bf16.mxu0 0
        %1120 = vmatpush1.bf16.msra.mxu0 0
        %1121 = vmatprep.subr.bf16.mxu0 0
        %1122 = vmatpush1.bf16.msra.mxu0 0
        %1123 = vmatprep.subr.bf16.mxu0 0
        %1124 = vmatpush1.bf16.msra.mxu0 0
        %1125 = vmatprep.subr.bf16.mxu0 0
        %1126 = vmatpush1.bf16.msra.mxu0 0
        %1127 = vmatprep.subr.bf16.mxu0 0
        %1128 = vmatpush1.bf16.msra.mxu0 0
        %1129 = vmatprep.subr.bf16.mxu0 0
        %1130 = vmatpush1.bf16.msra.mxu0 0
        %1131 = vmatprep.subr.bf16.mxu0 0
        %1132 = vmatpush1.bf16.msra.mxu0 0
        %1133 = vmatprep.subr.bf16.mxu0 0
        %1134 = vmatpush1.bf16.msra.mxu0 0
        %1135 = vmatprep.subr.bf16.mxu0 0
        %1136 = vmatpush1.bf16.msra.mxu0 0
        %1137 = vmatprep.subr.bf16.mxu0 0
        %1138 = vmatpush1.bf16.msra.mxu0 0
        %1139 = vmatprep.subr.bf16.mxu0 0
        %1140 = vmatpush1.bf16.msra.mxu0 0
        %1141 = vmatprep.subr.bf16.mxu0 0
        %1142 = vmatpush1.bf16.msra.mxu0 0
        %1143 = vmatprep.subr.bf16.mxu0 0
        %1144 = vmatpush1.bf16.msra.mxu0 0
        %1145 = vmatprep.mubr.bf16.mxu0 0
        %1146 = vmatmul.mubr.bf16.gmra.mrb[0].mxu0 %v1108
        %v1147 = vpop.f32.mrb[0].mxu0
        %v1148 = vadd.f32 0.0, %v1147
        %v1149 = vpop.f32.mrb[0].mxu0
        %v1150 = vpop.f32.mrb[0].mxu0
        %v1151 = vpop.f32.mrb[0].mxu0
        %1152 = vdwg.mxu0
        %v1154 = vsel %vm831, %v1058, 0
        %v1157 = vsel %vm1063, %v828, 0
        %1159 = vmatprep.subr.bf16.mxu0 0
        %1160 = vmatpush1.bf16.msra.mxu0 %v1157
        %1161 = vmatprep.subr.bf16.mxu0 0
        %1162 = vmatpush1.bf16.msra.mxu0 0
        %1163 = vmatprep.subr.bf16.mxu0 0
        %1164 = vmatpush1.bf16.msra.mxu0 0
        %1165 = vmatprep.subr.bf16.mxu0 0
        %1166 = vmatpush1.bf16.msra.mxu0 0
        %1167 = vmatprep.subr.bf16.mxu0 0
        %1168 = vmatpush1.bf16.msra.mxu0 0
        %1169 = vmatprep.subr.bf16.mxu0 0
        %1170 = vmatpush1.bf16.msra.mxu0 0
        %1171 = vmatprep.subr.bf16.mxu0 0
        %1172 = vmatpush1.bf16.msra.mxu0 0
        %1173 = vmatprep.subr.bf16.mxu0 0
        %1174 = vmatpush1.bf16.msra.mxu0 0
        %1175 = vmatprep.subr.bf16.mxu0 0
        %1176 = vmatpush1.bf16.msra.mxu0 0
        %1177 = vmatprep.subr.bf16.mxu0 0
        %1178 = vmatpush1.bf16.msra.mxu0 0
        %1179 = vmatprep.subr.bf16.mxu0 0
        %1180 = vmatpush1.bf16.msra.mxu0 0
        %1181 = vmatprep.subr.bf16.mxu0 0
        %1182 = vmatpush1.bf16.msra.mxu0 0
        %1183 = vmatprep.subr.bf16.mxu0 0
        %1184 = vmatpush1.bf16.msra.mxu0 0
        %1185 = vmatprep.subr.bf16.mxu0 0
        %1186 = vmatpush1.bf16.msra.mxu0 0
        %1187 = vmatprep.subr.bf16.mxu0 0
        %1188 = vmatpush1.bf16.msra.mxu0 0
        %1189 = vmatprep.subr.bf16.mxu0 0
        %1190 = vmatpush1.bf16.msra.mxu0 0
        %1191 = vmatprep.mubr.bf16.mxu0 0
        %1192 = vmatmul.mubr.bf16.gmra.mrb[0].mxu0 %v1154
        %v1193 = vpop.f32.mrb[0].mxu0
        %v1194 = vadd.f32 0.0, %v1193
        %v1195 = vpop.f32.mrb[0].mxu0
        %v1196 = vpop.f32.mrb[0].mxu0
        %v1197 = vpop.f32.mrb[0].mxu0
        %1198 = vdwg.mxu0
        %v1200 = vsel %vm831, %v1059, 0
        %v1203 = vsel %vm1063, %v830, 0
        %1205 = vmatprep.subr.bf16.mxu0 0
        %1206 = vmatpush1.bf16.msra.mxu0 %v1203
        %1207 = vmatprep.subr.bf16.mxu0 0
        %1208 = vmatpush1.bf16.msra.mxu0 0
        %1209 = vmatprep.subr.bf16.mxu0 0
        %1210 = vmatpush1.bf16.msra.mxu0 0
        %1211 = vmatprep.subr.bf16.mxu0 0
        %1212 = vmatpush1.bf16.msra.mxu0 0
        %1213 = vmatprep.subr.bf16.mxu0 0
        %1214 = vmatpush1.bf16.msra.mxu0 0
        %1215 = vmatprep.subr.bf16.mxu0 0
        %1216 = vmatpush1.bf16.msra.mxu0 0
        %1217 = vmatprep.subr.bf16.mxu0 0
        %1218 = vmatpush1.bf16.msra.mxu0 0
        %1219 = vmatprep.subr.bf16.mxu0 0
        %1220 = vmatpush1.bf16.msra.mxu0 0
        %1221 = vmatprep.subr.bf16.mxu0 0
        %1222 = vmatpush1.bf16.msra.mxu0 0
        %1223 = vmatprep.subr.bf16.mxu0 0
        %1224 = vmatpush1.bf16.msra.mxu0 0
        %1225 = vmatprep.subr.bf16.mxu0 0
        %1226 = vmatpush1.bf16.msra.mxu0 0
        %1227 = vmatprep.subr.bf16.mxu0 0
        %1228 = vmatpush1.bf16.msra.mxu0 0
        %1229 = vmatprep.subr.bf16.mxu0 0
        %1230 = vmatpush1.bf16.msra.mxu0 0
        %1231 = vmatprep.subr.bf16.mxu0 0
        %1232 = vmatpush1.bf16.msra.mxu0 0
        %1233 = vmatprep.subr.bf16.mxu0 0
        %1234 = vmatpush1.bf16.msra.mxu0 0
        %1235 = vmatprep.subr.bf16.mxu0 0
        %1236 = vmatpush1.bf16.msra.mxu0 0
        %1237 = vmatprep.mubr.bf16.mxu0 0
        %1238 = vmatmul.mubr.bf16.gmra.mrb[0].mxu0 %v1200
        %v1239 = vpop.f32.mrb[0].mxu0
        %v1240 = vadd.f32 0.0, %v1239
        %v1241 = vpop.f32.mrb[0].mxu0
        %v1242 = vpop.f32.mrb[0].mxu0
        %v1243 = vpop.f32.mrb[0].mxu0
        %1244 = vdwg.mxu0
        %v1245 = vmul.f32 %v1102, %v1052
        %v1246 = vmul.f32 %v1148, %v1053
        %v1247 = vmul.f32 %v1194, %v1054
        %v1248 = vmul.f32 %v1240, %v1055
        %1250 = vrot.lane.b32.xlu0 %v1246, 8
        %v1251 = vpop.permute.xlu0 %1250
        %1254 = vrot.lane.b32.xlu0 %v1247, 16
        %v1255 = vpop.permute.xlu0 %1254
        %1258 = vrot.lane.b32.xlu0 %v1248, 24
        %v1259 = vpop.permute.xlu0 %1258
        %v1261 = vsel %vm831, %v1245, %v1251
        %vm1262 = vcmask 130048
        %v1263 = vsel %vm1262, %v1261, %v1255
        %vm1264 = vcmask 195584
        %v1265 = vsel %vm1264, %v1263, %v1259
        %v1266 = vpack.c.bf16 %v1265, %v1265
        %v1267 = vld [vmem:[#allocation7] sm:$0xf]
        %v1268 = vld [vmem:[#allocation7 + $0x4] sm:$0xf]
        %v1269 = vld [vmem:[#allocation7 + $0x8] sm:$0xf]
        %v1270 = vld [vmem:[#allocation7 + $0xc] sm:$0xf]
        %v1271 = vld [vmem:[#allocation8] sm:$0x1]
        %v1273 = vlaneseq
        %v1274 = vshrl.u32 %v1273, 7
        %v1275 = vsub.s32 0, %v1274
        %v1276 = vrot.slane %v1271, %v1275
        %v1282 = vunpack.c.l.b16 %v1267
        %v1283 = vunpack.c.l.b16 %v1268
        %v1284 = vunpack.c.l.b16 %v1269
        %v1285 = vunpack.c.l.b16 %v1270
        %v1286 = vpack.c.b16 %v1283, %v1282
        %v1287 = vpack.c.b16 %v1285, %v1284
        %v1291 = vsel %vm637, %v1266, 0
        %1293 = vmatprep.subr.bf16.mxu0 0
        %1294 = vmatpush1.bf16.msra.mxu0 %v1286
        %1295 = vmatprep.subr.bf16.mxu0 0
        %1296 = vmatpush1.bf16.msra.mxu0 %v1287
        %1297 = vmatprep.subr.bf16.mxu0 0
        %1298 = vmatpush1.bf16.msra.mxu0 0
        %1299 = vmatprep.subr.bf16.mxu0 0
        %1300 = vmatpush1.bf16.msra.mxu0 0
        %1301 = vmatprep.subr.bf16.mxu0 0
        %1302 = vmatpush1.bf16.msra.mxu0 0
        %1303 = vmatprep.subr.bf16.mxu0 0
        %1304 = vmatpush1.bf16.msra.mxu0 0
        %1305 = vmatprep.subr.bf16.mxu0 0
        %1306 = vmatpush1.bf16.msra.mxu0 0
        %1307 = vmatprep.subr.bf16.mxu0 0
        %1308 = vmatpush1.bf16.msra.mxu0 0
        %1309 = vmatprep.subr.bf16.mxu0 0
        %1310 = vmatpush1.bf16.msra.mxu0 0
        %1311 = vmatprep.subr.bf16.mxu0 0
        %1312 = vmatpush1.bf16.msra.mxu0 0
        %1313 = vmatprep.subr.bf16.mxu0 0
        %1314 = vmatpush1.bf16.msra.mxu0 0
        %1315 = vmatprep.subr.bf16.mxu0 0
        %1316 = vmatpush1.bf16.msra.mxu0 0
        %1317 = vmatprep.subr.bf16.mxu0 0
        %1318 = vmatpush1.bf16.msra.mxu0 0
        %1319 = vmatprep.subr.bf16.mxu0 0
        %1320 = vmatpush1.bf16.msra.mxu0 0
        %1321 = vmatprep.subr.bf16.mxu0 0
        %1322 = vmatpush1.bf16.msra.mxu0 0
        %1323 = vmatprep.subr.bf16.mxu0 0
        %1324 = vmatpush1.bf16.msra.mxu0 0
        %1325 = vmatprep.mubr.bf16.mxu0 0
        %1326 = vmatmul.mubr.bf16.gmra.mrb[0].mxu0 %v1291
        %v1327 = vpop.f32.mrb[0].mxu0
        %v1328 = vadd.f32 %v1276, %v1327
        %v1329 = vpop.f32.mrb[0].mxu0
        %v1330 = vpop.f32.mrb[0].mxu0
        %v1331 = vpop.f32.mrb[0].mxu0
        %1332 = vdwg.mxu0
        %v1333 = vadd.f32 %v612, %v1328
        %v1334 = vld [vmem:[#allocation10] sm:$0x1]
        %v1335 = vld [vmem:[%s10] sm:$0x1]
        %v1336 = vsel %vm637, %v1333, 0.0
        %1337 = vadd.xlane.f32.xlu0 %v1336
        %v1338 = vpop.xlane.xlu0 %1337
        %v1339 = vrcp.pop 32.0
        %v1340 = vmul.f32 %v1338, %v1339
        %v1341 = vsub.f32 %v1333, %v1340
        %v1342 = vmul.f32 %v1341, %v1341
        %v1343 = vsel %vm637, %v1342, 0.0
        %1344 = vadd.xlane.f32.xlu0 %v1343
        %v1345 = vpop.xlane.xlu0 %1344
        %v1346 = vmul.f32 %v1345, %v1339
        %v1347 = vadd.f32 %v1346, 1e-05
        %v1348 = vrsqrt.pop %v1347
        %v1349 = vmul.f32 %v1341, %v1348
        %v1351 = vlaneseq
        %v1352 = vshrl.u32 %v1351, 7
        %v1353 = vsub.s32 0, %v1352
        %v1354 = vrot.slane %v1334, %v1353
        %v1356 = vmul.f32 %v1349, %v1354
        %v1358 = vlaneseq
        %v1359 = vshrl.u32 %v1358, 7
        %v1360 = vsub.s32 0, %v1359
        %v1361 = vrot.slane %v1335, %v1360
        %v1363 = vadd.f32 %v1356, %v1361
        %v1364 = vpack.c.bf16 %v1363, %v1363
        %v1365 = vld [vmem:[%s11] sm:$0xf]
        %v1366 = vld [vmem:[%s11 + $0x4] sm:$0xf]
        %v1367 = vld [vmem:[%s11 + $0x8] sm:$0xf]
        %v1368 = vld [vmem:[%s11 + $0xc] sm:$0xf]
        %v1369 = vld [vmem:[%s12] sm:$0x1]
        %v1371 = vlaneseq
        %v1372 = vshrl.u32 %v1371, 7
        %v1373 = vsub.s32 0, %v1372
        %v1374 = vrot.slane %v1369, %v1373
        %v1380 = vunpack.c.l.b16 %v1365
        %v1381 = vunpack.c.l.b16 %v1366
        %v1382 = vunpack.c.l.b16 %v1367
        %v1383 = vunpack.c.l.b16 %v1368
        %v1384 = vpack.c.b16 %v1381, %v1380
        %v1385 = vpack.c.b16 %v1383, %v1382
        %v1389 = vsel %vm637, %v1364, 0
        %1391 = vmatprep.subr.bf16.mxu0 0
        %1392 = vmatpush1.bf16.msra.mxu0 %v1384
        %1393 = vmatprep.subr.bf16.mxu0 0
        %1394 = vmatpush1.bf16.msra.mxu0 %v1385
        %1395 = vmatprep.subr.bf16.mxu0 0
        %1396 = vmatpush1.bf16.msra.mxu0 0
        %1397 = vmatprep.subr.bf16.mxu0 0
        %1398 = vmatpush1.bf16.msra.mxu0 0
        %1399 = vmatprep.subr.bf16.mxu0 0
        %1400 = vmatpush1.bf16.msra.mxu0 0
        %1401 = vmatprep.subr.bf16.mxu0 0
        %1402 = vmatpush1.bf16.msra.mxu0 0
        %1403 = vmatprep.subr.bf16.mxu0 0
        %1404 = vmatpush1.bf16.msra.mxu0 0
        %1405 = vmatprep.subr.bf16.mxu0 0
        %1406 = vmatpush1.bf16.msra.mxu0 0
        %1407 = vmatprep.subr.bf16.mxu0 0
        %1408 = vmatpush1.bf16.msra.mxu0 0
        %1409 = vmatprep.subr.bf16.mxu0 0
        %1410 = vmatpush1.bf16.msra.mxu0 0
        %1411 = vmatprep.subr.bf16.mxu0 0
        %1412 = vmatpush1.bf16.msra.mxu0 0
        %1413 = vmatprep.subr.bf16.mxu0 0
        %1414 = vmatpush1.bf16.msra.mxu0 0
        %1415 = vmatprep.subr.bf16.mxu0 0
        %1416 = vmatpush1.bf16.msra.mxu0 0
        %1417 = vmatprep.subr.bf16.mxu0 0
        %1418 = vmatpush1.bf16.msra.mxu0 0
        %1419 = vmatprep.subr.bf16.mxu0 0
        %1420 = vmatpush1.bf16.msra.mxu0 0
        %1421 = vmatprep.subr.bf16.mxu0 0
        %1422 = vmatpush1.bf16.msra.mxu0 0
        %1423 = vmatprep.mubr.bf16.mxu0 0
        %1424 = vmatmul.mubr.bf16.gmra.mrb[0].mxu0 %v1389
        %v1425 = vpop.f32.mrb[0].mxu0
        %v1426 = vadd.f32 %v1374, %v1425
        %v1427 = vpop.f32.mrb[0].mxu0
        %v1428 = vpop.f32.mrb[0].mxu0
        %v1429 = vpop.f32.mrb[0].mxu0
        %1430 = vdwg.mxu0
        %v1431 = vmax.f32 %v1426, 0.0
        %v1432 = vpack.c.bf16 %v1431, %v1431
        %v1433 = vld [vmem:[%s13] sm:$0xf]
        %v1434 = vld [vmem:[%s13 + $0x4] sm:$0xf]
        %v1435 = vld [vmem:[%s13 + $0x8] sm:$0xf]
        %v1436 = vld [vmem:[%s13 + $0xc] sm:$0xf]
        %v1437 = vld [vmem:[%s13 + $0x10] sm:$0xf]
        %v1438 = vld [vmem:[%s13 + $0x14] sm:$0xf]
        %v1439 = vld [vmem:[%s13 + $0x18] sm:$0xf]
        %v1440 = vld [vmem:[%s13 + $0x1c] sm:$0xf]
        %v1441 = vld [vmem:[%s14] sm:$0x1]
        %v1443 = vlaneseq
        %v1444 = vshrl.u32 %v1443, 7
        %v1445 = vsub.s32 0, %v1444
        %v1446 = vrot.slane %v1441, %v1445
        %v1456 = vunpack.c.l.b16 %v1433
        %v1457 = vunpack.c.l.b16 %v1434
        %v1458 = vunpack.c.l.b16 %v1435
        %v1459 = vunpack.c.l.b16 %v1436
        %v1460 = vunpack.c.l.b16 %v1437
        %v1461 = vunpack.c.l.b16 %v1438
        %v1462 = vunpack.c.l.b16 %v1439
        %v1463 = vunpack.c.l.b16 %v1440
        %v1464 = vpack.c.b16 %v1457, %v1456
        %v1465 = vpack.c.b16 %v1459, %v1458
        %v1466 = vpack.c.b16 %v1461, %v1460
        %v1467 = vpack.c.b16 %v1463, %v1462
        %vm1472 = vcmask 523264
        %v1474 = vsel %vm1472, %v1432, 0
        %1476 = vmatprep.subr.bf16.mxu0 0
        %1477 = vmatpush1.bf16.msra.mxu0 %v1464
        %1478 = vmatprep.subr.bf16.mxu0 0
        %1479 = vmatpush1.bf16.msra.mxu0 %v1465
        %1480 = vmatprep.subr.bf16.mxu0 0
        %1481 = vmatpush1.bf16.msra.mxu0 %v1466
        %1482 = vmatprep.subr.bf16.mxu0 0
        %1483 = vmatpush1.bf16.msra.mxu0 %v1467
        %1484 = vmatprep.subr.bf16.mxu0 0
        %1485 = vmatpush1.bf16.msra.mxu0 0
        %1486 = vmatprep.subr.bf16.mxu0 0
        %1487 = vmatpush1.bf16.msra.mxu0 0
        %1488 = vmatprep.subr.bf16.mxu0 0
        %1489 = vmatpush1.bf16.msra.mxu0 0
        %1490 = vmatprep.subr.bf16.mxu0 0
        %1491 = vmatpush1.bf16.msra.mxu0 0
        %1492 = vmatprep.subr.bf16.mxu0 0
        %1493 = vmatpush1.bf16.msra.mxu0 0
        %1494 = vmatprep.subr.bf16.mxu0 0
        %1495 = vmatpush1.bf16.msra.mxu0 0
        %1496 = vmatprep.subr.bf16.mxu0 0
        %1497 = vmatpush1.bf16.msra.mxu0 0
        %1498 = vmatprep.subr.bf16.mxu0 0
        %1499 = vmatpush1.bf16.msra.mxu0 0
        %1500 = vmatprep.subr.bf16.mxu0 0
        %1501 = vmatpush1.bf16.msra.mxu0 0
        %1502 = vmatprep.subr.bf16.mxu0 0
        %1503 = vmatpush1.bf16.msra.mxu0 0
        %1504 = vmatprep.subr.bf16.mxu0 0
        %1505 = vmatpush1.bf16.msra.mxu0 0
        %1506 = vmatprep.subr.bf16.mxu0 0
        %1507 = vmatpush1.bf16.msra.mxu0 0
        %1508 = vmatprep.mubr.bf16.mxu0 0
        %1509 = vmatmul.mubr.bf16.gmra.mrb[0].mxu0 %v1474
        %v1510 = vpop.f32.mrb[0].mxu0
        %v1511 = vadd.f32 %v1446, %v1510
        %v1512 = vpop.f32.mrb[0].mxu0
        %v1513 = vpop.f32.mrb[0].mxu0
        %v1514 = vpop.f32.mrb[0].mxu0
        %1515 = vdwg.mxu0
        %v1516 = vadd.f32 %v1363, %v1511
        %v1517 = vld [vmem:[%s15] sm:$0x1]
        %v1518 = vld [vmem:[%s16] sm:$0x1]
        %v1519 = vsel %vm637, %v1516, 0.0
        %1520 = vadd.xlane.f32.xlu0 %v1519
        %v1521 = vpop.xlane.xlu0 %1520
        %v1522 = vmul.f32 %v1521, %v1339
        %v1523 = vsub.f32 %v1516, %v1522
        %v1524 = vmul.f32 %v1523, %v1523
        %v1525 = vsel %vm637, %v1524, 0.0
        %1526 = vadd.xlane.f32.xlu0 %v1525
        %v1527 = vpop.xlane.xlu0 %1526
        %v1528 = vmul.f32 %v1527, %v1339
        %v1529 = vadd.f32 %v1528, 1e-05
        %v1530 = vrsqrt.pop %v1529
        %v1531 = vmul.f32 %v1523, %v1530
        %v1533 = vlaneseq
        %v1534 = vshrl.u32 %v1533, 7
        %v1535 = vsub.s32 0, %v1534
        %v1536 = vrot.slane %v1517, %v1535
        %v1538 = vmul.f32 %v1531, %v1536
        %v1540 = vlaneseq
        %v1541 = vshrl.u32 %v1540, 7
        %v1542 = vsub.s32 0, %v1541
        %v1543 = vrot.slane %v1518, %v1542
        %v1545 = vadd.f32 %v1538, %v1543
        %1546 = vst.msk [vmem:[%s606] sm:$0xff] %vm637, %v1545
        %s1547 = sand.u32 %s404, 1
        %s1548 = scalar_lea.sflag [#allocation4], %s1547
        %s1549 = sand.u32 %s404, 1
        %s1550 = smul.addr %s1549, 8
        %s1551 = scalar_lea.vmem [#allocation11], %s1550
        // Predicated region
        $region109: #{tpu_custom_call.1} parent=87 // pred_check
          %p1552 = pneg %p414
        $region110: #{tpu_custom_call.1} parent=87 // pred_check_branch
          %1554 = sbr.rel (%p1552) target = $region112
        $region111: #{tpu_custom_call.1} parent=87 // pred_region
          %s1556 = ssub.s32 128, 128
          %1557 = vsyncadd %s1548, %s1556
          %s1558 = smul.addr %s34, 128
          %s1559 = scalar_lea.hbm %s17, %s1558
          %s1561 = sshll.u32 %s1551, 4
          %s1562 = int_to_ptr.vmem [resolvable:$true] %s1561
          %1564 = dma.vmem_to_hbm [thread:$0]  %s1562, 128, %s1559, %s1548
        $region112: #{tpu_custom_call.1} parent=87 // pred_fallthru
          _
      $region88: #{tpu_custom_call.1} parent=5 // pred_fallthru
        _
      %p1565 = scmp.le.s32.totalorder 2, %s29
      // Predicated region
      $region113: #{tpu_custom_call.1} parent=5 // pred_check
        %p1566 = pneg %p1565
      $region114: #{tpu_custom_call.1} parent=5 // pred_check_branch
        %1568 = sbr.rel (%p1566) target = $region116
      $region115: #{tpu_custom_call.1} parent=5 // pred_region
        %s1569 = ssub.s32 %s29, 2
        // Predicated region
        $region117: #{tpu_custom_call.1} parent=115 // pred_check
          %p1570 = pneg %p420
        $region118: #{tpu_custom_call.1} parent=115 // pred_check_branch
          %1572 = sbr.rel (%p1570) target = $region120
        $region119: #{tpu_custom_call.1} parent=115 // pred_region
          %s1573 = sand.u32 %s405, 1
          %s1574 = scalar_lea.sflag [#allocation4], %s1573
          %s1575 = sand.u32 %s405, 1
          %s1576 = smul.addr %s1575, 8
          %s1577 = scalar_lea.vmem [#allocation11], %s1576
          %1578 = dma.done %s1574, 128
        $region120: #{tpu_custom_call.1} parent=115 // pred_fallthru
          _
      $region116: #{tpu_custom_call.1} parent=5 // pred_fallthru
        _
    $region6: #{tpu_custom_call.1} parent=1 // loop_footer
      %s33 = sadd.s32 1, %s29
    $region7: #{tpu_custom_call.1} parent=1 // loop_footer_branch
      %28 = sbr.rel target = $region3
    $region8: #{tpu_custom_call.1} parent=1 // loop_exit
      _
    %1579 = vsyncpa [#allocation3], 1
    %s1580 = scalar_lea.sflag [#allocation3], 1
    %1581 = vsyncpa %s1580, 1
    %1582 = vsyncpa [#allocation6], 1
    %1583 = vsyncpa [#allocation9], 1
    %1584 = vsyncpa [#allocation4], 1
    %s1585 = scalar_lea.sflag [#allocation4], 1
    %1586 = vsyncpa %s1585, 1

</llo_original>
